<compile_context>
chip_gen: v6e
topology: v6e:2x2x1
jax: 0.10.0
libtpu: 0.0.40
codegen_flags: <defaults>
</compile_context>

<pallas_src>
import functools
import numpy as np
import jax
import jax.numpy as jnp
from jax.experimental import pallas as pl
from jax.experimental.pallas import tpu as pltpu


# ----------------------------------------------------------------------------
# Earth position index (standard Pangu-Weather helper, deterministic, host-side)
# ----------------------------------------------------------------------------
def get_earth_position_index(window_size):
    win_pl, win_lat, win_lon = window_size
    coords_zi = np.arange(win_pl)
    coords_zj = -np.arange(win_pl) * win_pl
    coords_hi = np.arange(win_lat)
    coords_hj = -np.arange(win_lat) * win_lat
    coords_w = np.arange(win_lon)

    coords_1 = np.stack(np.meshgrid(coords_zi, coords_hi, coords_w, indexing="ij"))
    coords_2 = np.stack(np.meshgrid(coords_zj, coords_hj, coords_w, indexing="ij"))
    coords_flatten_1 = coords_1.reshape(3, -1)
    coords_flatten_2 = coords_2.reshape(3, -1)
    coords = coords_flatten_1[:, :, None] - coords_flatten_2[:, None, :]
    coords = coords.transpose(1, 2, 0).copy()

    coords[:, :, 2] += win_lon - 1
    coords[:, :, 1] *= 2 * win_lon - 1
    coords[:, :, 0] *= (2 * win_lon - 1) * win_lat * win_lat
    return coords.sum(-1)  # (N, N) int


# ----------------------------------------------------------------------------
# Pallas kernel: attention over a block of Wb windows for one batch index,
# all heads fused; QKV and output projections are single lane-dense matmuls.
# ----------------------------------------------------------------------------
def _earth_attn_kernel(*refs, num_heads, head_dim, has_mask):
    if has_mask:
        (x_ref, wqkv_ref, bqkv_ref, epb_ref, mask_ref,
         wp_ref, bp_ref, o_ref, y_scr) = refs
    else:
        (x_ref, wqkv_ref, bqkv_ref, epb_ref,
         wp_ref, bp_ref, o_ref, y_scr) = refs
        mask_ref = None

    _, Wb, N, C = x_ref.shape
    H, hd = num_heads, head_dim

    x = x_ref[0]                                    # (Wb, N, C) bf16
    xf = x.reshape(Wb * N, C)                       # layout no-op (N % 8 == 0)

    # --- Fused QKV projection: one MXU matmul, K = C, output width = 3C ---
    # (qk scale already folded into the q columns of wqkv / bqkv host-side.)
    qkv = jnp.dot(xf, wqkv_ref[...], preferred_element_type=jnp.float32)
    qkv = qkv + bqkv_ref[...]                       # (Wb*N, 3C) f32

    if has_mask:
        mask = mask_ref[0].astype(jnp.float32)      # (Wb, N, N)

    # Per-head attention.  The (N x hd)-shaped matmuls here are inherent to
    # multi-head attention; the big lane-dense matmuls (QKV, proj) are hoisted
    # out of this loop.  Each head writes its output slice once (no RMW).
    for h in range(H):
        q = qkv[:, h * hd:(h + 1) * hd].astype(jnp.bfloat16).reshape(Wb, N, hd)
        k = qkv[:, C + h * hd:C + (h + 1) * hd].astype(jnp.bfloat16).reshape(Wb, N, hd)
        v = qkv[:, 2 * C + h * hd:2 * C + (h + 1) * hd].astype(jnp.bfloat16).reshape(Wb, N, hd)

        # Attention scores, batched over the Wb windows.
        s = jnp.einsum("wnd,wmd->wnm", q, k,
                       preferred_element_type=jnp.float32)        # (Wb, N, N) f32
        s = s + epb_ref[h].astype(jnp.float32)                    # earth position bias
        if has_mask:
            s = s + mask

        # Softmax (f32; divide goes to the EUP slot).
        s = s - jnp.max(s, axis=-1, keepdims=True)
        p = jnp.exp(s)
        denom = jnp.sum(p, axis=-1, keepdims=True)
        p = (p * pl.reciprocal(denom, approx=True)).astype(jnp.bfloat16)

        # attn @ v, batched over windows; store this head's slice once.
        y = jnp.einsum("wnm,wmd->wnd", p, v,
                       preferred_element_type=jnp.float32)        # (Wb, N, hd)
        y_scr[:, :, h * hd:(h + 1) * hd] = y.astype(y_scr.dtype)

    # --- Single output projection: K = C contraction depth, C-wide output ---
    yf = y_scr[...].reshape(Wb * N, C)                            # bf16
    out = jnp.dot(yf, wp_ref[...], preferred_element_type=jnp.float32)
    out = out + bp_ref[...]
    o_ref[0] = out.reshape(Wb, N, C).astype(o_ref.dtype)


# ----------------------------------------------------------------------------
# VMEM budgeting (generation-aware) and window-block selection.
# ----------------------------------------------------------------------------
def _vmem_budget():
    """Returns (vmem_limit_bytes, block_budget_bytes)."""
    cap = 64 * 1024 * 1024               # conservative fallback (v7x per-core VMEM)
    try:
        info = pltpu.get_tpu_info()
        cap = int(getattr(info, "vmem_capacity_bytes", cap))
    except Exception:
        pass
    limit = min(cap * 3 // 4, 96 * 1024 * 1024)   # v7x ~48 MiB, v5e/v6e ~96 MiB
    budget = limit * 3 // 5
    return limit, budget


def _pick_window_block(nW_, N, C, H, has_mask, out_bytes, budget_bytes):
    """Largest divisor of nW_ whose blocks — including double-buffered weights,
    epb, mask and in-kernel temporaries — fit the VMEM block budget."""
    # Double-buffered constant-index blocks (Wqkv, bqkv, Wproj, bproj).
    # TODO(synk): single-buffer these via pipeline_mode=pl.Buffered(1) once
    # that path is validated on all target generations; budgeted for 2x here.
    wfixed = 2 * (C * 3 * C * 2 + 3 * C * 4 + C * C * 2 + C * 4)

    def est(wb):
        xb = wb * N * C * 2                  # bf16 x block
        ob = wb * N * C * out_bytes          # output block
        eb = H * wb * N * N * 2              # bf16 earth-position-bias block
        mb = wb * N * N * 2 if has_mask else 0
        scr = wb * N * C * 2                 # bf16 head-output slab (scratch)
        tmp = (wb * N * 3 * C * 4            # f32 fused qkv
               + 3 * wb * N * N * 4          # per-head f32 score temporaries
               + wb * N * C * 4)             # f32 proj output
        return wfixed + 2 * (xb + ob + eb + mb) + scr + tmp

    best = 1
    for d in range(1, nW_ + 1):
        if nW_ % d == 0 and est(d) <= budget_bytes:
            best = d
    return best


# ----------------------------------------------------------------------------
# One-time parameter repacking (hoisted out of the per-call hot path).
# ----------------------------------------------------------------------------
def prepare_earth_attention_params(params, window_size, num_heads):
    qkv_w = params["qkv_w"]                      # (C, 3C), stored (in, out)
    qkv_b = params["qkv_b"]                      # (3C,)
    C = qkv_w.shape[0]
    H = num_heads
    hd = C // H
    scale = hd ** (-0.5)
    N = int(np.prod(window_size))

    # Fold qk scale into the q columns (weight scaled before the bf16 cast;
    # biases kept in f32).
    col_scale = jnp.concatenate(
        [jnp.full((C,), scale, qkv_w.dtype), jnp.ones((2 * C,), qkv_w.dtype)])
    wqkv = (qkv_w * col_scale[None, :]).astype(jnp.bfloat16)          # (C, 3C)
    bqkv = (qkv_b * col_scale).astype(jnp.float32).reshape(1, 3 * C)

    wp = params["proj_w"].astype(jnp.bfloat16)                        # (C, C)
    bp = params["proj_b"].astype(jnp.float32).reshape(1, C)

    # Earth position bias gathered to (H, nW_, N, N), stored bf16.
    table = params["earth_position_bias_table"]                       # (T, nW_, H)
    nW_ = table.shape[1]
    epi = params["earth_position_index"].reshape(-1)
    epb = table[epi].reshape(N, N, nW_, H).transpose(3, 2, 0, 1)
    epb = epb.astype(jnp.bfloat16)                                    # (H, nW_, N, N)

    return dict(wqkv=wqkv, bqkv=bqkv, wp=wp, bp=bp, epb=epb,
                num_heads=H, head_dim=hd)


# ----------------------------------------------------------------------------
# Wrapper.
# ----------------------------------------------------------------------------
def earth_attention_3d(x, prepared, mask=None):
    """x: (B_, nW_, N, C). mask: optional (nLon, nW_, N, N) of 0 / -100.
    B_ must be laid out as batch*nLon with lon minor (matches the reference
    reshape).  Returns (B_, nW_, N, C)."""
    B_, nW_, N, C = x.shape
    H = prepared["num_heads"]
    hd = prepared["head_dim"]
    assert prepared["epb"].shape == (H, nW_, N, N)

    has_mask = mask is not None
    if has_mask:
        nLon = mask.shape[0]
        assert B_ % nLon == 0, "B_ must be batch * nLon with lon minor"

    out_bytes = jnp.dtype(x.dtype).itemsize
    vmem_limit, block_budget = _vmem_budget()
    Wb = _pick_window_block(nW_, N, C, H, has_mask, out_bytes, block_budget)

    # Windows OUTER, batch INNER: the epb block index only depends on w, so it
    # stays resident (not re-DMA'd) across the whole inner batch loop.
    grid = (nW_ // Wb, B_)

    const2 = lambda w, b: (0, 0)

    in_specs = [
        pl.BlockSpec((1, Wb, N, C), lambda w, b: (b, w, 0, 0)),        # x (bf16)
        pl.BlockSpec((C, 3 * C), const2),                              # Wqkv (q-scaled)
        pl.BlockSpec((1, 3 * C), const2),                              # bqkv (q-scaled)
        pl.BlockSpec((H, Wb, N, N), lambda w, b: (0, w, 0, 0)),        # epb  (bf16)
    ]
    inputs = [x.astype(jnp.bfloat16), prepared["wqkv"], prepared["bqkv"],
              prepared["epb"]]

    if has_mask:
        # 0 / -100 are exact in bf16; upcast to f32 inside the kernel.
        in_specs.append(pl.BlockSpec((1, Wb, N, N),
                                     lambda w, b: (b % nLon, w, 0, 0)))
        inputs.append(mask.astype(jnp.bfloat16))

    in_specs += [
        pl.BlockSpec((C, C), const2),                                  # Wproj
        pl.BlockSpec((1, C), const2),                                  # bproj
    ]
    inputs += [prepared["wp"], prepared["bp"]]

    kernel = functools.partial(_earth_attn_kernel, num_heads=H,
                               head_dim=hd, has_mask=has_mask)

    return pl.pallas_call(
        kernel,
        out_shape=jax.ShapeDtypeStruct((B_, nW_, N, C), x.dtype),
        grid=grid,
        in_specs=in_specs,
        out_specs=pl.BlockSpec((1, Wb, N, C), lambda w, b: (b, w, 0, 0)),
        scratch_shapes=[pltpu.VMEM((Wb, N, C), jnp.bfloat16)],
        compiler_params=pltpu.CompilerParams(
            dimension_semantics=("parallel", "parallel"),
            vmem_limit_bytes=vmem_limit),
    )(*inputs)


# ----------------------------------------------------------------------------
# Pure-JAX reference (mirrors the PyTorch forward exactly) for validation.
# ----------------------------------------------------------------------------
def reference(x, params, window_size, num_heads, mask=None):
    B_, nW_, N, C = x.shape
    hd = C // num_heads
    scale = hd ** (-0.5)
    qkv = x @ params["qkv_w"] + params["qkv_b"]
    qkv = qkv.reshape(B_, nW_, N, 3, num_heads, hd).transpose(3, 0, 4, 1, 2, 5)
    q, k, v = qkv[0], qkv[1], qkv[2]                         # (B_, H, nW_, N, hd)
    q = q * scale
    attn = jnp.einsum("bhwnd,bhwmd->bhwnm", q, k)
    epi = params["earth_position_index"].reshape(-1)
    epb = params["earth_position_bias_table"][epi].reshape(N, N, nW_, num_heads)
    epb = epb.transpose(3, 2, 0, 1)                          # (H, nW_, N, N)
    attn = attn + epb[None]
    if mask is not None:
        nLon = mask.shape[0]
        attn = attn.reshape(B_ // nLon, nLon, num_heads, nW_, N, N) + mask[None, :, None]
        attn = attn.reshape(B_, num_heads, nW_, N, N)
    attn = jax.nn.softmax(attn, axis=-1)
    out = jnp.einsum("bhwnm,bhwmd->bhwnd", attn, v)
    out = out.transpose(0, 2, 3, 1, 4).reshape(B_, nW_, N, C)
    return out @ params["proj_w"] + params["proj_b"]


# ----------------------------------------------------------------------------
# Demo
# ----------------------------------------------------------------------------
if __name__ == "__main__":
    dim = 32
    num_heads = 4
    input_resolution = (4, 8, 8)        # (pl, lat, lon)
    window_size = (2, 4, 4)             # (Wpl, Wlat, Wlon)
    Wpl, Wlat, Wlon = window_size
    N = Wpl * Wlat * Wlon               # 32 tokens per window
    type_of_windows = (input_resolution[0] // Wpl) * (input_resolution[1] // Wlat)  # 4
    num_lon = input_resolution[2] // Wlon                                            # 2
    B = 1
    B_ = B * num_lon                    # 2
    nW_ = type_of_windows               # 4
    table_size = Wpl ** 2 * Wlat ** 2 * (2 * Wlon - 1)

    key = jax.random.PRNGKey(0)
    kx, kt, kw1, kb1, kw2, kb2, km = jax.random.split(key, 7)

    x = jax.random.normal(kx, (B_, nW_, N, dim), dtype=jnp.float32)

    params = {
        # trunc_normal_(std=0.02)
        "earth_position_bias_table":
            0.02 * jax.random.truncated_normal(
                kt, -2.0, 2.0, (table_size, type_of_windows, num_heads), jnp.float32),
        "earth_position_index":
            jnp.asarray(get_earth_position_index(window_size), dtype=jnp.int32),
        # nn.Linear(dim, 3*dim) — stored as (in, out) so forward is x @ W + b
        "qkv_w": 0.05 * jax.random.normal(kw1, (dim, 3 * dim), jnp.float32),
        "qkv_b": 0.05 * jax.random.normal(kb1, (3 * dim,), jnp.float32),
        "proj_w": 0.05 * jax.random.normal(kw2, (dim, dim), jnp.float32),
        "proj_b": 0.05 * jax.random.normal(kb2, (dim,), jnp.float32),
    }
    # attn_drop / proj_drop default to p=0.0 -> identity (not emitted).

    # One-time weight / bias-table repacking (hoisted out of the hot path).
    prepared = prepare_earth_attention_params(params, window_size, num_heads)

    # --- no-mask path ---
    out = earth_attention_3d(x, prepared, mask=None)
    out = jax.block_until_ready(out)
    ref = reference(x, params, window_size, num_heads, mask=None)
    np.testing.assert_allclose(np.asarray(out), np.asarray(ref), rtol=2e-2, atol=2e-2)

    # --- masked (shifted-window) path ---
    mask_bits = jax.random.bernoulli(km, 0.25, (num_lon, nW_, N, N))
    mask = jnp.where(mask_bits, -100.0, 0.0).astype(jnp.float32)
    out_m = earth_attention_3d(x, prepared, mask=mask)
    out_m = jax.block_until_ready(out_m)
    ref_m = reference(x, params, window_size, num_heads, mask=mask)
    np.testing.assert_allclose(np.asarray(out_m), np.asarray(ref_m), rtol=2e-2, atol=2e-2)

    print("KERNEL_OK")
</pallas_src>

<mosaic_0001>
module attributes {stable_mosaic.version = 11 : i64} {
  func.func @_earth_attn_kernel(%arg0: i32, %arg1: i32, %arg2: memref<1x4x32x32xbf16, #tpu.memory_space<vmem>>, %arg3: memref<32x96xbf16, #tpu.memory_space<vmem>>, %arg4: memref<1x96xf32, #tpu.memory_space<vmem>>, %arg5: memref<4x4x32x32xbf16, #tpu.memory_space<vmem>>, %arg6: memref<32x32xbf16, #tpu.memory_space<vmem>>, %arg7: memref<1x32xf32, #tpu.memory_space<vmem>>, %arg8: memref<1x4x32x32xf32, #tpu.memory_space<vmem>>, %arg9: memref<4x32x32xbf16, #tpu.memory_space<vmem>>) attributes {dimension_semantics = [#tpu.dimension_semantics<parallel>, #tpu.dimension_semantics<parallel>], iteration_bounds = array<i64: 1, 2>, scalar_prefetch = 0 : i64, scratch_operands = 1 : i64, tpu.core_type = #tpu.core_type<tc>, window_params = [{transform_indices = @transform_0, window_bounds = array<i64: 1, 4, 32, 32>}, {pipeline_mode = #tpu.pipeline_mode<synchronous>, transform_indices = @transform_1, window_bounds = array<i64: 32, 96>}, {pipeline_mode = #tpu.pipeline_mode<synchronous>, transform_indices = @transform_2, window_bounds = array<i64: 1, 96>}, {transform_indices = @transform_3, window_bounds = array<i64: 4, 4, 32, 32>}, {pipeline_mode = #tpu.pipeline_mode<synchronous>, transform_indices = @transform_4, window_bounds = array<i64: 32, 32>}, {pipeline_mode = #tpu.pipeline_mode<synchronous>, transform_indices = @transform_5, window_bounds = array<i64: 1, 32>}, {transform_indices = @transform_6, window_bounds = array<i64: 1, 4, 32, 32>}]} {
    %c0 = arith.constant 0 : index
    %c0_0 = arith.constant 0 : index
    %c0_1 = arith.constant 0 : index
    %c0_2 = arith.constant 0 : index
    %0 = vector.load %arg2[%c0, %c0_0, %c0_1, %c0_2] : memref<1x4x32x32xbf16, #tpu.memory_space<vmem>>, vector<1x4x32x32xbf16>
    %1 = vector.shape_cast %0 : vector<1x4x32x32xbf16> to vector<4x32x32xbf16>
    %2 = vector.shape_cast %1 : vector<4x32x32xbf16> to vector<128x32xbf16>
    %c0_3 = arith.constant 0 : index
    %c0_4 = arith.constant 0 : index
    %3 = vector.load %arg3[%c0_3, %c0_4] : memref<32x96xbf16, #tpu.memory_space<vmem>>, vector<32x96xbf16>
    %cst = arith.constant dense<0.000000e+00> : vector<128x96xf32>
    %4 = tpu.matmul %2, %3, %cst {dimension_numbers = #tpu.dot_dimension_numbers<[1], [0], [0], [1], [0, 0, 1, 1], [], []>} : vector<128x32xbf16>, vector<32x96xbf16>, vector<128x96xf32> -> vector<128x96xf32>
    %c0_5 = arith.constant 0 : index
    %c0_6 = arith.constant 0 : index
    %5 = vector.load %arg4[%c0_5, %c0_6] : memref<1x96xf32, #tpu.memory_space<vmem>>, vector<1x96xf32>
    %6 = vector.broadcast %5 : vector<1x96xf32> to vector<128x96xf32>
    %7 = arith.addf %4, %6 : vector<128x96xf32>
    %8 = vector.extract_strided_slice %7 {offsets = [0, 0], sizes = [128, 8], strides = [1, 1]} : vector<128x96xf32> to vector<128x8xf32>
    %9 = arith.truncf %8 : vector<128x8xf32> to vector<128x8xbf16>
    %10 = vector.shape_cast %9 : vector<128x8xbf16> to vector<4x32x8xbf16>
    %11 = vector.extract_strided_slice %7 {offsets = [0, 32], sizes = [128, 8], strides = [1, 1]} : vector<128x96xf32> to vector<128x8xf32>
    %12 = arith.truncf %11 : vector<128x8xf32> to vector<128x8xbf16>
    %13 = vector.shape_cast %12 : vector<128x8xbf16> to vector<4x32x8xbf16>
    %14 = vector.extract_strided_slice %7 {offsets = [0, 64], sizes = [128, 8], strides = [1, 1]} : vector<128x96xf32> to vector<128x8xf32>
    %15 = arith.truncf %14 : vector<128x8xf32> to vector<128x8xbf16>
    %16 = vector.shape_cast %15 : vector<128x8xbf16> to vector<4x32x8xbf16>
    "tpu.trace_start"() <{level = 10 : i32, message = "wnd,wmd->wnm"}> : () -> ()
    %cst_7 = arith.constant dense<0.000000e+00> : vector<4x32x32xf32>
    %17 = tpu.matmul %10, %13, %cst_7 {dimension_numbers = #tpu.dot_dimension_numbers<[2], [2], [1], [1], [0, 0, 0, 1, 1, 1], [0], [0]>} : vector<4x32x8xbf16>, vector<4x32x8xbf16>, vector<4x32x32xf32> -> vector<4x32x32xf32>
    "tpu.trace_stop"() : () -> ()
    %c0_8 = arith.constant 0 : index
    %c0_9 = arith.constant 0 : index
    %c0_10 = arith.constant 0 : index
    %c0_11 = arith.constant 0 : index
    %18 = vector.load %arg5[%c0_8, %c0_9, %c0_10, %c0_11] : memref<4x4x32x32xbf16, #tpu.memory_space<vmem>>, vector<1x4x32x32xbf16>
    %19 = vector.shape_cast %18 : vector<1x4x32x32xbf16> to vector<4x32x32xbf16>
    %20 = arith.extf %19 : vector<4x32x32xbf16> to vector<4x32x32xf32>
    %21 = arith.addf %17, %20 : vector<4x32x32xf32>
    %cst_12 = arith.constant dense<0xFF800000> : vector<4x32xf32>
    %22 = vector.multi_reduction <maximumf>, %21, %cst_12 [2] : vector<4x32x32xf32> to vector<4x32xf32>
    %23 = vector.shape_cast %22 : vector<4x32xf32> to vector<4x32x1xf32>
    %24 = vector.broadcast %23 : vector<4x32x1xf32> to vector<4x32x32xf32>
    %25 = arith.subf %21, %24 : vector<4x32x32xf32>
    %26 = math.exp %25 : vector<4x32x32xf32>
    %cst_13 = arith.constant dense<0.000000e+00> : vector<4x32xf32>
    %27 = vector.multi_reduction <add>, %26, %cst_13 [2] : vector<4x32x32xf32> to vector<4x32xf32>
    %28 = vector.shape_cast %27 : vector<4x32xf32> to vector<4x32x1xf32>
    %29 = tpu.reciprocal %28 {approx = true} : vector<4x32x1xf32> -> vector<4x32x1xf32>
    %30 = vector.broadcast %29 : vector<4x32x1xf32> to vector<4x32x32xf32>
    %31 = arith.mulf %26, %30 : vector<4x32x32xf32>
    %32 = arith.truncf %31 : vector<4x32x32xf32> to vector<4x32x32xbf16>
    "tpu.trace_start"() <{level = 10 : i32, message = "wnm,wmd->wnd"}> : () -> ()
    %cst_14 = arith.constant dense<0.000000e+00> : vector<4x32x8xf32>
    %33 = tpu.matmul %32, %16, %cst_14 {dimension_numbers = #tpu.dot_dimension_numbers<[2], [1], [1], [2], [0, 0, 0, 1, 1, 2], [0], [0]>} : vector<4x32x32xbf16>, vector<4x32x8xbf16>, vector<4x32x8xf32> -> vector<4x32x8xf32>
    "tpu.trace_stop"() : () -> ()
    %34 = arith.truncf %33 : vector<4x32x8xf32> to vector<4x32x8xbf16>
    %c0_15 = arith.constant 0 : index
    %c0_16 = arith.constant 0 : index
    %c0_17 = arith.constant 0 : index
    %35 = vector.load %arg9[%c0_15, %c0_16, %c0_17] : memref<4x32x32xbf16, #tpu.memory_space<vmem>>, vector<4x32x8xbf16>
    tpu.vector_store %arg9[%c0_15, %c0_16, %c0_17], %34 {strides = array<i32>} : memref<4x32x32xbf16, #tpu.memory_space<vmem>>, vector<4x32x8xbf16>,
    %36 = vector.extract_strided_slice %7 {offsets = [0, 8], sizes = [128, 8], strides = [1, 1]} : vector<128x96xf32> to vector<128x8xf32>
    %37 = arith.truncf %36 : vector<128x8xf32> to vector<128x8xbf16>
    %38 = vector.shape_cast %37 : vector<128x8xbf16> to vector<4x32x8xbf16>
    %39 = vector.extract_strided_slice %7 {offsets = [0, 40], sizes = [128, 8], strides = [1, 1]} : vector<128x96xf32> to vector<128x8xf32>
    %40 = arith.truncf %39 : vector<128x8xf32> to vector<128x8xbf16>
    %41 = vector.shape_cast %40 : vector<128x8xbf16> to vector<4x32x8xbf16>
    %42 = vector.extract_strided_slice %7 {offsets = [0, 72], sizes = [128, 8], strides = [1, 1]} : vector<128x96xf32> to vector<128x8xf32>
    %43 = arith.truncf %42 : vector<128x8xf32> to vector<128x8xbf16>
    %44 = vector.shape_cast %43 : vector<128x8xbf16> to vector<4x32x8xbf16>
    "tpu.trace_start"() <{level = 10 : i32, message = "wnd,wmd->wnm"}> : () -> ()
    %cst_18 = arith.constant dense<0.000000e+00> : vector<4x32x32xf32>
    %45 = tpu.matmul %38, %41, %cst_18 {dimension_numbers = #tpu.dot_dimension_numbers<[2], [2], [1], [1], [0, 0, 0, 1, 1, 1], [0], [0]>} : vector<4x32x8xbf16>, vector<4x32x8xbf16>, vector<4x32x32xf32> -> vector<4x32x32xf32>
    "tpu.trace_stop"() : () -> ()
    %c1 = arith.constant 1 : index
    %c0_19 = arith.constant 0 : index
    %c0_20 = arith.constant 0 : index
    %c0_21 = arith.constant 0 : index
    %46 = vector.load %arg5[%c1, %c0_19, %c0_20, %c0_21] : memref<4x4x32x32xbf16, #tpu.memory_space<vmem>>, vector<1x4x32x32xbf16>
    %47 = vector.shape_cast %46 : vector<1x4x32x32xbf16> to vector<4x32x32xbf16>
    %48 = arith.extf %47 : vector<4x32x32xbf16> to vector<4x32x32xf32>
    %49 = arith.addf %45, %48 : vector<4x32x32xf32>
    %cst_22 = arith.constant dense<0xFF800000> : vector<4x32xf32>
    %50 = vector.multi_reduction <maximumf>, %49, %cst_22 [2] : vector<4x32x32xf32> to vector<4x32xf32>
    %51 = vector.shape_cast %50 : vector<4x32xf32> to vector<4x32x1xf32>
    %52 = vector.broadcast %51 : vector<4x32x1xf32> to vector<4x32x32xf32>
    %53 = arith.subf %49, %52 : vector<4x32x32xf32>
    %54 = math.exp %53 : vector<4x32x32xf32>
    %cst_23 = arith.constant dense<0.000000e+00> : vector<4x32xf32>
    %55 = vector.multi_reduction <add>, %54, %cst_23 [2] : vector<4x32x32xf32> to vector<4x32xf32>
    %56 = vector.shape_cast %55 : vector<4x32xf32> to vector<4x32x1xf32>
    %57 = tpu.reciprocal %56 {approx = true} : vector<4x32x1xf32> -> vector<4x32x1xf32>
    %58 = vector.broadcast %57 : vector<4x32x1xf32> to vector<4x32x32xf32>
    %59 = arith.mulf %54, %58 : vector<4x32x32xf32>
    %60 = arith.truncf %59 : vector<4x32x32xf32> to vector<4x32x32xbf16>
    "tpu.trace_start"() <{level = 10 : i32, message = "wnm,wmd->wnd"}> : () -> ()
    %cst_24 = arith.constant dense<0.000000e+00> : vector<4x32x8xf32>
    %61 = tpu.matmul %60, %44, %cst_24 {dimension_numbers = #tpu.dot_dimension_numbers<[2], [1], [1], [2], [0, 0, 0, 1, 1, 2], [0], [0]>} : vector<4x32x32xbf16>, vector<4x32x8xbf16>, vector<4x32x8xf32> -> vector<4x32x8xf32>
    "tpu.trace_stop"() : () -> ()
    %62 = arith.truncf %61 : vector<4x32x8xf32> to vector<4x32x8xbf16>
    %c0_25 = arith.constant 0 : index
    %c0_26 = arith.constant 0 : index
    %c8 = arith.constant 8 : index
    %63 = vector.load %arg9[%c0_25, %c0_26, %c8] : memref<4x32x32xbf16, #tpu.memory_space<vmem>>, vector<4x32x8xbf16>
    tpu.vector_store %arg9[%c0_25, %c0_26, %c8], %62 {strides = array<i32>} : memref<4x32x32xbf16, #tpu.memory_space<vmem>>, vector<4x32x8xbf16>,
    %64 = vector.extract_strided_slice %7 {offsets = [0, 16], sizes = [128, 8], strides = [1, 1]} : vector<128x96xf32> to vector<128x8xf32>
    %65 = arith.truncf %64 : vector<128x8xf32> to vector<128x8xbf16>
    %66 = vector.shape_cast %65 : vector<128x8xbf16> to vector<4x32x8xbf16>
    %67 = vector.extract_strided_slice %7 {offsets = [0, 48], sizes = [128, 8], strides = [1, 1]} : vector<128x96xf32> to vector<128x8xf32>
    %68 = arith.truncf %67 : vector<128x8xf32> to vector<128x8xbf16>
    %69 = vector.shape_cast %68 : vector<128x8xbf16> to vector<4x32x8xbf16>
    %70 = vector.extract_strided_slice %7 {offsets = [0, 80], sizes = [128, 8], strides = [1, 1]} : vector<128x96xf32> to vector<128x8xf32>
    %71 = arith.truncf %70 : vector<128x8xf32> to vector<128x8xbf16>
    %72 = vector.shape_cast %71 : vector<128x8xbf16> to vector<4x32x8xbf16>
    "tpu.trace_start"() <{level = 10 : i32, message = "wnd,wmd->wnm"}> : () -> ()
    %cst_27 = arith.constant dense<0.000000e+00> : vector<4x32x32xf32>
    %73 = tpu.matmul %66, %69, %cst_27 {dimension_numbers = #tpu.dot_dimension_numbers<[2], [2], [1], [1], [0, 0, 0, 1, 1, 1], [0], [0]>} : vector<4x32x8xbf16>, vector<4x32x8xbf16>, vector<4x32x32xf32> -> vector<4x32x32xf32>
    "tpu.trace_stop"() : () -> ()
    %c2 = arith.constant 2 : index
    %c0_28 = arith.constant 0 : index
    %c0_29 = arith.constant 0 : index
    %c0_30 = arith.constant 0 : index
    %74 = vector.load %arg5[%c2, %c0_28, %c0_29, %c0_30] : memref<4x4x32x32xbf16, #tpu.memory_space<vmem>>, vector<1x4x32x32xbf16>
    %75 = vector.shape_cast %74 : vector<1x4x32x32xbf16> to vector<4x32x32xbf16>
    %76 = arith.extf %75 : vector<4x32x32xbf16> to vector<4x32x32xf32>
    %77 = arith.addf %73, %76 : vector<4x32x32xf32>
    %cst_31 = arith.constant dense<0xFF800000> : vector<4x32xf32>
    %78 = vector.multi_reduction <maximumf>, %77, %cst_31 [2] : vector<4x32x32xf32> to vector<4x32xf32>
    %79 = vector.shape_cast %78 : vector<4x32xf32> to vector<4x32x1xf32>
    %80 = vector.broadcast %79 : vector<4x32x1xf32> to vector<4x32x32xf32>
    %81 = arith.subf %77, %80 : vector<4x32x32xf32>
    %82 = math.exp %81 : vector<4x32x32xf32>
    %cst_32 = arith.constant dense<0.000000e+00> : vector<4x32xf32>
    %83 = vector.multi_reduction <add>, %82, %cst_32 [2] : vector<4x32x32xf32> to vector<4x32xf32>
    %84 = vector.shape_cast %83 : vector<4x32xf32> to vector<4x32x1xf32>
    %85 = tpu.reciprocal %84 {approx = true} : vector<4x32x1xf32> -> vector<4x32x1xf32>
    %86 = vector.broadcast %85 : vector<4x32x1xf32> to vector<4x32x32xf32>
    %87 = arith.mulf %82, %86 : vector<4x32x32xf32>
    %88 = arith.truncf %87 : vector<4x32x32xf32> to vector<4x32x32xbf16>
    "tpu.trace_start"() <{level = 10 : i32, message = "wnm,wmd->wnd"}> : () -> ()
    %cst_33 = arith.constant dense<0.000000e+00> : vector<4x32x8xf32>
    %89 = tpu.matmul %88, %72, %cst_33 {dimension_numbers = #tpu.dot_dimension_numbers<[2], [1], [1], [2], [0, 0, 0, 1, 1, 2], [0], [0]>} : vector<4x32x32xbf16>, vector<4x32x8xbf16>, vector<4x32x8xf32> -> vector<4x32x8xf32>
    "tpu.trace_stop"() : () -> ()
    %90 = arith.truncf %89 : vector<4x32x8xf32> to vector<4x32x8xbf16>
    %c0_34 = arith.constant 0 : index
    %c0_35 = arith.constant 0 : index
    %c16 = arith.constant 16 : index
    %91 = vector.load %arg9[%c0_34, %c0_35, %c16] : memref<4x32x32xbf16, #tpu.memory_space<vmem>>, vector<4x32x8xbf16>
    tpu.vector_store %arg9[%c0_34, %c0_35, %c16], %90 {strides = array<i32>} : memref<4x32x32xbf16, #tpu.memory_space<vmem>>, vector<4x32x8xbf16>,
    %92 = vector.extract_strided_slice %7 {offsets = [0, 24], sizes = [128, 8], strides = [1, 1]} : vector<128x96xf32> to vector<128x8xf32>
    %93 = arith.truncf %92 : vector<128x8xf32> to vector<128x8xbf16>
    %94 = vector.shape_cast %93 : vector<128x8xbf16> to vector<4x32x8xbf16>
    %95 = vector.extract_strided_slice %7 {offsets = [0, 56], sizes = [128, 8], strides = [1, 1]} : vector<128x96xf32> to vector<128x8xf32>
    %96 = arith.truncf %95 : vector<128x8xf32> to vector<128x8xbf16>
    %97 = vector.shape_cast %96 : vector<128x8xbf16> to vector<4x32x8xbf16>
    %98 = vector.extract_strided_slice %7 {offsets = [0, 88], sizes = [128, 8], strides = [1, 1]} : vector<128x96xf32> to vector<128x8xf32>
    %99 = arith.truncf %98 : vector<128x8xf32> to vector<128x8xbf16>
    %100 = vector.shape_cast %99 : vector<128x8xbf16> to vector<4x32x8xbf16>
    "tpu.trace_start"() <{level = 10 : i32, message = "wnd,wmd->wnm"}> : () -> ()
    %cst_36 = arith.constant dense<0.000000e+00> : vector<4x32x32xf32>
    %101 = tpu.matmul %94, %97, %cst_36 {dimension_numbers = #tpu.dot_dimension_numbers<[2], [2], [1], [1], [0, 0, 0, 1, 1, 1], [0], [0]>} : vector<4x32x8xbf16>, vector<4x32x8xbf16>, vector<4x32x32xf32> -> vector<4x32x32xf32>
    "tpu.trace_stop"() : () -> ()
    %c3 = arith.constant 3 : index
    %c0_37 = arith.constant 0 : index
    %c0_38 = arith.constant 0 : index
    %c0_39 = arith.constant 0 : index
    %102 = vector.load %arg5[%c3, %c0_37, %c0_38, %c0_39] : memref<4x4x32x32xbf16, #tpu.memory_space<vmem>>, vector<1x4x32x32xbf16>
    %103 = vector.shape_cast %102 : vector<1x4x32x32xbf16> to vector<4x32x32xbf16>
    %104 = arith.extf %103 : vector<4x32x32xbf16> to vector<4x32x32xf32>
    %105 = arith.addf %101, %104 : vector<4x32x32xf32>
    %cst_40 = arith.constant dense<0xFF800000> : vector<4x32xf32>
    %106 = vector.multi_reduction <maximumf>, %105, %cst_40 [2] : vector<4x32x32xf32> to vector<4x32xf32>
    %107 = vector.shape_cast %106 : vector<4x32xf32> to vector<4x32x1xf32>
    %108 = vector.broadcast %107 : vector<4x32x1xf32> to vector<4x32x32xf32>
    %109 = arith.subf %105, %108 : vector<4x32x32xf32>
    %110 = math.exp %109 : vector<4x32x32xf32>
    %cst_41 = arith.constant dense<0.000000e+00> : vector<4x32xf32>
    %111 = vector.multi_reduction <add>, %110, %cst_41 [2] : vector<4x32x32xf32> to vector<4x32xf32>
    %112 = vector.shape_cast %111 : vector<4x32xf32> to vector<4x32x1xf32>
    %113 = tpu.reciprocal %112 {approx = true} : vector<4x32x1xf32> -> vector<4x32x1xf32>
    %114 = vector.broadcast %113 : vector<4x32x1xf32> to vector<4x32x32xf32>
    %115 = arith.mulf %110, %114 : vector<4x32x32xf32>
    %116 = arith.truncf %115 : vector<4x32x32xf32> to vector<4x32x32xbf16>
    "tpu.trace_start"() <{level = 10 : i32, message = "wnm,wmd->wnd"}> : () -> ()
    %cst_42 = arith.constant dense<0.000000e+00> : vector<4x32x8xf32>
    %117 = tpu.matmul %116, %100, %cst_42 {dimension_numbers = #tpu.dot_dimension_numbers<[2], [1], [1], [2], [0, 0, 0, 1, 1, 2], [0], [0]>} : vector<4x32x32xbf16>, vector<4x32x8xbf16>, vector<4x32x8xf32> -> vector<4x32x8xf32>
    "tpu.trace_stop"() : () -> ()
    %118 = arith.truncf %117 : vector<4x32x8xf32> to vector<4x32x8xbf16>
    %c0_43 = arith.constant 0 : index
    %c0_44 = arith.constant 0 : index
    %c24 = arith.constant 24 : index
    %119 = vector.load %arg9[%c0_43, %c0_44, %c24] : memref<4x32x32xbf16, #tpu.memory_space<vmem>>, vector<4x32x8xbf16>
    tpu.vector_store %arg9[%c0_43, %c0_44, %c24], %118 {strides = array<i32>} : memref<4x32x32xbf16, #tpu.memory_space<vmem>>, vector<4x32x8xbf16>,
    %c0_45 = arith.constant 0 : index
    %c0_46 = arith.constant 0 : index
    %c0_47 = arith.constant 0 : index
    %120 = vector.load %arg9[%c0_45, %c0_46, %c0_47] : memref<4x32x32xbf16, #tpu.memory_space<vmem>>, vector<4x32x32xbf16>
    %121 = vector.shape_cast %120 : vector<4x32x32xbf16> to vector<128x32xbf16>
    %c0_48 = arith.constant 0 : index
    %c0_49 = arith.constant 0 : index
    %122 = vector.load %arg6[%c0_48, %c0_49] : memref<32x32xbf16, #tpu.memory_space<vmem>>, vector<32x32xbf16>
    %cst_50 = arith.constant dense<0.000000e+00> : vector<128x32xf32>
    %123 = tpu.matmul %121, %122, %cst_50 {dimension_numbers = #tpu.dot_dimension_numbers<[1], [0], [0], [1], [0, 0, 1, 1], [], []>} : vector<128x32xbf16>, vector<32x32xbf16>, vector<128x32xf32> -> vector<128x32xf32>
    %c0_51 = arith.constant 0 : index
    %c0_52 = arith.constant 0 : index
    %124 = vector.load %arg7[%c0_51, %c0_52] : memref<1x32xf32, #tpu.memory_space<vmem>>, vector<1x32xf32>
    %125 = vector.broadcast %124 : vector<1x32xf32> to vector<128x32xf32>
    %126 = arith.addf %123, %125 : vector<128x32xf32>
    %127 = vector.shape_cast %126 : vector<128x32xf32> to vector<4x32x32xf32>
    %c0_53 = arith.constant 0 : index
    %c0_54 = arith.constant 0 : index
    %c0_55 = arith.constant 0 : index
    %c0_56 = arith.constant 0 : index
    %128 = vector.load %arg8[%c0_53, %c0_54, %c0_55, %c0_56] : memref<1x4x32x32xf32, #tpu.memory_space<vmem>>, vector<1x4x32x32xf32>
    %129 = vector.shape_cast %128 : vector<1x4x32x32xf32> to vector<4x32x32xf32>
    %130 = vector.shape_cast %127 : vector<4x32x32xf32> to vector<1x4x32x32xf32>
    tpu.vector_store %arg8[%c0_53, %c0_54, %c0_55, %c0_56], %130 {strides = array<i32>} : memref<1x4x32x32xf32, #tpu.memory_space<vmem>>, vector<1x4x32x32xf32>,
    return
  }
  func.func @transform_0(%arg0: i32, %arg1: i32) -> (i32, i32, i32, i32) {
    %c0_i32 = arith.constant 0 : i32
    %c0_i32_0 = arith.constant 0 : i32
    %c0_i32_1 = arith.constant 0 : i32
    return %arg1, %arg0, %c0_i32, %c0_i32_0 : i32, i32, i32, i32
  }
  func.func @transform_1(%arg0: i32, %arg1: i32) -> (i32, i32) {
    %c0_i32 = arith.constant 0 : i32
    %c0_i32_0 = arith.constant 0 : i32
    %c0_i32_1 = arith.constant 0 : i32
    return %c0_i32, %c0_i32_0 : i32, i32
  }
  func.func @transform_2(%arg0: i32, %arg1: i32) -> (i32, i32) {
    %c0_i32 = arith.constant 0 : i32
    %c0_i32_0 = arith.constant 0 : i32
    %c0_i32_1 = arith.constant 0 : i32
    return %c0_i32, %c0_i32_0 : i32, i32
  }
  func.func @transform_3(%arg0: i32, %arg1: i32) -> (i32, i32, i32, i32) {
    %c0_i32 = arith.constant 0 : i32
    %c0_i32_0 = arith.constant 0 : i32
    %c0_i32_1 = arith.constant 0 : i32
    %c0_i32_2 = arith.constant 0 : i32
    return %c0_i32, %arg0, %c0_i32_0, %c0_i32_1 : i32, i32, i32, i32
  }
  func.func @transform_4(%arg0: i32, %arg1: i32) -> (i32, i32) {
    %c0_i32 = arith.constant 0 : i32
    %c0_i32_0 = arith.constant 0 : i32
    %c0_i32_1 = arith.constant 0 : i32
    return %c0_i32, %c0_i32_0 : i32, i32
  }
  func.func @transform_5(%arg0: i32, %arg1: i32) -> (i32, i32) {
    %c0_i32 = arith.constant 0 : i32
    %c0_i32_0 = arith.constant 0 : i32
    %c0_i32_1 = arith.constant 0 : i32
    return %c0_i32, %c0_i32_0 : i32, i32
  }
  func.func @transform_6(%arg0: i32, %arg1: i32) -> (i32, i32, i32, i32) {
    %c0_i32 = arith.constant 0 : i32
    %c0_i32_0 = arith.constant 0 : i32
    %c0_i32_1 = arith.constant 0 : i32
    return %arg1, %arg0, %c0_i32, %c0_i32_0 : i32, i32, i32, i32
  }
}

</mosaic_0001>

<llo_original>
// kernel: tpu_custom_call.1
$region0: #{tpu_custom_call.1}
  #allocation0 [shape = 'u32[]', space=smem, size = 0x4, offset = 0x4, fixed_abs, tag = 'smem constant byte address 0x4 - core index']
  #allocation1 [shape = 'u32[144,128]{1,0:T(1,128)}', space=vmem, size = 0x12000, scoped, tag = 'internal scratch']
  #allocation2 [shape = 'bf16[4,32,32]{2,1,0:T(8,128)(2,1)}', space=vmem, size = 0x8000, scoped, tag = 'scratch operand']
  %s0 = inlined_call_operand.hbm [shape: bf16[2,4,32,32], index: 0, kind: input, shape index: {}]
  %s1 = inlined_call_operand.hbm [shape: bf16[32,96], index: 1, kind: input, shape index: {}]
  %s2 = inlined_call_operand.vmem [shape: f32[1,96], index: 2, kind: input, shape index: {}]
  %s3 = inlined_call_operand.hbm [shape: bf16[4,4,32,32], index: 3, kind: input, shape index: {}]
  %s4 = inlined_call_operand.hbm [shape: bf16[32,32], index: 4, kind: input, shape index: {}]
  %s5 = inlined_call_operand.vmem [shape: f32[1,32], index: 5, kind: input, shape index: {}]
  %s6 = inlined_call_operand.hbm [shape: f32[2,4,32,32], index: 6, kind: output, shape index: {}]
  %s7 = sld [smem:[#allocation0]]
  $region73: #{tpu_custom_call.1} parent=0
    _
  %s9 = ssub.s32 1, %s7
  %s10 = scalar_select 0, %s9, %s7
  $region1: #{tpu_custom_call.1} parent=0
    #allocation3 [shape = 'u8[65536]{0}', space=vmem, size = 0x10000, scoped, tag = 'input window, operand 0']
    #allocation4 [shape = 's32[2]{0}', space=sflag, size = 0x8, scoped, tag = 'scoped memory for tpu_custom_call.1']
    #allocation5 [shape = 's32[2]{0}', space=sflag, size = 0x8, scoped, tag = 'scoped memory for tpu_custom_call.1']
    #allocation6 [shape = 'u8[8192]{0}', space=vmem, size = 0x2000, scoped, tag = 'input window, operand 1, single buffered']
    #allocation7 [shape = 's32[1]{0}', space=sflag, size = 0x4, scoped, tag = 'scoped memory for tpu_custom_call.1']
    #allocation8 [shape = 'u8[131072]{0}', space=vmem, size = 0x20000, scoped, tag = 'input window, operand 3, single buffered']
    #allocation9 [shape = 'u8[8192]{0}', space=vmem, size = 0x2000, scoped, tag = 'input window, operand 4, single buffered']
    #allocation10 [shape = 's32[1]{0}', space=sflag, size = 0x4, scoped, tag = 'scoped memory for tpu_custom_call.1']
    #allocation11 [shape = 'u8[131072]{0}', space=vmem, size = 0x20000, scoped, tag = 'output window, operand 0']
    %11 = vsyncpa [#allocation4], 0
    %s12 = scalar_lea.sflag [#allocation4], 1
    %13 = vsyncpa %s12, 0
    %14 = vsyncpa [#allocation7], 0
    %15 = vsyncpa [#allocation10], 0
    %16 = vsyncpa [#allocation5], 0
    %s17 = scalar_lea.sflag [#allocation5], 1
    %18 = vsyncpa %s17, 0
    loop: start=0, step=1, limit=4
    $region2: #{tpu_custom_call.1} parent=1 // loop_pre_header
      _
    $region3: #{tpu_custom_call.1} parent=1 // loop_header
      %s20 = sphi 0, %s24
      %p21 = scmp.ge.s32.totalorder %s20, 4
      %s27 = sphi 0, %s39
      %s28 = sphi 0, %s35
      %s29 = sphi 0, %s27
      %s30 = sphi 0, %s28
      %s31 = sphi 0, %s29
      %s32 = sphi 0, %s30
      %s44 = sphi 0, %s46
      %s47 = sphi 0, %s44
      %s48 = sphi 0, %s47
      %s64 = sphi 0, %s48
      %s68 = sphi 0, %s68
      %s70 = sphi 0, %s68
      %s71 = sphi 0, %s70
      %s85 = sphi 0, %s71
      %s89 = sphi 0, %s89
      %s91 = sphi 0, %s89
      %s92 = sphi 0, %s91
      %s106 = sphi 0, %s92
      %s112 = sphi 0, %s114
      %s115 = sphi 0, %s112
      %s116 = sphi 0, %s115
      %s132 = sphi 0, %s116
      %s136 = sphi 0, %s136
      %s138 = sphi 0, %s136
      %s139 = sphi 0, %s138
      %s153 = sphi 0, %s139
      %s157 = sphi 0, %s157
      %s159 = sphi 0, %s157
      %s160 = sphi 0, %s159
      %s174 = sphi 0, %s160
      %s182 = sphi 0, %s184
      %s185 = sphi 0, %s182
      %s186 = sphi 0, %s185
      %s202 = sphi 0, %s186
    $region4: #{tpu_custom_call.1} parent=1 // loop_header_branch
      %23 = sbr.rel (%p21) target = $region8
    $region5: #{tpu_custom_call.1} parent=1 // loop_body
      %s25 = ssub.s32 %s20, 1
      %s26 = ssub.s32 %s20, 2
      %s33 = sadd.s32 1, %s28
      %p34 = scmp.ge.s32.totalorder %s33, 2
      %s35 = scalar_select %p34, 0, %s33
      %s36 = sadd.s32 1, %s27
      %s37 = scalar_select %p34, %s36, %s27
      %p38 = scmp.ge.s32.totalorder %s37, 1
      %s39 = scalar_select %p38, 0, %s37
      %s40 = ssub.s32 %s28, %s35
      %s41 = ssub.s32 %s27, %s39
      %s42 = sor.u32 %s40, %s41
      %p43 = scmp.eq.s32.totalorder %s42, 0
      %s45 = sadd.s32 %s44, 1
      %s46 = scalar_select %p43, %s44, %s45
      %p49 = pneg %p43
      %p50 = scmp.eq.s32.totalorder %s20, 1
      %p51 = por %p49, %p50
      %p52 = scmp.ne.s32.totalorder %s44, %s47
      %p53 = scmp.eq.s32.totalorder %s20, 0
      %p54 = por %p52, %p53
      %p55 = scmp.ne.s32.totalorder %s44, %s47
      %p56 = scmp.eq.s32.totalorder %s25, 1
      %p57 = por %p55, %p56
      %p58 = scmp.ne.s32.totalorder %s47, %s48
      %p59 = scmp.eq.s32.totalorder %s25, 0
      %p60 = por %p58, %p59
      %p61 = scmp.ne.s32.totalorder %s47, %s48
      %p62 = scmp.eq.s32.totalorder %s26, 1
      %p63 = por %p61, %p62
      %p65 = scmp.ne.s32.totalorder %s48, %s64
      %p66 = scmp.eq.s32.totalorder %s26, 0
      %p67 = por %p65, %p66
      %s69 = sadd.s32 %s68, 1
      %p72 = scmp.eq.s32.totalorder %s20, 1
      %p73 = scmp.ne.s32.totalorder %s68, %s70
      %p74 = scmp.eq.s32.totalorder %s20, 0
      %p75 = por %p73, %p74
      %p76 = scmp.ne.s32.totalorder %s68, %s70
      %p77 = scmp.eq.s32.totalorder %s25, 1
      %p78 = por %p76, %p77
      %p79 = scmp.ne.s32.totalorder %s70, %s71
      %p80 = scmp.eq.s32.totalorder %s25, 0
      %p81 = por %p79, %p80
      %p82 = scmp.ne.s32.totalorder %s70, %s71
      %p83 = scmp.eq.s32.totalorder %s26, 1
      %p84 = por %p82, %p83
      %p86 = scmp.ne.s32.totalorder %s71, %s85
      %p87 = scmp.eq.s32.totalorder %s26, 0
      %p88 = por %p86, %p87
      %s90 = sadd.s32 %s89, 1
      %p93 = scmp.eq.s32.totalorder %s20, 1
      %p94 = scmp.ne.s32.totalorder %s89, %s91
      %p95 = scmp.eq.s32.totalorder %s20, 0
      %p96 = por %p94, %p95
      %p97 = scmp.ne.s32.totalorder %s89, %s91
      %p98 = scmp.eq.s32.totalorder %s25, 1
      %p99 = por %p97, %p98
      %p100 = scmp.ne.s32.totalorder %s91, %s92
      %p101 = scmp.eq.s32.totalorder %s25, 0
      %p102 = por %p100, %p101
      %p103 = scmp.ne.s32.totalorder %s91, %s92
      %p104 = scmp.eq.s32.totalorder %s26, 1
      %p105 = por %p103, %p104
      %p107 = scmp.ne.s32.totalorder %s92, %s106
      %p108 = scmp.eq.s32.totalorder %s26, 0
      %p109 = por %p107, %p108
      %s110 = ssub.s32 %s27, %s39
      %p111 = scmp.eq.s32.totalorder %s110, 0
      %s113 = sadd.s32 %s112, 1
      %s114 = scalar_select %p111, %s112, %s113
      %p117 = pneg %p111
      %p118 = scmp.eq.s32.totalorder %s20, 1
      %p119 = por %p117, %p118
      %p120 = scmp.ne.s32.totalorder %s112, %s115
      %p121 = scmp.eq.s32.totalorder %s20, 0
      %p122 = por %p120, %p121
      %p123 = scmp.ne.s32.totalorder %s112, %s115
      %p124 = scmp.eq.s32.totalorder %s25, 1
      %p125 = por %p123, %p124
      %p126 = scmp.ne.s32.totalorder %s115, %s116
      %p127 = scmp.eq.s32.totalorder %s25, 0
      %p128 = por %p126, %p127
      %p129 = scmp.ne.s32.totalorder %s115, %s116
      %p130 = scmp.eq.s32.totalorder %s26, 1
      %p131 = por %p129, %p130
      %p133 = scmp.ne.s32.totalorder %s116, %s132
      %p134 = scmp.eq.s32.totalorder %s26, 0
      %p135 = por %p133, %p134
      %s137 = sadd.s32 %s136, 1
      %p140 = scmp.eq.s32.totalorder %s20, 1
      %p141 = scmp.ne.s32.totalorder %s136, %s138
      %p142 = scmp.eq.s32.totalorder %s20, 0
      %p143 = por %p141, %p142
      %p144 = scmp.ne.s32.totalorder %s136, %s138
      %p145 = scmp.eq.s32.totalorder %s25, 1
      %p146 = por %p144, %p145
      %p147 = scmp.ne.s32.totalorder %s138, %s139
      %p148 = scmp.eq.s32.totalorder %s25, 0
      %p149 = por %p147, %p148
      %p150 = scmp.ne.s32.totalorder %s138, %s139
      %p151 = scmp.eq.s32.totalorder %s26, 1
      %p152 = por %p150, %p151
      %p154 = scmp.ne.s32.totalorder %s139, %s153
      %p155 = scmp.eq.s32.totalorder %s26, 0
      %p156 = por %p154, %p155
      %s158 = sadd.s32 %s157, 1
      %p161 = scmp.eq.s32.totalorder %s20, 1
      %p162 = scmp.ne.s32.totalorder %s157, %s159
      %p163 = scmp.eq.s32.totalorder %s20, 0
      %p164 = por %p162, %p163
      %p165 = scmp.ne.s32.totalorder %s157, %s159
      %p166 = scmp.eq.s32.totalorder %s25, 1
      %p167 = por %p165, %p166
      %p168 = scmp.ne.s32.totalorder %s159, %s160
      %p169 = scmp.eq.s32.totalorder %s25, 0
      %p170 = por %p168, %p169
      %p171 = scmp.ne.s32.totalorder %s159, %s160
      %p172 = scmp.eq.s32.totalorder %s26, 1
      %p173 = por %p171, %p172
      %p175 = scmp.ne.s32.totalorder %s160, %s174
      %p176 = scmp.eq.s32.totalorder %s26, 0
      %p177 = por %p175, %p176
      %s178 = ssub.s32 %s28, %s35
      %s179 = ssub.s32 %s27, %s39
      %s180 = sor.u32 %s178, %s179
      %p181 = scmp.eq.s32.totalorder %s180, 0
      %s183 = sadd.s32 %s182, 1
      %s184 = scalar_select %p181, %s182, %s183
      %p187 = pneg %p181
      %p188 = scmp.eq.s32.totalorder %s20, 1
      %p189 = por %p187, %p188
      %p190 = scmp.ne.s32.totalorder %s182, %s185
      %p191 = scmp.eq.s32.totalorder %s20, 0
      %p192 = por %p190, %p191
      %p193 = scmp.ne.s32.totalorder %s182, %s185
      %p194 = scmp.eq.s32.totalorder %s25, 1
      %p195 = por %p193, %p194
      %p196 = scmp.ne.s32.totalorder %s185, %s186
      %p197 = scmp.eq.s32.totalorder %s25, 0
      %p198 = por %p196, %p197
      %p199 = scmp.ne.s32.totalorder %s185, %s186
      %p200 = scmp.eq.s32.totalorder %s26, 1
      %p201 = por %p199, %p200
      %p203 = scmp.ne.s32.totalorder %s186, %s202
      %p204 = scmp.eq.s32.totalorder %s26, 0
      %p205 = por %p203, %p204
      %p206 = scmp.le.s32.totalorder 1, %s20
      %p207 = scmp.lt.s32.totalorder %s20, 3
      %p208 = pnand %p206, %p207
      %p209 = pneg %p208
      // Predicated region
      $region9: #{tpu_custom_call.1} parent=5 // pred_check
        _
      $region10: #{tpu_custom_call.1} parent=5 // pred_check_branch
        %211 = sbr.rel (%p208) target = $region12
      $region11: #{tpu_custom_call.1} parent=5 // pred_region
        %s212 = ssub.s32 %s20, 1
        // Predicated region
        $region13: #{tpu_custom_call.1} parent=11 // pred_check
          %p213 = pneg %p81
        $region14: #{tpu_custom_call.1} parent=11 // pred_check_branch
          %215 = sbr.rel (%p213) target = $region16
        $region15: #{tpu_custom_call.1} parent=11 // pred_region
          %s217 = ssub.s32 256, 256
          %218 = vsyncadd [#allocation7], %s217
          %s219 = sshll.u32 [#allocation6], 4
          %s220 = int_to_ptr.vmem [resolvable:$true] %s219
          %225 = dma.hbm_to_vmem [thread:$0]  %s1, 256, %s220, [#allocation7], 64, 64, 4
        $region16: #{tpu_custom_call.1} parent=11 // pred_fallthru
          _
        // Predicated region
        $region17: #{tpu_custom_call.1} parent=11 // pred_check
          %p226 = pneg %p102
        $region18: #{tpu_custom_call.1} parent=11 // pred_check_branch
          %228 = sbr.rel (%p226) target = $region20
        $region19: #{tpu_custom_call.1} parent=11 // pred_region
          _
        $region20: #{tpu_custom_call.1} parent=11 // pred_fallthru
          _
        // Predicated region
        $region21: #{tpu_custom_call.1} parent=11 // pred_check
          %p229 = pneg %p128
        $region22: #{tpu_custom_call.1} parent=11 // pred_check_branch
          %231 = sbr.rel (%p229) target = $region24
        $region23: #{tpu_custom_call.1} parent=11 // pred_region
          %s232 = smul.u32 4, %s29
          %s234 = ssub.s32 4096, 4096
          %235 = vsyncadd [#allocation7], %s234
          %s236 = smul.addr %s232, 4
          %s237 = smul.addr %s236, 64
          %s238 = scalar_lea.hbm %s3, %s237
          %s239 = sshll.u32 [#allocation8], 4
          %s240 = int_to_ptr.vmem [resolvable:$true] %s239
          %245 = dma.hbm_to_vmem [thread:$0]  %s238, 4096, %s240, [#allocation7], 64, 64, 4
        $region24: #{tpu_custom_call.1} parent=11 // pred_fallthru
          _
        // Predicated region
        $region25: #{tpu_custom_call.1} parent=11 // pred_check
          %p246 = pneg %p149
        $region26: #{tpu_custom_call.1} parent=11 // pred_check_branch
          %248 = sbr.rel (%p246) target = $region28
        $region27: #{tpu_custom_call.1} parent=11 // pred_region
          %s250 = ssub.s32 256, 256
          %251 = vsyncadd [#allocation10], %s250
          %s252 = sshll.u32 [#allocation9], 4
          %s253 = int_to_ptr.vmem [resolvable:$true] %s252
          %258 = dma.hbm_to_vmem [thread:$0]  %s4, 256, %s253, [#allocation10], 64, 64, 4
        $region28: #{tpu_custom_call.1} parent=11 // pred_fallthru
          _
        // Predicated region
        $region29: #{tpu_custom_call.1} parent=11 // pred_check
          %p259 = pneg %p170
        $region30: #{tpu_custom_call.1} parent=11 // pred_check_branch
          %261 = sbr.rel (%p259) target = $region32
        $region31: #{tpu_custom_call.1} parent=11 // pred_region
          _
        $region32: #{tpu_custom_call.1} parent=11 // pred_fallthru
          _
      $region12: #{tpu_custom_call.1} parent=5 // pred_fallthru
        _
      %p262 = scmp.lt.s32.totalorder %s20, 2
      // Predicated region
      $region33: #{tpu_custom_call.1} parent=5 // pred_check
        %p263 = pneg %p262
      $region34: #{tpu_custom_call.1} parent=5 // pred_check_branch
        %265 = sbr.rel (%p263) target = $region36
      $region35: #{tpu_custom_call.1} parent=5 // pred_region
        // Predicated region
        $region37: #{tpu_custom_call.1} parent=35 // pred_check
          %p266 = pneg %p54
        $region38: #{tpu_custom_call.1} parent=35 // pred_check_branch
          %268 = sbr.rel (%p266) target = $region40
        $region39: #{tpu_custom_call.1} parent=35 // pred_region
          %s269 = sand.u32 %s44, 1
          %s270 = scalar_lea.sflag [#allocation4], %s269
          %s271 = sand.u32 %s44, 1
          %s272 = smul.addr %s271, 64
          %s273 = scalar_lea.vmem [#allocation3], %s272
          %s274 = smul.u32 4, %s27
          %s276 = ssub.s32 1024, 1024
          %277 = vsyncadd %s270, %s276
          %s278 = smul.addr %s274, 4
          %s279 = smul.addr %s28, 16
          %s280 = sadd.s32 %s278, %s279
          %s281 = smul.addr %s280, 64
          %s282 = scalar_lea.hbm %s0, %s281
          %s283 = sshll.u32 %s273, 4
          %s284 = int_to_ptr.vmem [resolvable:$true] %s283
          %289 = dma.hbm_to_vmem [thread:$0]  %s282, 1024, %s284, %s270, 64, 64, 4
        $region40: #{tpu_custom_call.1} parent=35 // pred_fallthru
          _
      $region36: #{tpu_custom_call.1} parent=5 // pred_fallthru
        _
      %p290 = scmp.le.s32.totalorder 1, %s20
      %p291 = scmp.lt.s32.totalorder %s20, 3
      %p292 = pnand %p290, %p291
      %p293 = pneg %p292
      // Predicated region
      $region41: #{tpu_custom_call.1} parent=5 // pred_check
        _
      $region42: #{tpu_custom_call.1} parent=5 // pred_check_branch
        %295 = sbr.rel (%p292) target = $region44
      $region43: #{tpu_custom_call.1} parent=5 // pred_region
        %s296 = ssub.s32 %s20, 1
        %s297 = sand.u32 %s47, 1
        %s298 = scalar_lea.sflag [#allocation4], %s297
        %s299 = sand.u32 %s47, 1
        %s300 = smul.addr %s299, 64
        %s301 = scalar_lea.vmem [#allocation3], %s300
        // Predicated region
        $region45: #{tpu_custom_call.1} parent=43 // pred_check
          %p302 = pneg %p60
        $region46: #{tpu_custom_call.1} parent=43 // pred_check_branch
          %304 = sbr.rel (%p302) target = $region48
        $region47: #{tpu_custom_call.1} parent=43 // pred_region
          %305 = dma.done %s298, 1024
        $region48: #{tpu_custom_call.1} parent=43 // pred_fallthru
          _
        // Predicated region
        $region49: #{tpu_custom_call.1} parent=43 // pred_check
          %p306 = pneg %p81
        $region50: #{tpu_custom_call.1} parent=43 // pred_check_branch
          %308 = sbr.rel (%p306) target = $region52
        $region51: #{tpu_custom_call.1} parent=43 // pred_region
          %309 = dma.done [#allocation7], 256
        $region52: #{tpu_custom_call.1} parent=43 // pred_fallthru
          _
        // Predicated region
        $region53: #{tpu_custom_call.1} parent=43 // pred_check
          %p310 = pneg %p128
        $region54: #{tpu_custom_call.1} parent=43 // pred_check_branch
          %312 = sbr.rel (%p310) target = $region56
        $region55: #{tpu_custom_call.1} parent=43 // pred_region
          %313 = dma.done [#allocation7], 4096
        $region56: #{tpu_custom_call.1} parent=43 // pred_fallthru
          _
        // Predicated region
        $region57: #{tpu_custom_call.1} parent=43 // pred_check
          %p314 = pneg %p149
        $region58: #{tpu_custom_call.1} parent=43 // pred_check_branch
          %316 = sbr.rel (%p314) target = $region60
        $region59: #{tpu_custom_call.1} parent=43 // pred_region
          %317 = dma.done [#allocation10], 256
        $region60: #{tpu_custom_call.1} parent=43 // pred_fallthru
          _
        %s318 = sand.u32 %s47, 1
        %s319 = scalar_lea.sflag [#allocation4], %s318
        %s320 = sand.u32 %s47, 1
        %s321 = smul.addr %s320, 64
        %s322 = scalar_lea.vmem [#allocation3], %s321
        %p323 = pneg %p60
        %p324 = pneg %p57
        %p325 = pneg %p81
        %p326 = pneg %p78
        %p327 = pneg %p102
        %p328 = pneg %p99
        %p329 = pneg %p128
        %p330 = pneg %p125
        %p331 = pneg %p149
        %p332 = pneg %p146
        %p333 = pneg %p170
        %p334 = pneg %p167
        %p335 = pneg %p198
        %p336 = pneg %p195
        %s337 = sand.u32 %s185, 1
        %s338 = scalar_lea.sflag [#allocation5], %s337
        %s339 = sand.u32 %s185, 1
        %s340 = smul.addr %s339, 128
        %s341 = scalar_lea.vmem [#allocation11], %s340
        %s342 = smul.u32 4, %s29
        %s343 = smul.u32 4, %s29
        %s344 = smul.u32 4, %s29
        %v346 = vld [vmem:[%s301] sm:$0xf]
        %v347 = vld [vmem:[%s301 + $0x4] sm:$0xf]
        %v348 = vld [vmem:[%s301 + $0x8] sm:$0xf]
        %v349 = vld [vmem:[%s301 + $0xc] sm:$0xf]
        %v350 = vld [vmem:[%s301 + $0x10] sm:$0xf]
        %v351 = vld [vmem:[%s301 + $0x14] sm:$0xf]
        %v352 = vld [vmem:[%s301 + $0x18] sm:$0xf]
        %v353 = vld [vmem:[%s301 + $0x1c] sm:$0xf]
        %v354 = vld [vmem:[%s301 + $0x20] sm:$0xf]
        %v355 = vld [vmem:[%s301 + $0x24] sm:$0xf]
        %v356 = vld [vmem:[%s301 + $0x28] sm:$0xf]
        %v357 = vld [vmem:[%s301 + $0x2c] sm:$0xf]
        %v358 = vld [vmem:[%s301 + $0x30] sm:$0xf]
        %v359 = vld [vmem:[%s301 + $0x34] sm:$0xf]
        %v360 = vld [vmem:[%s301 + $0x38] sm:$0xf]
        %v361 = vld [vmem:[%s301 + $0x3c] sm:$0xf]
        %v362 = vld [vmem:[#allocation6] sm:$0xf]
        %v363 = vld [vmem:[#allocation6 + $0x4] sm:$0xf]
        %v364 = vld [vmem:[#allocation6 + $0x8] sm:$0xf]
        %v365 = vld [vmem:[#allocation6 + $0xc] sm:$0xf]
        %v366 = vld [vmem:[%s2] sm:$0x1]
        %v368 = vlaneseq
        %v369 = vshrl.u32 %v368, 7
        %v370 = vsub.s32 0, %v369
        %v371 = vrot.slane %v366, %v370
        %v389 = vunpack.c.l.b16 %v346
        %v390 = vunpack.c.l.b16 %v347
        %v391 = vunpack.c.l.b16 %v348
        %v392 = vunpack.c.l.b16 %v349
        %v393 = vunpack.c.l.b16 %v350
        %v394 = vunpack.c.l.b16 %v351
        %v395 = vunpack.c.l.b16 %v352
        %v396 = vunpack.c.l.b16 %v353
        %v397 = vunpack.c.l.b16 %v354
        %v398 = vunpack.c.l.b16 %v355
        %v399 = vunpack.c.l.b16 %v356
        %v400 = vunpack.c.l.b16 %v357
        %v401 = vunpack.c.l.b16 %v358
        %v402 = vunpack.c.l.b16 %v359
        %v403 = vunpack.c.l.b16 %v360
        %v404 = vunpack.c.l.b16 %v361
        %v405 = vpack.c.b16 %v390, %v389
        %v406 = vpack.c.b16 %v392, %v391
        %v407 = vpack.c.b16 %v394, %v393
        %v408 = vpack.c.b16 %v396, %v395
        %v409 = vpack.c.b16 %v398, %v397
        %v410 = vpack.c.b16 %v400, %v399
        %v411 = vpack.c.b16 %v402, %v401
        %v412 = vpack.c.b16 %v404, %v403
        %v417 = vunpack.c.l.b16 %v362
        %v418 = vunpack.c.l.b16 %v363
        %v419 = vunpack.c.l.b16 %v364
        %v420 = vunpack.c.l.b16 %v365
        %v421 = vpack.c.b16 %v418, %v417
        %v422 = vpack.c.b16 %v420, %v419
        %vm425 = vcmask 261120
        %v427 = vsel %vm425, %v405, 0
        %v430 = vsel %vm425, %v406, 0
        %v433 = vsel %vm425, %v407, 0
        %v436 = vsel %vm425, %v408, 0
        %v439 = vsel %vm425, %v409, 0
        %v442 = vsel %vm425, %v410, 0
        %v445 = vsel %vm425, %v411, 0
        %v448 = vsel %vm425, %v412, 0
        %450 = vmatprep.subr.bf16.mxu0 0
        %451 = vmatpush1.bf16.msra.mxu0 0
        %452 = vmatprep.subr.bf16.mxu0 0
        %453 = vmatpush1.bf16.msra.mxu0 0
        %454 = vmatprep.subr.bf16.mxu0 0
        %455 = vmatpush1.bf16.msra.mxu0 0
        %456 = vmatprep.subr.bf16.mxu0 0
        %457 = vmatpush1.bf16.msra.mxu0 0
        %458 = vmatprep.subr.bf16.mxu0 0
        %459 = vmatpush1.bf16.msra.mxu0 0
        %460 = vmatprep.subr.bf16.mxu0 0
        %461 = vmatpush1.bf16.msra.mxu0 0
        %462 = vmatprep.subr.bf16.mxu0 0
        %463 = vmatpush1.bf16.msra.mxu0 %v422
        %464 = vmatprep.subr.bf16.mxu0 0
        %465 = vmatpush1.bf16.msra.mxu0 %v421
        %466 = vmatprep.subr.bf16.mxu0 0
        %467 = vmatpush2.bf16.msra.mxu0 0
        %468 = vmatprep.subr.bf16.mxu0 0
        %469 = vmatpush2.bf16.msra.mxu0 0
        %470 = vmatprep.subr.bf16.mxu0 0
        %471 = vmatpush2.bf16.msra.mxu0 0
        %472 = vmatprep.subr.bf16.mxu0 0
        %473 = vmatpush2.bf16.msra.mxu0 0
        %474 = vmatprep.subr.bf16.mxu0 0
        %475 = vmatpush2.bf16.msra.mxu0 0
        %476 = vmatprep.subr.bf16.mxu0 0
        %477 = vmatpush2.bf16.msra.mxu0 0
        %478 = vmatprep.subr.bf16.mxu0 0
        %479 = vmatpush2.bf16.msra.mxu0 0
        %480 = vmatprep.subr.bf16.mxu0 0
        %481 = vmatpush2.bf16.msra.mxu0 0
        %482 = vmatprep.mubr.bf16.mxu0 0
        %483 = vmatmul.mubr.bf16.gmra.mxu0 %v427
        %v484 = vpop.f32.mrf.mxu0
        %v485 = vadd.f32 %v371, %v484
        %v486 = vpop.f32.mrf.mxu0
        %v487 = vpop.f32.mrf.mxu0
        %v488 = vadd.f32 %v371, %v487
        %v489 = vpop.f32.mrf.mxu0
        %490 = vmatprep.mubr.bf16.mxu0 0
        %491 = vmatmul.mubr.bf16.gmra.mxu0 %v430
        %v492 = vpop.f32.mrf.mxu0
        %v493 = vadd.f32 %v371, %v492
        %v494 = vpop.f32.mrf.mxu0
        %v495 = vpop.f32.mrf.mxu0
        %v496 = vadd.f32 %v371, %v495
        %v497 = vpop.f32.mrf.mxu0
        %498 = vmatprep.mubr.bf16.mxu0 0
        %499 = vmatmul.mubr.bf16.gmra.mxu0 %v433
        %v500 = vpop.f32.mrf.mxu0
        %v501 = vadd.f32 %v371, %v500
        %v502 = vpop.f32.mrf.mxu0
        %v503 = vpop.f32.mrf.mxu0
        %v504 = vadd.f32 %v371, %v503
        %v505 = vpop.f32.mrf.mxu0
        %506 = vmatprep.mubr.bf16.mxu0 0
        %507 = vmatmul.mubr.bf16.gmra.mxu0 %v436
        %v508 = vpop.f32.mrf.mxu0
        %v509 = vadd.f32 %v371, %v508
        %v510 = vpop.f32.mrf.mxu0
        %v511 = vpop.f32.mrf.mxu0
        %v512 = vadd.f32 %v371, %v511
        %v513 = vpop.f32.mrf.mxu0
        %514 = vmatprep.mubr.bf16.mxu0 0
        %515 = vmatmul.mubr.bf16.gmra.mxu0 %v439
        %v516 = vpop.f32.mrf.mxu0
        %v517 = vadd.f32 %v371, %v516
        %v518 = vpop.f32.mrf.mxu0
        %v519 = vpop.f32.mrf.mxu0
        %v520 = vadd.f32 %v371, %v519
        %v521 = vpop.f32.mrf.mxu0
        %522 = vmatprep.mubr.bf16.mxu0 0
        %523 = vmatmul.mubr.bf16.gmra.mxu0 %v442
        %v524 = vpop.f32.mrf.mxu0
        %v525 = vadd.f32 %v371, %v524
        %v526 = vpop.f32.mrf.mxu0
        %v527 = vpop.f32.mrf.mxu0
        %v528 = vadd.f32 %v371, %v527
        %v529 = vpop.f32.mrf.mxu0
        %530 = vmatprep.mubr.bf16.mxu0 0
        %531 = vmatmul.mubr.bf16.gmra.mxu0 %v445
        %v532 = vpop.f32.mrf.mxu0
        %v533 = vadd.f32 %v371, %v532
        %v534 = vpop.f32.mrf.mxu0
        %v535 = vpop.f32.mrf.mxu0
        %v536 = vadd.f32 %v371, %v535
        %v537 = vpop.f32.mrf.mxu0
        %538 = vmatprep.mubr.bf16.mxu0 0
        %539 = vmatmul.mubr.bf16.gmra.mxu0 %v448
        %v540 = vpop.f32.mrf.mxu0
        %v541 = vadd.f32 %v371, %v540
        %v542 = vpop.f32.mrf.mxu0
        %v543 = vpop.f32.mrf.mxu0
        %v544 = vadd.f32 %v371, %v543
        %v545 = vpop.f32.mrf.mxu0
        %546 = vdwg.mxu0
        %v547 = vpack.c.bf16 %v488, %v485
        %v548 = vpack.c.bf16 %v496, %v493
        %v549 = vpack.c.bf16 %v504, %v501
        %v550 = vpack.c.bf16 %v512, %v509
        %v551 = vpack.c.bf16 %v520, %v517
        %v552 = vpack.c.bf16 %v528, %v525
        %v553 = vpack.c.bf16 %v536, %v533
        %v554 = vpack.c.bf16 %v544, %v541
        %v555 = vld [vmem:[#allocation8] sm:$0xf]
        %v556 = vld [vmem:[#allocation8 + $0x4] sm:$0xf]
        %v557 = vld [vmem:[#allocation8 + $0x8] sm:$0xf]
        %v558 = vld [vmem:[#allocation8 + $0xc] sm:$0xf]
        %v559 = vld [vmem:[#allocation8 + $0x10] sm:$0xf]
        %v560 = vld [vmem:[#allocation8 + $0x14] sm:$0xf]
        %v561 = vld [vmem:[#allocation8 + $0x18] sm:$0xf]
        %v562 = vld [vmem:[#allocation8 + $0x1c] sm:$0xf]
        %v563 = vld [vmem:[#allocation8 + $0x20] sm:$0xf]
        %v564 = vld [vmem:[#allocation8 + $0x24] sm:$0xf]
        %v565 = vld [vmem:[#allocation8 + $0x28] sm:$0xf]
        %v566 = vld [vmem:[#allocation8 + $0x2c] sm:$0xf]
        %v567 = vld [vmem:[#allocation8 + $0x30] sm:$0xf]
        %v568 = vld [vmem:[#allocation8 + $0x34] sm:$0xf]
        %v569 = vld [vmem:[#allocation8 + $0x38] sm:$0xf]
        %v570 = vld [vmem:[#allocation8 + $0x3c] sm:$0xf]
        %v571 = vunpack.c.l.bf16 %v555
        %v572 = vunpack.c.l.bf16 %v556
        %v573 = vunpack.c.l.bf16 %v557
        %v574 = vunpack.c.l.bf16 %v558
        %v575 = vunpack.c.l.bf16 %v559
        %v576 = vunpack.c.l.bf16 %v560
        %v577 = vunpack.c.l.bf16 %v561
        %v578 = vunpack.c.l.bf16 %v562
        %v579 = vunpack.c.l.bf16 %v563
        %v580 = vunpack.c.l.bf16 %v564
        %v581 = vunpack.c.l.bf16 %v565
        %v582 = vunpack.c.l.bf16 %v566
        %v583 = vunpack.c.l.bf16 %v567
        %v584 = vunpack.c.l.bf16 %v568
        %v585 = vunpack.c.l.bf16 %v569
        %v586 = vunpack.c.l.bf16 %v570
        %589 = vrot.lane.b32.xlu0 %v547, 96
        %v590 = vpop.permute.xlu0 %589
        %591 = vrot.lane.b32.xlu0 %v548, 96
        %v592 = vpop.permute.xlu0 %591
        %vm593 = vcmask 64512
        %v595 = vsel %vm593, %v547, 0
        %v598 = vsel %vm593, %v548, 0
        %v601 = vsel %vm593, %v590, 0
        %v604 = vsel %vm593, %v592, 0
        %606 = vmatprep.subr.bf16.mxu0 0
        %607 = vmatpush1.bf16.xpose.msra.mxu0 0
        %608 = vmatprep.subr.bf16.mxu0 0
        %609 = vmatpush1.bf16.xpose.msra.mxu0 0
        %610 = vmatprep.subr.bf16.mxu0 0
        %611 = vmatpush1.bf16.xpose.msra.mxu0 0
        %612 = vmatprep.subr.bf16.mxu0 0
        %613 = vmatpush1.bf16.xpose.msra.mxu0 0
        %614 = vmatprep.subr.bf16.mxu0 0
        %615 = vmatpush1.bf16.xpose.msra.mxu0 0
        %616 = vmatprep.subr.bf16.mxu0 0
        %617 = vmatpush1.bf16.xpose.msra.mxu0 0
        %618 = vmatprep.subr.bf16.mxu0 0
        %619 = vmatpush1.bf16.xpose.msra.mxu0 %v604
        %620 = vmatprep.subr.bf16.mxu0 0
        %621 = vmatpush1.bf16.xpose.msra.mxu0 %v601
        %622 = vmatprep.subr.bf16.mxu0 0
        %623 = vmatpush2.bf16.xpose.msra.mxu0 0
        %624 = vmatprep.subr.bf16.mxu0 0
        %625 = vmatpush2.bf16.xpose.msra.mxu0 0
        %626 = vmatprep.subr.bf16.mxu0 0
        %627 = vmatpush2.bf16.xpose.msra.mxu0 0
        %628 = vmatprep.subr.bf16.mxu0 0
        %629 = vmatpush2.bf16.xpose.msra.mxu0 0
        %630 = vmatprep.subr.bf16.mxu0 0
        %631 = vmatpush2.bf16.xpose.msra.mxu0 0
        %632 = vmatprep.subr.bf16.mxu0 0
        %633 = vmatpush2.bf16.xpose.msra.mxu0 0
        %634 = vmatprep.subr.bf16.mxu0 0
        %635 = vmatpush2.bf16.xpose.msra.mxu0 0
        %636 = vmatprep.subr.bf16.mxu0 0
        %637 = vmatpush2.bf16.xpose.msra.mxu0 0
        %638 = vmatprep.mubr.bf16.mxu0 0
        %639 = vmatmul.mubr.bf16.gmra.mxu0 %v595
        %v640 = vpop.f32.mrf.mxu0
        %v641 = vadd.f32 %v571, %v640
        %v642 = vpop.f32.mrf.mxu0
        %v643 = vpop.f32.mrf.mxu0
        %v644 = vadd.f32 %v572, %v643
        %v645 = vpop.f32.mrf.mxu0
        %646 = vmatprep.mubr.bf16.mxu0 0
        %647 = vmatmul.mubr.bf16.gmra.mxu0 %v598
        %v648 = vpop.f32.mrf.mxu0
        %v649 = vadd.f32 %v573, %v648
        %v650 = vpop.f32.mrf.mxu0
        %v651 = vpop.f32.mrf.mxu0
        %v652 = vadd.f32 %v574, %v651
        %v653 = vpop.f32.mrf.mxu0
        %654 = vdwg.mxu0
        %657 = vrot.lane.b32.xlu0 %v549, 96
        %v658 = vpop.permute.xlu0 %657
        %659 = vrot.lane.b32.xlu0 %v550, 96
        %v660 = vpop.permute.xlu0 %659
        %v662 = vsel %vm593, %v549, 0
        %v665 = vsel %vm593, %v550, 0
        %v668 = vsel %vm593, %v658, 0
        %v671 = vsel %vm593, %v660, 0
        %673 = vmatprep.subr.bf16.mxu0 0
        %674 = vmatpush1.bf16.xpose.msra.mxu0 0
        %675 = vmatprep.subr.bf16.mxu0 0
        %676 = vmatpush1.bf16.xpose.msra.mxu0 0
        %677 = vmatprep.subr.bf16.mxu0 0
        %678 = vmatpush1.bf16.xpose.msra.mxu0 0
        %679 = vmatprep.subr.bf16.mxu0 0
        %680 = vmatpush1.bf16.xpose.msra.mxu0 0
        %681 = vmatprep.subr.bf16.mxu0 0
        %682 = vmatpush1.bf16.xpose.msra.mxu0 0
        %683 = vmatprep.subr.bf16.mxu0 0
        %684 = vmatpush1.bf16.xpose.msra.mxu0 0
        %685 = vmatprep.subr.bf16.mxu0 0
        %686 = vmatpush1.bf16.xpose.msra.mxu0 %v671
        %687 = vmatprep.subr.bf16.mxu0 0
        %688 = vmatpush1.bf16.xpose.msra.mxu0 %v668
        %689 = vmatprep.subr.bf16.mxu0 0
        %690 = vmatpush2.bf16.xpose.msra.mxu0 0
        %691 = vmatprep.subr.bf16.mxu0 0
        %692 = vmatpush2.bf16.xpose.msra.mxu0 0
        %693 = vmatprep.subr.bf16.mxu0 0
        %694 = vmatpush2.bf16.xpose.msra.mxu0 0
        %695 = vmatprep.subr.bf16.mxu0 0
        %696 = vmatpush2.bf16.xpose.msra.mxu0 0
        %697 = vmatprep.subr.bf16.mxu0 0
        %698 = vmatpush2.bf16.xpose.msra.mxu0 0
        %699 = vmatprep.subr.bf16.mxu0 0
        %700 = vmatpush2.bf16.xpose.msra.mxu0 0
        %701 = vmatprep.subr.bf16.mxu0 0
        %702 = vmatpush2.bf16.xpose.msra.mxu0 0
        %703 = vmatprep.subr.bf16.mxu0 0
        %704 = vmatpush2.bf16.xpose.msra.mxu0 0
        %705 = vmatprep.mubr.bf16.mxu0 0
        %706 = vmatmul.mubr.bf16.gmra.mxu0 %v662
        %v707 = vpop.f32.mrf.mxu0
        %v708 = vadd.f32 %v575, %v707
        %v709 = vpop.f32.mrf.mxu0
        %v710 = vpop.f32.mrf.mxu0
        %v711 = vadd.f32 %v576, %v710
        %v712 = vpop.f32.mrf.mxu0
        %713 = vmatprep.mubr.bf16.mxu0 0
        %714 = vmatmul.mubr.bf16.gmra.mxu0 %v665
        %v715 = vpop.f32.mrf.mxu0
        %v716 = vadd.f32 %v577, %v715
        %v717 = vpop.f32.mrf.mxu0
        %v718 = vpop.f32.mrf.mxu0
        %v719 = vadd.f32 %v578, %v718
        %v720 = vpop.f32.mrf.mxu0
        %721 = vdwg.mxu0
        %724 = vrot.lane.b32.xlu0 %v551, 96
        %v725 = vpop.permute.xlu0 %724
        %726 = vrot.lane.b32.xlu0 %v552, 96
        %v727 = vpop.permute.xlu0 %726
        %v729 = vsel %vm593, %v551, 0
        %v732 = vsel %vm593, %v552, 0
        %v735 = vsel %vm593, %v725, 0
        %v738 = vsel %vm593, %v727, 0
        %740 = vmatprep.subr.bf16.mxu0 0
        %741 = vmatpush1.bf16.xpose.msra.mxu0 0
        %742 = vmatprep.subr.bf16.mxu0 0
        %743 = vmatpush1.bf16.xpose.msra.mxu0 0
        %744 = vmatprep.subr.bf16.mxu0 0
        %745 = vmatpush1.bf16.xpose.msra.mxu0 0
        %746 = vmatprep.subr.bf16.mxu0 0
        %747 = vmatpush1.bf16.xpose.msra.mxu0 0
        %748 = vmatprep.subr.bf16.mxu0 0
        %749 = vmatpush1.bf16.xpose.msra.mxu0 0
        %750 = vmatprep.subr.bf16.mxu0 0
        %751 = vmatpush1.bf16.xpose.msra.mxu0 0
        %752 = vmatprep.subr.bf16.mxu0 0
        %753 = vmatpush1.bf16.xpose.msra.mxu0 %v738
        %754 = vmatprep.subr.bf16.mxu0 0
        %755 = vmatpush1.bf16.xpose.msra.mxu0 %v735
        %756 = vmatprep.subr.bf16.mxu0 0
        %757 = vmatpush2.bf16.xpose.msra.mxu0 0
        %758 = vmatprep.subr.bf16.mxu0 0
        %759 = vmatpush2.bf16.xpose.msra.mxu0 0
        %760 = vmatprep.subr.bf16.mxu0 0
        %761 = vmatpush2.bf16.xpose.msra.mxu0 0
        %762 = vmatprep.subr.bf16.mxu0 0
        %763 = vmatpush2.bf16.xpose.msra.mxu0 0
        %764 = vmatprep.subr.bf16.mxu0 0
        %765 = vmatpush2.bf16.xpose.msra.mxu0 0
        %766 = vmatprep.subr.bf16.mxu0 0
        %767 = vmatpush2.bf16.xpose.msra.mxu0 0
        %768 = vmatprep.subr.bf16.mxu0 0
        %769 = vmatpush2.bf16.xpose.msra.mxu0 0
        %770 = vmatprep.subr.bf16.mxu0 0
        %771 = vmatpush2.bf16.xpose.msra.mxu0 0
        %772 = vmatprep.mubr.bf16.mxu0 0
        %773 = vmatmul.mubr.bf16.gmra.mxu0 %v729
        %v774 = vpop.f32.mrf.mxu0
        %v775 = vadd.f32 %v579, %v774
        %v776 = vpop.f32.mrf.mxu0
        %v777 = vpop.f32.mrf.mxu0
        %v778 = vadd.f32 %v580, %v777
        %v779 = vpop.f32.mrf.mxu0
        %780 = vmatprep.mubr.bf16.mxu0 0
        %781 = vmatmul.mubr.bf16.gmra.mxu0 %v732
        %v782 = vpop.f32.mrf.mxu0
        %v783 = vadd.f32 %v581, %v782
        %v784 = vpop.f32.mrf.mxu0
        %v785 = vpop.f32.mrf.mxu0
        %v786 = vadd.f32 %v582, %v785
        %v787 = vpop.f32.mrf.mxu0
        %788 = vdwg.mxu0
        %791 = vrot.lane.b32.xlu0 %v553, 96
        %v792 = vpop.permute.xlu0 %791
        %793 = vrot.lane.b32.xlu0 %v554, 96
        %v794 = vpop.permute.xlu0 %793
        %v796 = vsel %vm593, %v553, 0
        %v799 = vsel %vm593, %v554, 0
        %v802 = vsel %vm593, %v792, 0
        %v805 = vsel %vm593, %v794, 0
        %807 = vmatprep.subr.bf16.mxu0 0
        %808 = vmatpush1.bf16.xpose.msra.mxu0 0
        %809 = vmatprep.subr.bf16.mxu0 0
        %810 = vmatpush1.bf16.xpose.msra.mxu0 0
        %811 = vmatprep.subr.bf16.mxu0 0
        %812 = vmatpush1.bf16.xpose.msra.mxu0 0
        %813 = vmatprep.subr.bf16.mxu0 0
        %814 = vmatpush1.bf16.xpose.msra.mxu0 0
        %815 = vmatprep.subr.bf16.mxu0 0
        %816 = vmatpush1.bf16.xpose.msra.mxu0 0
        %817 = vmatprep.subr.bf16.mxu0 0
        %818 = vmatpush1.bf16.xpose.msra.mxu0 0
        %819 = vmatprep.subr.bf16.mxu0 0
        %820 = vmatpush1.bf16.xpose.msra.mxu0 %v805
        %821 = vmatprep.subr.bf16.mxu0 0
        %822 = vmatpush1.bf16.xpose.msra.mxu0 %v802
        %823 = vmatprep.subr.bf16.mxu0 0
        %824 = vmatpush2.bf16.xpose.msra.mxu0 0
        %825 = vmatprep.subr.bf16.mxu0 0
        %826 = vmatpush2.bf16.xpose.msra.mxu0 0
        %827 = vmatprep.subr.bf16.mxu0 0
        %828 = vmatpush2.bf16.xpose.msra.mxu0 0
        %829 = vmatprep.subr.bf16.mxu0 0
        %830 = vmatpush2.bf16.xpose.msra.mxu0 0
        %831 = vmatprep.subr.bf16.mxu0 0
        %832 = vmatpush2.bf16.xpose.msra.mxu0 0
        %833 = vmatprep.subr.bf16.mxu0 0
        %834 = vmatpush2.bf16.xpose.msra.mxu0 0
        %835 = vmatprep.subr.bf16.mxu0 0
        %836 = vmatpush2.bf16.xpose.msra.mxu0 0
        %837 = vmatprep.subr.bf16.mxu0 0
        %838 = vmatpush2.bf16.xpose.msra.mxu0 0
        %839 = vmatprep.mubr.bf16.mxu0 0
        %840 = vmatmul.mubr.bf16.gmra.mxu0 %v796
        %v841 = vpop.f32.mrf.mxu0
        %v842 = vadd.f32 %v583, %v841
        %v843 = vpop.f32.mrf.mxu0
        %v844 = vpop.f32.mrf.mxu0
        %v845 = vadd.f32 %v584, %v844
        %v846 = vpop.f32.mrf.mxu0
        %847 = vmatprep.mubr.bf16.mxu0 0
        %848 = vmatmul.mubr.bf16.gmra.mxu0 %v799
        %v849 = vpop.f32.mrf.mxu0
        %v850 = vadd.f32 %v585, %v849
        %v851 = vpop.f32.mrf.mxu0
        %v852 = vpop.f32.mrf.mxu0
        %v853 = vadd.f32 %v586, %v852
        %v854 = vpop.f32.mrf.mxu0
        %855 = vdwg.mxu0
        %v856 = vsel %vm425, %v641, -inf
        %857 = vmax.xlane.f32.xlu0 %v856
        %v858 = vpop.xlane.xlu0 %857
        %v859 = vsel %vm425, %v644, -inf
        %860 = vmax.xlane.f32.xlu0 %v859
        %v861 = vpop.xlane.xlu0 %860
        %v862 = vsel %vm425, %v649, -inf
        %863 = vmax.xlane.f32.xlu0 %v862
        %v864 = vpop.xlane.xlu0 %863
        %v865 = vsel %vm425, %v652, -inf
        %866 = vmax.xlane.f32.xlu0 %v865
        %v867 = vpop.xlane.xlu0 %866
        %v868 = vsel %vm425, %v708, -inf
        %869 = vmax.xlane.f32.xlu0 %v868
        %v870 = vpop.xlane.xlu0 %869
        %v871 = vsel %vm425, %v711, -inf
        %872 = vmax.xlane.f32.xlu0 %v871
        %v873 = vpop.xlane.xlu0 %872
        %v874 = vsel %vm425, %v716, -inf
        %875 = vmax.xlane.f32.xlu0 %v874
        %v876 = vpop.xlane.xlu0 %875
        %v877 = vsel %vm425, %v719, -inf
        %878 = vmax.xlane.f32.xlu0 %v877
        %v879 = vpop.xlane.xlu0 %878
        %v880 = vsel %vm425, %v775, -inf
        %881 = vmax.xlane.f32.xlu0 %v880
        %v882 = vpop.xlane.xlu0 %881
        %v883 = vsel %vm425, %v778, -inf
        %884 = vmax.xlane.f32.xlu0 %v883
        %v885 = vpop.xlane.xlu0 %884
        %v886 = vsel %vm425, %v783, -inf
        %887 = vmax.xlane.f32.xlu0 %v886
        %v888 = vpop.xlane.xlu0 %887
        %v889 = vsel %vm425, %v786, -inf
        %890 = vmax.xlane.f32.xlu0 %v889
        %v891 = vpop.xlane.xlu0 %890
        %v892 = vsel %vm425, %v842, -inf
        %893 = vmax.xlane.f32.xlu0 %v892
        %v894 = vpop.xlane.xlu0 %893
        %v895 = vsel %vm425, %v845, -inf
        %896 = vmax.xlane.f32.xlu0 %v895
        %v897 = vpop.xlane.xlu0 %896
        %v898 = vsel %vm425, %v850, -inf
        %899 = vmax.xlane.f32.xlu0 %v898
        %v900 = vpop.xlane.xlu0 %899
        %v901 = vsel %vm425, %v853, -inf
        %902 = vmax.xlane.f32.xlu0 %v901
        %v903 = vpop.xlane.xlu0 %902
        %v904 = vsub.f32 %v641, %v858
        %v905 = vsub.f32 %v644, %v861
        %v906 = vsub.f32 %v649, %v864
        %v907 = vsub.f32 %v652, %v867
        %v908 = vsub.f32 %v708, %v870
        %v909 = vsub.f32 %v711, %v873
        %v910 = vsub.f32 %v716, %v876
        %v911 = vsub.f32 %v719, %v879
        %v912 = vsub.f32 %v775, %v882
        %v913 = vsub.f32 %v778, %v885
        %v914 = vsub.f32 %v783, %v888
        %v915 = vsub.f32 %v786, %v891
        %v916 = vsub.f32 %v842, %v894
        %v917 = vsub.f32 %v845, %v897
        %v918 = vsub.f32 %v850, %v900
        %v919 = vsub.f32 %v853, %v903
        %v920 = vmul.f32 %v904, 1.442695
        %v921 = vpow.pop %v920
        %v922 = vmul.f32 %v905, 1.442695
        %v923 = vpow.pop %v922
        %v924 = vmul.f32 %v906, 1.442695
        %v925 = vpow.pop %v924
        %v926 = vmul.f32 %v907, 1.442695
        %v927 = vpow.pop %v926
        %v928 = vmul.f32 %v908, 1.442695
        %v929 = vpow.pop %v928
        %v930 = vmul.f32 %v909, 1.442695
        %v931 = vpow.pop %v930
        %v932 = vmul.f32 %v910, 1.442695
        %v933 = vpow.pop %v932
        %v934 = vmul.f32 %v911, 1.442695
        %v935 = vpow.pop %v934
        %v936 = vmul.f32 %v912, 1.442695
        %v937 = vpow.pop %v936
        %v938 = vmul.f32 %v913, 1.442695
        %v939 = vpow.pop %v938
        %v940 = vmul.f32 %v914, 1.442695
        %v941 = vpow.pop %v940
        %v942 = vmul.f32 %v915, 1.442695
        %v943 = vpow.pop %v942
        %v944 = vmul.f32 %v916, 1.442695
        %v945 = vpow.pop %v944
        %v946 = vmul.f32 %v917, 1.442695
        %v947 = vpow.pop %v946
        %v948 = vmul.f32 %v918, 1.442695
        %v949 = vpow.pop %v948
        %v950 = vmul.f32 %v919, 1.442695
        %v951 = vpow.pop %v950
        %v952 = vsel %vm425, %v921, 0.0
        %953 = vadd.xlane.f32.xlu0 %v952
        %v954 = vpop.xlane.xlu0 %953
        %v955 = vsel %vm425, %v923, 0.0
        %956 = vadd.xlane.f32.xlu0 %v955
        %v957 = vpop.xlane.xlu0 %956
        %v958 = vsel %vm425, %v925, 0.0
        %959 = vadd.xlane.f32.xlu0 %v958
        %v960 = vpop.xlane.xlu0 %959
        %v961 = vsel %vm425, %v927, 0.0
        %962 = vadd.xlane.f32.xlu0 %v961
        %v963 = vpop.xlane.xlu0 %962
        %v964 = vsel %vm425, %v929, 0.0
        %965 = vadd.xlane.f32.xlu0 %v964
        %v966 = vpop.xlane.xlu0 %965
        %v967 = vsel %vm425, %v931, 0.0
        %968 = vadd.xlane.f32.xlu0 %v967
        %v969 = vpop.xlane.xlu0 %968
        %v970 = vsel %vm425, %v933, 0.0
        %971 = vadd.xlane.f32.xlu0 %v970
        %v972 = vpop.xlane.xlu0 %971
        %v973 = vsel %vm425, %v935, 0.0
        %974 = vadd.xlane.f32.xlu0 %v973
        %v975 = vpop.xlane.xlu0 %974
        %v976 = vsel %vm425, %v937, 0.0
        %977 = vadd.xlane.f32.xlu0 %v976
        %v978 = vpop.xlane.xlu0 %977
        %v979 = vsel %vm425, %v939, 0.0
        %980 = vadd.xlane.f32.xlu0 %v979
        %v981 = vpop.xlane.xlu0 %980
        %v982 = vsel %vm425, %v941, 0.0
        %983 = vadd.xlane.f32.xlu0 %v982
        %v984 = vpop.xlane.xlu0 %983
        %v985 = vsel %vm425, %v943, 0.0
        %986 = vadd.xlane.f32.xlu0 %v985
        %v987 = vpop.xlane.xlu0 %986
        %v988 = vsel %vm425, %v945, 0.0
        %989 = vadd.xlane.f32.xlu0 %v988
        %v990 = vpop.xlane.xlu0 %989
        %v991 = vsel %vm425, %v947, 0.0
        %992 = vadd.xlane.f32.xlu0 %v991
        %v993 = vpop.xlane.xlu0 %992
        %v994 = vsel %vm425, %v949, 0.0
        %995 = vadd.xlane.f32.xlu0 %v994
        %v996 = vpop.xlane.xlu0 %995
        %v997 = vsel %vm425, %v951, 0.0
        %998 = vadd.xlane.f32.xlu0 %v997
        %v999 = vpop.xlane.xlu0 %998
        %v1000 = vrcp.pop %v954
        %v1001 = vrcp.pop %v957
        %v1002 = vrcp.pop %v960
        %v1003 = vrcp.pop %v963
        %v1004 = vrcp.pop %v966
        %v1005 = vrcp.pop %v969
        %v1006 = vrcp.pop %v972
        %v1007 = vrcp.pop %v975
        %v1008 = vrcp.pop %v978
        %v1009 = vrcp.pop %v981
        %v1010 = vrcp.pop %v984
        %v1011 = vrcp.pop %v987
        %v1012 = vrcp.pop %v990
        %v1013 = vrcp.pop %v993
        %v1014 = vrcp.pop %v996
        %v1015 = vrcp.pop %v999
        %v1016 = vmul.f32 %v921, %v1000
        %v1017 = vmul.f32 %v923, %v1001
        %v1018 = vmul.f32 %v925, %v1002
        %v1019 = vmul.f32 %v927, %v1003
        %v1020 = vmul.f32 %v929, %v1004
        %v1021 = vmul.f32 %v931, %v1005
        %v1022 = vmul.f32 %v933, %v1006
        %v1023 = vmul.f32 %v935, %v1007
        %v1024 = vmul.f32 %v937, %v1008
        %v1025 = vmul.f32 %v939, %v1009
        %v1026 = vmul.f32 %v941, %v1010
        %v1027 = vmul.f32 %v943, %v1011
        %v1028 = vmul.f32 %v945, %v1012
        %v1029 = vmul.f32 %v947, %v1013
        %v1030 = vmul.f32 %v949, %v1014
        %v1031 = vmul.f32 %v951, %v1015
        %v1032 = vpack.c.bf16 %v1017, %v1016
        %v1033 = vpack.c.bf16 %v1019, %v1018
        %v1034 = vpack.c.bf16 %v1021, %v1020
        %v1035 = vpack.c.bf16 %v1023, %v1022
        %v1036 = vpack.c.bf16 %v1025, %v1024
        %v1037 = vpack.c.bf16 %v1027, %v1026
        %v1038 = vpack.c.bf16 %v1029, %v1028
        %v1039 = vpack.c.bf16 %v1031, %v1030
        %1040 = vrot.lane.b32.xlu0 %v547, 64
        %v1041 = vpop.permute.xlu0 %1040
        %1042 = vrot.lane.b32.xlu0 %v548, 64
        %v1043 = vpop.permute.xlu0 %1042
        %v1047 = vsel %vm425, %v1032, 0
        %v1050 = vsel %vm425, %v1033, 0
        %1052 = vmatprep.subr.bf16.mxu0 0
        %1053 = vmatpush1.bf16.msra.mxu0 0
        %1054 = vmatprep.subr.bf16.mxu0 0
        %1055 = vmatpush1.bf16.msra.mxu0 0
        %1056 = vmatprep.subr.bf16.mxu0 0
        %1057 = vmatpush1.bf16.msra.mxu0 0
        %1058 = vmatprep.subr.bf16.mxu0 0
        %1059 = vmatpush1.bf16.msra.mxu0 0
        %1060 = vmatprep.subr.bf16.mxu0 0
        %1061 = vmatpush1.bf16.msra.mxu0 0
        %1062 = vmatprep.subr.bf16.mxu0 0
        %1063 = vmatpush1.bf16.msra.mxu0 0
        %1064 = vmatprep.subr.bf16.mxu0 0
        %1065 = vmatpush1.bf16.msra.mxu0 %v1043
        %1066 = vmatprep.subr.bf16.mxu0 0
        %1067 = vmatpush1.bf16.msra.mxu0 %v1041
        %1068 = vmatprep.subr.bf16.mxu0 0
        %1069 = vmatpush2.bf16.msra.mxu0 0
        %1070 = vmatprep.subr.bf16.mxu0 0
        %1071 = vmatpush2.bf16.msra.mxu0 0
        %1072 = vmatprep.subr.bf16.mxu0 0
        %1073 = vmatpush2.bf16.msra.mxu0 0
        %1074 = vmatprep.subr.bf16.mxu0 0
        %1075 = vmatpush2.bf16.msra.mxu0 0
        %1076 = vmatprep.subr.bf16.mxu0 0
        %1077 = vmatpush2.bf16.msra.mxu0 0
        %1078 = vmatprep.subr.bf16.mxu0 0
        %1079 = vmatpush2.bf16.msra.mxu0 0
        %1080 = vmatprep.subr.bf16.mxu0 0
        %1081 = vmatpush2.bf16.msra.mxu0 0
        %1082 = vmatprep.subr.bf16.mxu0 0
        %1083 = vmatpush2.bf16.msra.mxu0 0
        %1084 = vmatprep.mubr.bf16.mxu0 0
        %1085 = vmatmul.mubr.bf16.gmra.mxu0 %v1047
        %v1086 = vpop.f32.mrf.mxu0
        %v1087 = vadd.f32 0.0, %v1086
        %v1088 = vpop.f32.mrf.mxu0
        %v1089 = vpop.f32.mrf.mxu0
        %v1090 = vadd.f32 0.0, %v1089
        %v1091 = vpop.f32.mrf.mxu0
        %1092 = vmatprep.mubr.bf16.mxu0 0
        %1093 = vmatmul.mubr.bf16.gmra.mxu0 %v1050
        %v1094 = vpop.f32.mrf.mxu0
        %v1095 = vadd.f32 0.0, %v1094
        %v1096 = vpop.f32.mrf.mxu0
        %v1097 = vpop.f32.mrf.mxu0
        %v1098 = vadd.f32 0.0, %v1097
        %v1099 = vpop.f32.mrf.mxu0
        %1100 = vdwg.mxu0
        %1101 = vrot.lane.b32.xlu0 %v549, 64
        %v1102 = vpop.permute.xlu0 %1101
        %1103 = vrot.lane.b32.xlu0 %v550, 64
        %v1104 = vpop.permute.xlu0 %1103
        %v1108 = vsel %vm425, %v1034, 0
        %v1111 = vsel %vm425, %v1035, 0
        %1113 = vmatprep.subr.bf16.mxu0 0
        %1114 = vmatpush1.bf16.msra.mxu0 0
        %1115 = vmatprep.subr.bf16.mxu0 0
        %1116 = vmatpush1.bf16.msra.mxu0 0
        %1117 = vmatprep.subr.bf16.mxu0 0
        %1118 = vmatpush1.bf16.msra.mxu0 0
        %1119 = vmatprep.subr.bf16.mxu0 0
        %1120 = vmatpush1.bf16.msra.mxu0 0
        %1121 = vmatprep.subr.bf16.mxu0 0
        %1122 = vmatpush1.bf16.msra.mxu0 0
        %1123 = vmatprep.subr.bf16.mxu0 0
        %1124 = vmatpush1.bf16.msra.mxu0 0
        %1125 = vmatprep.subr.bf16.mxu0 0
        %1126 = vmatpush1.bf16.msra.mxu0 %v1104
        %1127 = vmatprep.subr.bf16.mxu0 0
        %1128 = vmatpush1.bf16.msra.mxu0 %v1102
        %1129 = vmatprep.subr.bf16.mxu0 0
        %1130 = vmatpush2.bf16.msra.mxu0 0
        %1131 = vmatprep.subr.bf16.mxu0 0
        %1132 = vmatpush2.bf16.msra.mxu0 0
        %1133 = vmatprep.subr.bf16.mxu0 0
        %1134 = vmatpush2.bf16.msra.mxu0 0
        %1135 = vmatprep.subr.bf16.mxu0 0
        %1136 = vmatpush2.bf16.msra.mxu0 0
        %1137 = vmatprep.subr.bf16.mxu0 0
        %1138 = vmatpush2.bf16.msra.mxu0 0
        %1139 = vmatprep.subr.bf16.mxu0 0
        %1140 = vmatpush2.bf16.msra.mxu0 0
        %1141 = vmatprep.subr.bf16.mxu0 0
        %1142 = vmatpush2.bf16.msra.mxu0 0
        %1143 = vmatprep.subr.bf16.mxu0 0
        %1144 = vmatpush2.bf16.msra.mxu0 0
        %1145 = vmatprep.mubr.bf16.mxu0 0
        %1146 = vmatmul.mubr.bf16.gmra.mxu0 %v1108
        %v1147 = vpop.f32.mrf.mxu0
        %v1148 = vadd.f32 0.0, %v1147
        %v1149 = vpop.f32.mrf.mxu0
        %v1150 = vpop.f32.mrf.mxu0
        %v1151 = vadd.f32 0.0, %v1150
        %v1152 = vpop.f32.mrf.mxu0
        %1153 = vmatprep.mubr.bf16.mxu0 0
        %1154 = vmatmul.mubr.bf16.gmra.mxu0 %v1111
        %v1155 = vpop.f32.mrf.mxu0
        %v1156 = vadd.f32 0.0, %v1155
        %v1157 = vpop.f32.mrf.mxu0
        %v1158 = vpop.f32.mrf.mxu0
        %v1159 = vadd.f32 0.0, %v1158
        %v1160 = vpop.f32.mrf.mxu0
        %1161 = vdwg.mxu0
        %1162 = vrot.lane.b32.xlu0 %v551, 64
        %v1163 = vpop.permute.xlu0 %1162
        %1164 = vrot.lane.b32.xlu0 %v552, 64
        %v1165 = vpop.permute.xlu0 %1164
        %v1169 = vsel %vm425, %v1036, 0
        %v1172 = vsel %vm425, %v1037, 0
        %1174 = vmatprep.subr.bf16.mxu0 0
        %1175 = vmatpush1.bf16.msra.mxu0 0
        %1176 = vmatprep.subr.bf16.mxu0 0
        %1177 = vmatpush1.bf16.msra.mxu0 0
        %1178 = vmatprep.subr.bf16.mxu0 0
        %1179 = vmatpush1.bf16.msra.mxu0 0
        %1180 = vmatprep.subr.bf16.mxu0 0
        %1181 = vmatpush1.bf16.msra.mxu0 0
        %1182 = vmatprep.subr.bf16.mxu0 0
        %1183 = vmatpush1.bf16.msra.mxu0 0
        %1184 = vmatprep.subr.bf16.mxu0 0
        %1185 = vmatpush1.bf16.msra.mxu0 0
        %1186 = vmatprep.subr.bf16.mxu0 0
        %1187 = vmatpush1.bf16.msra.mxu0 %v1165
        %1188 = vmatprep.subr.bf16.mxu0 0
        %1189 = vmatpush1.bf16.msra.mxu0 %v1163
        %1190 = vmatprep.subr.bf16.mxu0 0
        %1191 = vmatpush2.bf16.msra.mxu0 0
        %1192 = vmatprep.subr.bf16.mxu0 0
        %1193 = vmatpush2.bf16.msra.mxu0 0
        %1194 = vmatprep.subr.bf16.mxu0 0
        %1195 = vmatpush2.bf16.msra.mxu0 0
        %1196 = vmatprep.subr.bf16.mxu0 0
        %1197 = vmatpush2.bf16.msra.mxu0 0
        %1198 = vmatprep.subr.bf16.mxu0 0
        %1199 = vmatpush2.bf16.msra.mxu0 0
        %1200 = vmatprep.subr.bf16.mxu0 0
        %1201 = vmatpush2.bf16.msra.mxu0 0
        %1202 = vmatprep.subr.bf16.mxu0 0
        %1203 = vmatpush2.bf16.msra.mxu0 0
        %1204 = vmatprep.subr.bf16.mxu0 0
        %1205 = vmatpush2.bf16.msra.mxu0 0
        %1206 = vmatprep.mubr.bf16.mxu0 0
        %1207 = vmatmul.mubr.bf16.gmra.mxu0 %v1169
        %v1208 = vpop.f32.mrf.mxu0
        %v1209 = vadd.f32 0.0, %v1208
        %v1210 = vpop.f32.mrf.mxu0
        %v1211 = vpop.f32.mrf.mxu0
        %v1212 = vadd.f32 0.0, %v1211
        %v1213 = vpop.f32.mrf.mxu0
        %1214 = vmatprep.mubr.bf16.mxu0 0
        %1215 = vmatmul.mubr.bf16.gmra.mxu0 %v1172
        %v1216 = vpop.f32.mrf.mxu0
        %v1217 = vadd.f32 0.0, %v1216
        %v1218 = vpop.f32.mrf.mxu0
        %v1219 = vpop.f32.mrf.mxu0
        %v1220 = vadd.f32 0.0, %v1219
        %v1221 = vpop.f32.mrf.mxu0
        %1222 = vdwg.mxu0
        %1223 = vrot.lane.b32.xlu0 %v553, 64
        %v1224 = vpop.permute.xlu0 %1223
        %1225 = vrot.lane.b32.xlu0 %v554, 64
        %v1226 = vpop.permute.xlu0 %1225
        %v1230 = vsel %vm425, %v1038, 0
        %v1233 = vsel %vm425, %v1039, 0
        %1235 = vmatprep.subr.bf16.mxu0 0
        %1236 = vmatpush1.bf16.msra.mxu0 0
        %1237 = vmatprep.subr.bf16.mxu0 0
        %1238 = vmatpush1.bf16.msra.mxu0 0
        %1239 = vmatprep.subr.bf16.mxu0 0
        %1240 = vmatpush1.bf16.msra.mxu0 0
        %1241 = vmatprep.subr.bf16.mxu0 0
        %1242 = vmatpush1.bf16.msra.mxu0 0
        %1243 = vmatprep.subr.bf16.mxu0 0
        %1244 = vmatpush1.bf16.msra.mxu0 0
        %1245 = vmatprep.subr.bf16.mxu0 0
        %1246 = vmatpush1.bf16.msra.mxu0 0
        %1247 = vmatprep.subr.bf16.mxu0 0
        %1248 = vmatpush1.bf16.msra.mxu0 %v1226
        %1249 = vmatprep.subr.bf16.mxu0 0
        %1250 = vmatpush1.bf16.msra.mxu0 %v1224
        %1251 = vmatprep.subr.bf16.mxu0 0
        %1252 = vmatpush2.bf16.msra.mxu0 0
        %1253 = vmatprep.subr.bf16.mxu0 0
        %1254 = vmatpush2.bf16.msra.mxu0 0
        %1255 = vmatprep.subr.bf16.mxu0 0
        %1256 = vmatpush2.bf16.msra.mxu0 0
        %1257 = vmatprep.subr.bf16.mxu0 0
        %1258 = vmatpush2.bf16.msra.mxu0 0
        %1259 = vmatprep.subr.bf16.mxu0 0
        %1260 = vmatpush2.bf16.msra.mxu0 0
        %1261 = vmatprep.subr.bf16.mxu0 0
        %1262 = vmatpush2.bf16.msra.mxu0 0
        %1263 = vmatprep.subr.bf16.mxu0 0
        %1264 = vmatpush2.bf16.msra.mxu0 0
        %1265 = vmatprep.subr.bf16.mxu0 0
        %1266 = vmatpush2.bf16.msra.mxu0 0
        %1267 = vmatprep.mubr.bf16.mxu0 0
        %1268 = vmatmul.mubr.bf16.gmra.mxu0 %v1230
        %v1269 = vpop.f32.mrf.mxu0
        %v1270 = vadd.f32 0.0, %v1269
        %v1271 = vpop.f32.mrf.mxu0
        %v1272 = vpop.f32.mrf.mxu0
        %v1273 = vadd.f32 0.0, %v1272
        %v1274 = vpop.f32.mrf.mxu0
        %1275 = vmatprep.mubr.bf16.mxu0 0
        %1276 = vmatmul.mubr.bf16.gmra.mxu0 %v1233
        %v1277 = vpop.f32.mrf.mxu0
        %v1278 = vadd.f32 0.0, %v1277
        %v1279 = vpop.f32.mrf.mxu0
        %v1280 = vpop.f32.mrf.mxu0
        %v1281 = vadd.f32 0.0, %v1280
        %v1282 = vpop.f32.mrf.mxu0
        %1283 = vdwg.mxu0
        %v1284 = vpack.c.bf16 %v1090, %v1087
        %v1285 = vpack.c.bf16 %v1098, %v1095
        %v1286 = vpack.c.bf16 %v1151, %v1148
        %v1287 = vpack.c.bf16 %v1159, %v1156
        %v1288 = vpack.c.bf16 %v1212, %v1209
        %v1289 = vpack.c.bf16 %v1220, %v1217
        %v1290 = vpack.c.bf16 %v1273, %v1270
        %v1291 = vpack.c.bf16 %v1281, %v1278
        %v1300 = vunpack.c.l.b16 %v1284
        %v1301 = vunpack.c.h.b16 %v1284
        %v1302 = vunpack.c.l.b16 %v1285
        %v1303 = vunpack.c.h.b16 %v1285
        %v1304 = vunpack.c.l.b16 %v1286
        %v1305 = vunpack.c.h.b16 %v1286
        %v1306 = vunpack.c.l.b16 %v1287
        %v1307 = vunpack.c.h.b16 %v1287
        %v1308 = vunpack.c.l.b16 %v1288
        %v1309 = vunpack.c.h.b16 %v1288
        %v1310 = vunpack.c.l.b16 %v1289
        %v1311 = vunpack.c.h.b16 %v1289
        %v1312 = vunpack.c.l.b16 %v1290
        %v1313 = vunpack.c.h.b16 %v1290
        %v1314 = vunpack.c.l.b16 %v1291
        %v1315 = vunpack.c.h.b16 %v1291
        %v1316 = vpack.c.b16 %v1300, %v1300
        %v1317 = vpack.c.b16 %v1301, %v1301
        %v1318 = vpack.c.b16 %v1302, %v1302
        %v1319 = vpack.c.b16 %v1303, %v1303
        %v1320 = vpack.c.b16 %v1304, %v1304
        %v1321 = vpack.c.b16 %v1305, %v1305
        %v1322 = vpack.c.b16 %v1306, %v1306
        %v1323 = vpack.c.b16 %v1307, %v1307
        %v1324 = vpack.c.b16 %v1308, %v1308
        %v1325 = vpack.c.b16 %v1309, %v1309
        %v1326 = vpack.c.b16 %v1310, %v1310
        %v1327 = vpack.c.b16 %v1311, %v1311
        %v1328 = vpack.c.b16 %v1312, %v1312
        %v1329 = vpack.c.b16 %v1313, %v1313
        %v1330 = vpack.c.b16 %v1314, %v1314
        %v1331 = vpack.c.b16 %v1315, %v1315
        %vm1348 = vcmask 60416
        %1349 = vst.msk [vmem:[#allocation2] sm:$0xf] %vm1348, %v1316
        %1350 = vst.msk [vmem:[#allocation2 + $0x4] sm:$0xf] %vm1348, %v1317
        %1351 = vst.msk [vmem:[#allocation2 + $0x8] sm:$0xf] %vm1348, %v1318
        %1352 = vst.msk [vmem:[#allocation2 + $0xc] sm:$0xf] %vm1348, %v1319
        %1353 = vst.msk [vmem:[#allocation2 + $0x10] sm:$0xf] %vm1348, %v1320
        %1354 = vst.msk [vmem:[#allocation2 + $0x14] sm:$0xf] %vm1348, %v1321
        %1355 = vst.msk [vmem:[#allocation2 + $0x18] sm:$0xf] %vm1348, %v1322
        %1356 = vst.msk [vmem:[#allocation2 + $0x1c] sm:$0xf] %vm1348, %v1323
        %1357 = vst.msk [vmem:[#allocation2 + $0x20] sm:$0xf] %vm1348, %v1324
        %1358 = vst.msk [vmem:[#allocation2 + $0x24] sm:$0xf] %vm1348, %v1325
        %1359 = vst.msk [vmem:[#allocation2 + $0x28] sm:$0xf] %vm1348, %v1326
        %1360 = vst.msk [vmem:[#allocation2 + $0x2c] sm:$0xf] %vm1348, %v1327
        %1361 = vst.msk [vmem:[#allocation2 + $0x30] sm:$0xf] %vm1348, %v1328
        %1362 = vst.msk [vmem:[#allocation2 + $0x34] sm:$0xf] %vm1348, %v1329
        %1363 = vst.msk [vmem:[#allocation2 + $0x38] sm:$0xf] %vm1348, %v1330
        %1364 = vst.msk [vmem:[#allocation2 + $0x3c] sm:$0xf] %vm1348, %v1331
        %s1365 = scalar_lea.vmem [#allocation8], 64
        %v1366 = vld [vmem:[%s1365] sm:$0xf]
        %v1367 = vld [vmem:[%s1365 + $0x4] sm:$0xf]
        %v1368 = vld [vmem:[%s1365 + $0x8] sm:$0xf]
        %v1369 = vld [vmem:[%s1365 + $0xc] sm:$0xf]
        %v1370 = vld [vmem:[%s1365 + $0x10] sm:$0xf]
        %v1371 = vld [vmem:[%s1365 + $0x14] sm:$0xf]
        %v1372 = vld [vmem:[%s1365 + $0x18] sm:$0xf]
        %v1373 = vld [vmem:[%s1365 + $0x1c] sm:$0xf]
        %v1374 = vld [vmem:[%s1365 + $0x20] sm:$0xf]
        %v1375 = vld [vmem:[%s1365 + $0x24] sm:$0xf]
        %v1376 = vld [vmem:[%s1365 + $0x28] sm:$0xf]
        %v1377 = vld [vmem:[%s1365 + $0x2c] sm:$0xf]
        %v1378 = vld [vmem:[%s1365 + $0x30] sm:$0xf]
        %v1379 = vld [vmem:[%s1365 + $0x34] sm:$0xf]
        %v1380 = vld [vmem:[%s1365 + $0x38] sm:$0xf]
        %v1381 = vld [vmem:[%s1365 + $0x3c] sm:$0xf]
        %v1382 = vunpack.c.l.bf16 %v1366
        %v1383 = vunpack.c.l.bf16 %v1367
        %v1384 = vunpack.c.l.bf16 %v1368
        %v1385 = vunpack.c.l.bf16 %v1369
        %v1386 = vunpack.c.l.bf16 %v1370
        %v1387 = vunpack.c.l.bf16 %v1371
        %v1388 = vunpack.c.l.bf16 %v1372
        %v1389 = vunpack.c.l.bf16 %v1373
        %v1390 = vunpack.c.l.bf16 %v1374
        %v1391 = vunpack.c.l.bf16 %v1375
        %v1392 = vunpack.c.l.bf16 %v1376
        %v1393 = vunpack.c.l.bf16 %v1377
        %v1394 = vunpack.c.l.bf16 %v1378
        %v1395 = vunpack.c.l.bf16 %v1379
        %v1396 = vunpack.c.l.bf16 %v1380
        %v1397 = vunpack.c.l.bf16 %v1381
        %1398 = vrot.lane.b32.xlu0 %v547, 120
        %v1399 = vpop.permute.xlu0 %1398
        %1400 = vrot.lane.b32.xlu0 %v548, 120
        %v1401 = vpop.permute.xlu0 %1400
        %1402 = vrot.lane.b32.xlu0 %v547, 88
        %v1403 = vpop.permute.xlu0 %1402
        %1404 = vrot.lane.b32.xlu0 %v548, 88
        %v1405 = vpop.permute.xlu0 %1404
        %v1407 = vsel %vm593, %v1399, 0
        %v1410 = vsel %vm593, %v1401, 0
        %v1413 = vsel %vm593, %v1403, 0
        %v1416 = vsel %vm593, %v1405, 0
        %1418 = vmatprep.subr.bf16.mxu0 0
        %1419 = vmatpush1.bf16.xpose.msra.mxu0 0
        %1420 = vmatprep.subr.bf16.mxu0 0
        %1421 = vmatpush1.bf16.xpose.msra.mxu0 0
        %1422 = vmatprep.subr.bf16.mxu0 0
        %1423 = vmatpush1.bf16.xpose.msra.mxu0 0
        %1424 = vmatprep.subr.bf16.mxu0 0
        %1425 = vmatpush1.bf16.xpose.msra.mxu0 0
        %1426 = vmatprep.subr.bf16.mxu0 0
        %1427 = vmatpush1.bf16.xpose.msra.mxu0 0
        %1428 = vmatprep.subr.bf16.mxu0 0
        %1429 = vmatpush1.bf16.xpose.msra.mxu0 0
        %1430 = vmatprep.subr.bf16.mxu0 0
        %1431 = vmatpush1.bf16.xpose.msra.mxu0 %v1416
        %1432 = vmatprep.subr.bf16.mxu0 0
        %1433 = vmatpush1.bf16.xpose.msra.mxu0 %v1413
        %1434 = vmatprep.subr.bf16.mxu0 0
        %1435 = vmatpush2.bf16.xpose.msra.mxu0 0
        %1436 = vmatprep.subr.bf16.mxu0 0
        %1437 = vmatpush2.bf16.xpose.msra.mxu0 0
        %1438 = vmatprep.subr.bf16.mxu0 0
        %1439 = vmatpush2.bf16.xpose.msra.mxu0 0
        %1440 = vmatprep.subr.bf16.mxu0 0
        %1441 = vmatpush2.bf16.xpose.msra.mxu0 0
        %1442 = vmatprep.subr.bf16.mxu0 0
        %1443 = vmatpush2.bf16.xpose.msra.mxu0 0
        %1444 = vmatprep.subr.bf16.mxu0 0
        %1445 = vmatpush2.bf16.xpose.msra.mxu0 0
        %1446 = vmatprep.subr.bf16.mxu0 0
        %1447 = vmatpush2.bf16.xpose.msra.mxu0 0
        %1448 = vmatprep.subr.bf16.mxu0 0
        %1449 = vmatpush2.bf16.xpose.msra.mxu0 0
        %1450 = vmatprep.mubr.bf16.mxu0 0
        %1451 = vmatmul.mubr.bf16.gmra.mxu0 %v1407
        %v1452 = vpop.f32.mrf.mxu0
        %v1453 = vadd.f32 %v1382, %v1452
        %v1454 = vpop.f32.mrf.mxu0
        %v1455 = vpop.f32.mrf.mxu0
        %v1456 = vadd.f32 %v1383, %v1455
        %v1457 = vpop.f32.mrf.mxu0
        %1458 = vmatprep.mubr.bf16.mxu0 0
        %1459 = vmatmul.mubr.bf16.gmra.mxu0 %v1410
        %v1460 = vpop.f32.mrf.mxu0
        %v1461 = vadd.f32 %v1384, %v1460
        %v1462 = vpop.f32.mrf.mxu0
        %v1463 = vpop.f32.mrf.mxu0
        %v1464 = vadd.f32 %v1385, %v1463
        %v1465 = vpop.f32.mrf.mxu0
        %1466 = vdwg.mxu0
        %1467 = vrot.lane.b32.xlu0 %v549, 120
        %v1468 = vpop.permute.xlu0 %1467
        %1469 = vrot.lane.b32.xlu0 %v550, 120
        %v1470 = vpop.permute.xlu0 %1469
        %1471 = vrot.lane.b32.xlu0 %v549, 88
        %v1472 = vpop.permute.xlu0 %1471
        %1473 = vrot.lane.b32.xlu0 %v550, 88
        %v1474 = vpop.permute.xlu0 %1473
        %v1476 = vsel %vm593, %v1468, 0
        %v1479 = vsel %vm593, %v1470, 0
        %v1482 = vsel %vm593, %v1472, 0
        %v1485 = vsel %vm593, %v1474, 0
        %1487 = vmatprep.subr.bf16.mxu0 0
        %1488 = vmatpush1.bf16.xpose.msra.mxu0 0
        %1489 = vmatprep.subr.bf16.mxu0 0
        %1490 = vmatpush1.bf16.xpose.msra.mxu0 0
        %1491 = vmatprep.subr.bf16.mxu0 0
        %1492 = vmatpush1.bf16.xpose.msra.mxu0 0
        %1493 = vmatprep.subr.bf16.mxu0 0
        %1494 = vmatpush1.bf16.xpose.msra.mxu0 0
        %1495 = vmatprep.subr.bf16.mxu0 0
        %1496 = vmatpush1.bf16.xpose.msra.mxu0 0
        %1497 = vmatprep.subr.bf16.mxu0 0
        %1498 = vmatpush1.bf16.xpose.msra.mxu0 0
        %1499 = vmatprep.subr.bf16.mxu0 0
        %1500 = vmatpush1.bf16.xpose.msra.mxu0 %v1485
        %1501 = vmatprep.subr.bf16.mxu0 0
        %1502 = vmatpush1.bf16.xpose.msra.mxu0 %v1482
        %1503 = vmatprep.subr.bf16.mxu0 0
        %1504 = vmatpush2.bf16.xpose.msra.mxu0 0
        %1505 = vmatprep.subr.bf16.mxu0 0
        %1506 = vmatpush2.bf16.xpose.msra.mxu0 0
        %1507 = vmatprep.subr.bf16.mxu0 0
        %1508 = vmatpush2.bf16.xpose.msra.mxu0 0
        %1509 = vmatprep.subr.bf16.mxu0 0
        %1510 = vmatpush2.bf16.xpose.msra.mxu0 0
        %1511 = vmatprep.subr.bf16.mxu0 0
        %1512 = vmatpush2.bf16.xpose.msra.mxu0 0
        %1513 = vmatprep.subr.bf16.mxu0 0
        %1514 = vmatpush2.bf16.xpose.msra.mxu0 0
        %1515 = vmatprep.subr.bf16.mxu0 0
        %1516 = vmatpush2.bf16.xpose.msra.mxu0 0
        %1517 = vmatprep.subr.bf16.mxu0 0
        %1518 = vmatpush2.bf16.xpose.msra.mxu0 0
        %1519 = vmatprep.mubr.bf16.mxu0 0
        %1520 = vmatmul.mubr.bf16.gmra.mxu0 %v1476
        %v1521 = vpop.f32.mrf.mxu0
        %v1522 = vadd.f32 %v1386, %v1521
        %v1523 = vpop.f32.mrf.mxu0
        %v1524 = vpop.f32.mrf.mxu0
        %v1525 = vadd.f32 %v1387, %v1524
        %v1526 = vpop.f32.mrf.mxu0
        %1527 = vmatprep.mubr.bf16.mxu0 0
        %1528 = vmatmul.mubr.bf16.gmra.mxu0 %v1479
        %v1529 = vpop.f32.mrf.mxu0
        %v1530 = vadd.f32 %v1388, %v1529
        %v1531 = vpop.f32.mrf.mxu0
        %v1532 = vpop.f32.mrf.mxu0
        %v1533 = vadd.f32 %v1389, %v1532
        %v1534 = vpop.f32.mrf.mxu0
        %1535 = vdwg.mxu0
        %1536 = vrot.lane.b32.xlu0 %v551, 120
        %v1537 = vpop.permute.xlu0 %1536
        %1538 = vrot.lane.b32.xlu0 %v552, 120
        %v1539 = vpop.permute.xlu0 %1538
        %1540 = vrot.lane.b32.xlu0 %v551, 88
        %v1541 = vpop.permute.xlu0 %1540
        %1542 = vrot.lane.b32.xlu0 %v552, 88
        %v1543 = vpop.permute.xlu0 %1542
        %v1545 = vsel %vm593, %v1537, 0
        %v1548 = vsel %vm593, %v1539, 0
        %v1551 = vsel %vm593, %v1541, 0
        %v1554 = vsel %vm593, %v1543, 0
        %1556 = vmatprep.subr.bf16.mxu0 0
        %1557 = vmatpush1.bf16.xpose.msra.mxu0 0
        %1558 = vmatprep.subr.bf16.mxu0 0
        %1559 = vmatpush1.bf16.xpose.msra.mxu0 0
        %1560 = vmatprep.subr.bf16.mxu0 0
        %1561 = vmatpush1.bf16.xpose.msra.mxu0 0
        %1562 = vmatprep.subr.bf16.mxu0 0
        %1563 = vmatpush1.bf16.xpose.msra.mxu0 0
        %1564 = vmatprep.subr.bf16.mxu0 0
        %1565 = vmatpush1.bf16.xpose.msra.mxu0 0
        %1566 = vmatprep.subr.bf16.mxu0 0
        %1567 = vmatpush1.bf16.xpose.msra.mxu0 0
        %1568 = vmatprep.subr.bf16.mxu0 0
        %1569 = vmatpush1.bf16.xpose.msra.mxu0 %v1554
        %1570 = vmatprep.subr.bf16.mxu0 0
        %1571 = vmatpush1.bf16.xpose.msra.mxu0 %v1551
        %1572 = vmatprep.subr.bf16.mxu0 0
        %1573 = vmatpush2.bf16.xpose.msra.mxu0 0
        %1574 = vmatprep.subr.bf16.mxu0 0
        %1575 = vmatpush2.bf16.xpose.msra.mxu0 0
        %1576 = vmatprep.subr.bf16.mxu0 0
        %1577 = vmatpush2.bf16.xpose.msra.mxu0 0
        %1578 = vmatprep.subr.bf16.mxu0 0
        %1579 = vmatpush2.bf16.xpose.msra.mxu0 0
        %1580 = vmatprep.subr.bf16.mxu0 0
        %1581 = vmatpush2.bf16.xpose.msra.mxu0 0
        %1582 = vmatprep.subr.bf16.mxu0 0
        %1583 = vmatpush2.bf16.xpose.msra.mxu0 0
        %1584 = vmatprep.subr.bf16.mxu0 0
        %1585 = vmatpush2.bf16.xpose.msra.mxu0 0
        %1586 = vmatprep.subr.bf16.mxu0 0
        %1587 = vmatpush2.bf16.xpose.msra.mxu0 0
        %1588 = vmatprep.mubr.bf16.mxu0 0
        %1589 = vmatmul.mubr.bf16.gmra.mxu0 %v1545
        %v1590 = vpop.f32.mrf.mxu0
        %v1591 = vadd.f32 %v1390, %v1590
        %v1592 = vpop.f32.mrf.mxu0
        %v1593 = vpop.f32.mrf.mxu0
        %v1594 = vadd.f32 %v1391, %v1593
        %v1595 = vpop.f32.mrf.mxu0
        %1596 = vmatprep.mubr.bf16.mxu0 0
        %1597 = vmatmul.mubr.bf16.gmra.mxu0 %v1548
        %v1598 = vpop.f32.mrf.mxu0
        %v1599 = vadd.f32 %v1392, %v1598
        %v1600 = vpop.f32.mrf.mxu0
        %v1601 = vpop.f32.mrf.mxu0
        %v1602 = vadd.f32 %v1393, %v1601
        %v1603 = vpop.f32.mrf.mxu0
        %1604 = vdwg.mxu0
        %1605 = vrot.lane.b32.xlu0 %v553, 120
        %v1606 = vpop.permute.xlu0 %1605
        %1607 = vrot.lane.b32.xlu0 %v554, 120
        %v1608 = vpop.permute.xlu0 %1607
        %1609 = vrot.lane.b32.xlu0 %v553, 88
        %v1610 = vpop.permute.xlu0 %1609
        %1611 = vrot.lane.b32.xlu0 %v554, 88
        %v1612 = vpop.permute.xlu0 %1611
        %v1614 = vsel %vm593, %v1606, 0
        %v1617 = vsel %vm593, %v1608, 0
        %v1620 = vsel %vm593, %v1610, 0
        %v1623 = vsel %vm593, %v1612, 0
        %1625 = vmatprep.subr.bf16.mxu0 0
        %1626 = vmatpush1.bf16.xpose.msra.mxu0 0
        %1627 = vmatprep.subr.bf16.mxu0 0
        %1628 = vmatpush1.bf16.xpose.msra.mxu0 0
        %1629 = vmatprep.subr.bf16.mxu0 0
        %1630 = vmatpush1.bf16.xpose.msra.mxu0 0
        %1631 = vmatprep.subr.bf16.mxu0 0
        %1632 = vmatpush1.bf16.xpose.msra.mxu0 0
        %1633 = vmatprep.subr.bf16.mxu0 0
        %1634 = vmatpush1.bf16.xpose.msra.mxu0 0
        %1635 = vmatprep.subr.bf16.mxu0 0
        %1636 = vmatpush1.bf16.xpose.msra.mxu0 0
        %1637 = vmatprep.subr.bf16.mxu0 0
        %1638 = vmatpush1.bf16.xpose.msra.mxu0 %v1623
        %1639 = vmatprep.subr.bf16.mxu0 0
        %1640 = vmatpush1.bf16.xpose.msra.mxu0 %v1620
        %1641 = vmatprep.subr.bf16.mxu0 0
        %1642 = vmatpush2.bf16.xpose.msra.mxu0 0
        %1643 = vmatprep.subr.bf16.mxu0 0
        %1644 = vmatpush2.bf16.xpose.msra.mxu0 0
        %1645 = vmatprep.subr.bf16.mxu0 0
        %1646 = vmatpush2.bf16.xpose.msra.mxu0 0
        %1647 = vmatprep.subr.bf16.mxu0 0
        %1648 = vmatpush2.bf16.xpose.msra.mxu0 0
        %1649 = vmatprep.subr.bf16.mxu0 0
        %1650 = vmatpush2.bf16.xpose.msra.mxu0 0
        %1651 = vmatprep.subr.bf16.mxu0 0
        %1652 = vmatpush2.bf16.xpose.msra.mxu0 0
        %1653 = vmatprep.subr.bf16.mxu0 0
        %1654 = vmatpush2.bf16.xpose.msra.mxu0 0
        %1655 = vmatprep.subr.bf16.mxu0 0
        %1656 = vmatpush2.bf16.xpose.msra.mxu0 0
        %1657 = vmatprep.mubr.bf16.mxu0 0
        %1658 = vmatmul.mubr.bf16.gmra.mxu0 %v1614
        %v1659 = vpop.f32.mrf.mxu0
        %v1660 = vadd.f32 %v1394, %v1659
        %v1661 = vpop.f32.mrf.mxu0
        %v1662 = vpop.f32.mrf.mxu0
        %v1663 = vadd.f32 %v1395, %v1662
        %v1664 = vpop.f32.mrf.mxu0
        %1665 = vmatprep.mubr.bf16.mxu0 0
        %1666 = vmatmul.mubr.bf16.gmra.mxu0 %v1617
        %v1667 = vpop.f32.mrf.mxu0
        %v1668 = vadd.f32 %v1396, %v1667
        %v1669 = vpop.f32.mrf.mxu0
        %v1670 = vpop.f32.mrf.mxu0
        %v1671 = vadd.f32 %v1397, %v1670
        %v1672 = vpop.f32.mrf.mxu0
        %1673 = vdwg.mxu0
        %v1674 = vsel %vm425, %v1453, -inf
        %1675 = vmax.xlane.f32.xlu0 %v1674
        %v1676 = vpop.xlane.xlu0 %1675
        %v1677 = vsel %vm425, %v1456, -inf
        %1678 = vmax.xlane.f32.xlu0 %v1677
        %v1679 = vpop.xlane.xlu0 %1678
        %v1680 = vsel %vm425, %v1461, -inf
        %1681 = vmax.xlane.f32.xlu0 %v1680
        %v1682 = vpop.xlane.xlu0 %1681
        %v1683 = vsel %vm425, %v1464, -inf
        %1684 = vmax.xlane.f32.xlu0 %v1683
        %v1685 = vpop.xlane.xlu0 %1684
        %v1686 = vsel %vm425, %v1522, -inf
        %1687 = vmax.xlane.f32.xlu0 %v1686
        %v1688 = vpop.xlane.xlu0 %1687
        %v1689 = vsel %vm425, %v1525, -inf
        %1690 = vmax.xlane.f32.xlu0 %v1689
        %v1691 = vpop.xlane.xlu0 %1690
        %v1692 = vsel %vm425, %v1530, -inf
        %1693 = vmax.xlane.f32.xlu0 %v1692
        %v1694 = vpop.xlane.xlu0 %1693
        %v1695 = vsel %vm425, %v1533, -inf
        %1696 = vmax.xlane.f32.xlu0 %v1695
        %v1697 = vpop.xlane.xlu0 %1696
        %v1698 = vsel %vm425, %v1591, -inf
        %1699 = vmax.xlane.f32.xlu0 %v1698
        %v1700 = vpop.xlane.xlu0 %1699
        %v1701 = vsel %vm425, %v1594, -inf
        %1702 = vmax.xlane.f32.xlu0 %v1701
        %v1703 = vpop.xlane.xlu0 %1702
        %v1704 = vsel %vm425, %v1599, -inf
        %1705 = vmax.xlane.f32.xlu0 %v1704
        %v1706 = vpop.xlane.xlu0 %1705
        %v1707 = vsel %vm425, %v1602, -inf
        %1708 = vmax.xlane.f32.xlu0 %v1707
        %v1709 = vpop.xlane.xlu0 %1708
        %v1710 = vsel %vm425, %v1660, -inf
        %1711 = vmax.xlane.f32.xlu0 %v1710
        %v1712 = vpop.xlane.xlu0 %1711
        %v1713 = vsel %vm425, %v1663, -inf
        %1714 = vmax.xlane.f32.xlu0 %v1713
        %v1715 = vpop.xlane.xlu0 %1714
        %v1716 = vsel %vm425, %v1668, -inf
        %1717 = vmax.xlane.f32.xlu0 %v1716
        %v1718 = vpop.xlane.xlu0 %1717
        %v1719 = vsel %vm425, %v1671, -inf
        %1720 = vmax.xlane.f32.xlu0 %v1719
        %v1721 = vpop.xlane.xlu0 %1720
        %v1722 = vsub.f32 %v1453, %v1676
        %v1723 = vsub.f32 %v1456, %v1679
        %v1724 = vsub.f32 %v1461, %v1682
        %v1725 = vsub.f32 %v1464, %v1685
        %v1726 = vsub.f32 %v1522, %v1688
        %v1727 = vsub.f32 %v1525, %v1691
        %v1728 = vsub.f32 %v1530, %v1694
        %v1729 = vsub.f32 %v1533, %v1697
        %v1730 = vsub.f32 %v1591, %v1700
        %v1731 = vsub.f32 %v1594, %v1703
        %v1732 = vsub.f32 %v1599, %v1706
        %v1733 = vsub.f32 %v1602, %v1709
        %v1734 = vsub.f32 %v1660, %v1712
        %v1735 = vsub.f32 %v1663, %v1715
        %v1736 = vsub.f32 %v1668, %v1718
        %v1737 = vsub.f32 %v1671, %v1721
        %v1738 = vmul.f32 %v1722, 1.442695
        %v1739 = vpow.pop %v1738
        %v1740 = vmul.f32 %v1723, 1.442695
        %v1741 = vpow.pop %v1740
        %v1742 = vmul.f32 %v1724, 1.442695
        %v1743 = vpow.pop %v1742
        %v1744 = vmul.f32 %v1725, 1.442695
        %v1745 = vpow.pop %v1744
        %v1746 = vmul.f32 %v1726, 1.442695
        %v1747 = vpow.pop %v1746
        %v1748 = vmul.f32 %v1727, 1.442695
        %v1749 = vpow.pop %v1748
        %v1750 = vmul.f32 %v1728, 1.442695
        %v1751 = vpow.pop %v1750
        %v1752 = vmul.f32 %v1729, 1.442695
        %v1753 = vpow.pop %v1752
        %v1754 = vmul.f32 %v1730, 1.442695
        %v1755 = vpow.pop %v1754
        %v1756 = vmul.f32 %v1731, 1.442695
        %v1757 = vpow.pop %v1756
        %v1758 = vmul.f32 %v1732, 1.442695
        %v1759 = vpow.pop %v1758
        %v1760 = vmul.f32 %v1733, 1.442695
        %v1761 = vpow.pop %v1760
        %v1762 = vmul.f32 %v1734, 1.442695
        %v1763 = vpow.pop %v1762
        %v1764 = vmul.f32 %v1735, 1.442695
        %v1765 = vpow.pop %v1764
        %v1766 = vmul.f32 %v1736, 1.442695
        %v1767 = vpow.pop %v1766
        %v1768 = vmul.f32 %v1737, 1.442695
        %v1769 = vpow.pop %v1768
        %v1770 = vsel %vm425, %v1739, 0.0
        %1771 = vadd.xlane.f32.xlu0 %v1770
        %v1772 = vpop.xlane.xlu0 %1771
        %v1773 = vsel %vm425, %v1741, 0.0
        %1774 = vadd.xlane.f32.xlu0 %v1773
        %v1775 = vpop.xlane.xlu0 %1774
        %v1776 = vsel %vm425, %v1743, 0.0
        %1777 = vadd.xlane.f32.xlu0 %v1776
        %v1778 = vpop.xlane.xlu0 %1777
        %v1779 = vsel %vm425, %v1745, 0.0
        %1780 = vadd.xlane.f32.xlu0 %v1779
        %v1781 = vpop.xlane.xlu0 %1780
        %v1782 = vsel %vm425, %v1747, 0.0
        %1783 = vadd.xlane.f32.xlu0 %v1782
        %v1784 = vpop.xlane.xlu0 %1783
        %v1785 = vsel %vm425, %v1749, 0.0
        %1786 = vadd.xlane.f32.xlu0 %v1785
        %v1787 = vpop.xlane.xlu0 %1786
        %v1788 = vsel %vm425, %v1751, 0.0
        %1789 = vadd.xlane.f32.xlu0 %v1788
        %v1790 = vpop.xlane.xlu0 %1789
        %v1791 = vsel %vm425, %v1753, 0.0
        %1792 = vadd.xlane.f32.xlu0 %v1791
        %v1793 = vpop.xlane.xlu0 %1792
        %v1794 = vsel %vm425, %v1755, 0.0
        %1795 = vadd.xlane.f32.xlu0 %v1794
        %v1796 = vpop.xlane.xlu0 %1795
        %v1797 = vsel %vm425, %v1757, 0.0
        %1798 = vadd.xlane.f32.xlu0 %v1797
        %v1799 = vpop.xlane.xlu0 %1798
        %v1800 = vsel %vm425, %v1759, 0.0
        %1801 = vadd.xlane.f32.xlu0 %v1800
        %v1802 = vpop.xlane.xlu0 %1801
        %v1803 = vsel %vm425, %v1761, 0.0
        %1804 = vadd.xlane.f32.xlu0 %v1803
        %v1805 = vpop.xlane.xlu0 %1804
        %v1806 = vsel %vm425, %v1763, 0.0
        %1807 = vadd.xlane.f32.xlu0 %v1806
        %v1808 = vpop.xlane.xlu0 %1807
        %v1809 = vsel %vm425, %v1765, 0.0
        %1810 = vadd.xlane.f32.xlu0 %v1809
        %v1811 = vpop.xlane.xlu0 %1810
        %v1812 = vsel %vm425, %v1767, 0.0
        %1813 = vadd.xlane.f32.xlu0 %v1812
        %v1814 = vpop.xlane.xlu0 %1813
        %v1815 = vsel %vm425, %v1769, 0.0
        %1816 = vadd.xlane.f32.xlu0 %v1815
        %v1817 = vpop.xlane.xlu0 %1816
        %v1818 = vrcp.pop %v1772
        %v1819 = vrcp.pop %v1775
        %v1820 = vrcp.pop %v1778
        %v1821 = vrcp.pop %v1781
        %v1822 = vrcp.pop %v1784
        %v1823 = vrcp.pop %v1787
        %v1824 = vrcp.pop %v1790
        %v1825 = vrcp.pop %v1793
        %v1826 = vrcp.pop %v1796
        %v1827 = vrcp.pop %v1799
        %v1828 = vrcp.pop %v1802
        %v1829 = vrcp.pop %v1805
        %v1830 = vrcp.pop %v1808
        %v1831 = vrcp.pop %v1811
        %v1832 = vrcp.pop %v1814
        %v1833 = vrcp.pop %v1817
        %v1834 = vmul.f32 %v1739, %v1818
        %v1835 = vmul.f32 %v1741, %v1819
        %v1836 = vmul.f32 %v1743, %v1820
        %v1837 = vmul.f32 %v1745, %v1821
        %v1838 = vmul.f32 %v1747, %v1822
        %v1839 = vmul.f32 %v1749, %v1823
        %v1840 = vmul.f32 %v1751, %v1824
        %v1841 = vmul.f32 %v1753, %v1825
        %v1842 = vmul.f32 %v1755, %v1826
        %v1843 = vmul.f32 %v1757, %v1827
        %v1844 = vmul.f32 %v1759, %v1828
        %v1845 = vmul.f32 %v1761, %v1829
        %v1846 = vmul.f32 %v1763, %v1830
        %v1847 = vmul.f32 %v1765, %v1831
        %v1848 = vmul.f32 %v1767, %v1832
        %v1849 = vmul.f32 %v1769, %v1833
        %v1850 = vpack.c.bf16 %v1835, %v1834
        %v1851 = vpack.c.bf16 %v1837, %v1836
        %v1852 = vpack.c.bf16 %v1839, %v1838
        %v1853 = vpack.c.bf16 %v1841, %v1840
        %v1854 = vpack.c.bf16 %v1843, %v1842
        %v1855 = vpack.c.bf16 %v1845, %v1844
        %v1856 = vpack.c.bf16 %v1847, %v1846
        %v1857 = vpack.c.bf16 %v1849, %v1848
        %1858 = vrot.lane.b32.xlu0 %v547, 56
        %v1859 = vpop.permute.xlu0 %1858
        %1860 = vrot.lane.b32.xlu0 %v548, 56
        %v1861 = vpop.permute.xlu0 %1860
        %v1865 = vsel %vm425, %v1850, 0
        %v1868 = vsel %vm425, %v1851, 0
        %1870 = vmatprep.subr.bf16.mxu0 0
        %1871 = vmatpush1.bf16.msra.mxu0 0
        %1872 = vmatprep.subr.bf16.mxu0 0
        %1873 = vmatpush1.bf16.msra.mxu0 0
        %1874 = vmatprep.subr.bf16.mxu0 0
        %1875 = vmatpush1.bf16.msra.mxu0 0
        %1876 = vmatprep.subr.bf16.mxu0 0
        %1877 = vmatpush1.bf16.msra.mxu0 0
        %1878 = vmatprep.subr.bf16.mxu0 0
        %1879 = vmatpush1.bf16.msra.mxu0 0
        %1880 = vmatprep.subr.bf16.mxu0 0
        %1881 = vmatpush1.bf16.msra.mxu0 0
        %1882 = vmatprep.subr.bf16.mxu0 0
        %1883 = vmatpush1.bf16.msra.mxu0 %v1861
        %1884 = vmatprep.subr.bf16.mxu0 0
        %1885 = vmatpush1.bf16.msra.mxu0 %v1859
        %1886 = vmatprep.subr.bf16.mxu0 0
        %1887 = vmatpush2.bf16.msra.mxu0 0
        %1888 = vmatprep.subr.bf16.mxu0 0
        %1889 = vmatpush2.bf16.msra.mxu0 0
        %1890 = vmatprep.subr.bf16.mxu0 0
        %1891 = vmatpush2.bf16.msra.mxu0 0
        %1892 = vmatprep.subr.bf16.mxu0 0
        %1893 = vmatpush2.bf16.msra.mxu0 0
        %1894 = vmatprep.subr.bf16.mxu0 0
        %1895 = vmatpush2.bf16.msra.mxu0 0
        %1896 = vmatprep.subr.bf16.mxu0 0
        %1897 = vmatpush2.bf16.msra.mxu0 0
        %1898 = vmatprep.subr.bf16.mxu0 0
        %1899 = vmatpush2.bf16.msra.mxu0 0
        %1900 = vmatprep.subr.bf16.mxu0 0
        %1901 = vmatpush2.bf16.msra.mxu0 0
        %1902 = vmatprep.mubr.bf16.mxu0 0
        %1903 = vmatmul.mubr.bf16.gmra.mxu0 %v1865
        %v1904 = vpop.f32.mrf.mxu0
        %v1905 = vadd.f32 0.0, %v1904
        %v1906 = vpop.f32.mrf.mxu0
        %v1907 = vpop.f32.mrf.mxu0
        %v1908 = vadd.f32 0.0, %v1907
        %v1909 = vpop.f32.mrf.mxu0
        %1910 = vmatprep.mubr.bf16.mxu0 0
        %1911 = vmatmul.mubr.bf16.gmra.mxu0 %v1868
        %v1912 = vpop.f32.mrf.mxu0
        %v1913 = vadd.f32 0.0, %v1912
        %v1914 = vpop.f32.mrf.mxu0
        %v1915 = vpop.f32.mrf.mxu0
        %v1916 = vadd.f32 0.0, %v1915
        %v1917 = vpop.f32.mrf.mxu0
        %1918 = vdwg.mxu0
        %1919 = vrot.lane.b32.xlu0 %v549, 56
        %v1920 = vpop.permute.xlu0 %1919
        %1921 = vrot.lane.b32.xlu0 %v550, 56
        %v1922 = vpop.permute.xlu0 %1921
        %v1926 = vsel %vm425, %v1852, 0
        %v1929 = vsel %vm425, %v1853, 0
        %1931 = vmatprep.subr.bf16.mxu0 0
        %1932 = vmatpush1.bf16.msra.mxu0 0
        %1933 = vmatprep.subr.bf16.mxu0 0
        %1934 = vmatpush1.bf16.msra.mxu0 0
        %1935 = vmatprep.subr.bf16.mxu0 0
        %1936 = vmatpush1.bf16.msra.mxu0 0
        %1937 = vmatprep.subr.bf16.mxu0 0
        %1938 = vmatpush1.bf16.msra.mxu0 0
        %1939 = vmatprep.subr.bf16.mxu0 0
        %1940 = vmatpush1.bf16.msra.mxu0 0
        %1941 = vmatprep.subr.bf16.mxu0 0
        %1942 = vmatpush1.bf16.msra.mxu0 0
        %1943 = vmatprep.subr.bf16.mxu0 0
        %1944 = vmatpush1.bf16.msra.mxu0 %v1922
        %1945 = vmatprep.subr.bf16.mxu0 0
        %1946 = vmatpush1.bf16.msra.mxu0 %v1920
        %1947 = vmatprep.subr.bf16.mxu0 0
        %1948 = vmatpush2.bf16.msra.mxu0 0
        %1949 = vmatprep.subr.bf16.mxu0 0
        %1950 = vmatpush2.bf16.msra.mxu0 0
        %1951 = vmatprep.subr.bf16.mxu0 0
        %1952 = vmatpush2.bf16.msra.mxu0 0
        %1953 = vmatprep.subr.bf16.mxu0 0
        %1954 = vmatpush2.bf16.msra.mxu0 0
        %1955 = vmatprep.subr.bf16.mxu0 0
        %1956 = vmatpush2.bf16.msra.mxu0 0
        %1957 = vmatprep.subr.bf16.mxu0 0
        %1958 = vmatpush2.bf16.msra.mxu0 0
        %1959 = vmatprep.subr.bf16.mxu0 0
        %1960 = vmatpush2.bf16.msra.mxu0 0
        %1961 = vmatprep.subr.bf16.mxu0 0
        %1962 = vmatpush2.bf16.msra.mxu0 0
        %1963 = vmatprep.mubr.bf16.mxu0 0
        %1964 = vmatmul.mubr.bf16.gmra.mxu0 %v1926
        %v1965 = vpop.f32.mrf.mxu0
        %v1966 = vadd.f32 0.0, %v1965
        %v1967 = vpop.f32.mrf.mxu0
        %v1968 = vpop.f32.mrf.mxu0
        %v1969 = vadd.f32 0.0, %v1968
        %v1970 = vpop.f32.mrf.mxu0
        %1971 = vmatprep.mubr.bf16.mxu0 0
        %1972 = vmatmul.mubr.bf16.gmra.mxu0 %v1929
        %v1973 = vpop.f32.mrf.mxu0
        %v1974 = vadd.f32 0.0, %v1973
        %v1975 = vpop.f32.mrf.mxu0
        %v1976 = vpop.f32.mrf.mxu0
        %v1977 = vadd.f32 0.0, %v1976
        %v1978 = vpop.f32.mrf.mxu0
        %1979 = vdwg.mxu0
        %1980 = vrot.lane.b32.xlu0 %v551, 56
        %v1981 = vpop.permute.xlu0 %1980
        %1982 = vrot.lane.b32.xlu0 %v552, 56
        %v1983 = vpop.permute.xlu0 %1982
        %v1987 = vsel %vm425, %v1854, 0
        %v1990 = vsel %vm425, %v1855, 0
        %1992 = vmatprep.subr.bf16.mxu0 0
        %1993 = vmatpush1.bf16.msra.mxu0 0
        %1994 = vmatprep.subr.bf16.mxu0 0
        %1995 = vmatpush1.bf16.msra.mxu0 0
        %1996 = vmatprep.subr.bf16.mxu0 0
        %1997 = vmatpush1.bf16.msra.mxu0 0
        %1998 = vmatprep.subr.bf16.mxu0 0
        %1999 = vmatpush1.bf16.msra.mxu0 0
        %2000 = vmatprep.subr.bf16.mxu0 0
        %2001 = vmatpush1.bf16.msra.mxu0 0
        %2002 = vmatprep.subr.bf16.mxu0 0
        %2003 = vmatpush1.bf16.msra.mxu0 0
        %2004 = vmatprep.subr.bf16.mxu0 0
        %2005 = vmatpush1.bf16.msra.mxu0 %v1983
        %2006 = vmatprep.subr.bf16.mxu0 0
        %2007 = vmatpush1.bf16.msra.mxu0 %v1981
        %2008 = vmatprep.subr.bf16.mxu0 0
        %2009 = vmatpush2.bf16.msra.mxu0 0
        %2010 = vmatprep.subr.bf16.mxu0 0
        %2011 = vmatpush2.bf16.msra.mxu0 0
        %2012 = vmatprep.subr.bf16.mxu0 0
        %2013 = vmatpush2.bf16.msra.mxu0 0
        %2014 = vmatprep.subr.bf16.mxu0 0
        %2015 = vmatpush2.bf16.msra.mxu0 0
        %2016 = vmatprep.subr.bf16.mxu0 0
        %2017 = vmatpush2.bf16.msra.mxu0 0
        %2018 = vmatprep.subr.bf16.mxu0 0
        %2019 = vmatpush2.bf16.msra.mxu0 0
        %2020 = vmatprep.subr.bf16.mxu0 0
        %2021 = vmatpush2.bf16.msra.mxu0 0
        %2022 = vmatprep.subr.bf16.mxu0 0
        %2023 = vmatpush2.bf16.msra.mxu0 0
        %2024 = vmatprep.mubr.bf16.mxu0 0
        %2025 = vmatmul.mubr.bf16.gmra.mxu0 %v1987
        %v2026 = vpop.f32.mrf.mxu0
        %v2027 = vadd.f32 0.0, %v2026
        %v2028 = vpop.f32.mrf.mxu0
        %v2029 = vpop.f32.mrf.mxu0
        %v2030 = vadd.f32 0.0, %v2029
        %v2031 = vpop.f32.mrf.mxu0
        %2032 = vmatprep.mubr.bf16.mxu0 0
        %2033 = vmatmul.mubr.bf16.gmra.mxu0 %v1990
        %v2034 = vpop.f32.mrf.mxu0
        %v2035 = vadd.f32 0.0, %v2034
        %v2036 = vpop.f32.mrf.mxu0
        %v2037 = vpop.f32.mrf.mxu0
        %v2038 = vadd.f32 0.0, %v2037
        %v2039 = vpop.f32.mrf.mxu0
        %2040 = vdwg.mxu0
        %2041 = vrot.lane.b32.xlu0 %v553, 56
        %v2042 = vpop.permute.xlu0 %2041
        %2043 = vrot.lane.b32.xlu0 %v554, 56
        %v2044 = vpop.permute.xlu0 %2043
        %v2048 = vsel %vm425, %v1856, 0
        %v2051 = vsel %vm425, %v1857, 0
        %2053 = vmatprep.subr.bf16.mxu0 0
        %2054 = vmatpush1.bf16.msra.mxu0 0
        %2055 = vmatprep.subr.bf16.mxu0 0
        %2056 = vmatpush1.bf16.msra.mxu0 0
        %2057 = vmatprep.subr.bf16.mxu0 0
        %2058 = vmatpush1.bf16.msra.mxu0 0
        %2059 = vmatprep.subr.bf16.mxu0 0
        %2060 = vmatpush1.bf16.msra.mxu0 0
        %2061 = vmatprep.subr.bf16.mxu0 0
        %2062 = vmatpush1.bf16.msra.mxu0 0
        %2063 = vmatprep.subr.bf16.mxu0 0
        %2064 = vmatpush1.bf16.msra.mxu0 0
        %2065 = vmatprep.subr.bf16.mxu0 0
        %2066 = vmatpush1.bf16.msra.mxu0 %v2044
        %2067 = vmatprep.subr.bf16.mxu0 0
        %2068 = vmatpush1.bf16.msra.mxu0 %v2042
        %2069 = vmatprep.subr.bf16.mxu0 0
        %2070 = vmatpush2.bf16.msra.mxu0 0
        %2071 = vmatprep.subr.bf16.mxu0 0
        %2072 = vmatpush2.bf16.msra.mxu0 0
        %2073 = vmatprep.subr.bf16.mxu0 0
        %2074 = vmatpush2.bf16.msra.mxu0 0
        %2075 = vmatprep.subr.bf16.mxu0 0
        %2076 = vmatpush2.bf16.msra.mxu0 0
        %2077 = vmatprep.subr.bf16.mxu0 0
        %2078 = vmatpush2.bf16.msra.mxu0 0
        %2079 = vmatprep.subr.bf16.mxu0 0
        %2080 = vmatpush2.bf16.msra.mxu0 0
        %2081 = vmatprep.subr.bf16.mxu0 0
        %2082 = vmatpush2.bf16.msra.mxu0 0
        %2083 = vmatprep.subr.bf16.mxu0 0
        %2084 = vmatpush2.bf16.msra.mxu0 0
        %2085 = vmatprep.mubr.bf16.mxu0 0
        %2086 = vmatmul.mubr.bf16.gmra.mxu0 %v2048
        %v2087 = vpop.f32.mrf.mxu0
        %v2088 = vadd.f32 0.0, %v2087
        %v2089 = vpop.f32.mrf.mxu0
        %v2090 = vpop.f32.mrf.mxu0
        %v2091 = vadd.f32 0.0, %v2090
        %v2092 = vpop.f32.mrf.mxu0
        %2093 = vmatprep.mubr.bf16.mxu0 0
        %2094 = vmatmul.mubr.bf16.gmra.mxu0 %v2051
        %v2095 = vpop.f32.mrf.mxu0
        %v2096 = vadd.f32 0.0, %v2095
        %v2097 = vpop.f32.mrf.mxu0
        %v2098 = vpop.f32.mrf.mxu0
        %v2099 = vadd.f32 0.0, %v2098
        %v2100 = vpop.f32.mrf.mxu0
        %2101 = vdwg.mxu0
        %v2102 = vpack.c.bf16 %v1908, %v1905
        %v2103 = vpack.c.bf16 %v1916, %v1913
        %v2104 = vpack.c.bf16 %v1969, %v1966
        %v2105 = vpack.c.bf16 %v1977, %v1974
        %v2106 = vpack.c.bf16 %v2030, %v2027
        %v2107 = vpack.c.bf16 %v2038, %v2035
        %v2108 = vpack.c.bf16 %v2091, %v2088
        %v2109 = vpack.c.bf16 %v2099, %v2096
        %v2118 = vunpack.c.l.b16 %v2102
        %v2119 = vunpack.c.h.b16 %v2102
        %v2120 = vunpack.c.l.b16 %v2103
        %v2121 = vunpack.c.h.b16 %v2103
        %v2122 = vunpack.c.l.b16 %v2104
        %v2123 = vunpack.c.h.b16 %v2104
        %v2124 = vunpack.c.l.b16 %v2105
        %v2125 = vunpack.c.h.b16 %v2105
        %v2126 = vunpack.c.l.b16 %v2106
        %v2127 = vunpack.c.h.b16 %v2106
        %v2128 = vunpack.c.l.b16 %v2107
        %v2129 = vunpack.c.h.b16 %v2107
        %v2130 = vunpack.c.l.b16 %v2108
        %v2131 = vunpack.c.h.b16 %v2108
        %v2132 = vunpack.c.l.b16 %v2109
        %v2133 = vunpack.c.h.b16 %v2109
        %v2134 = vpack.c.b16 %v2118, %v2118
        %v2135 = vpack.c.b16 %v2119, %v2119
        %v2136 = vpack.c.b16 %v2120, %v2120
        %v2137 = vpack.c.b16 %v2121, %v2121
        %v2138 = vpack.c.b16 %v2122, %v2122
        %v2139 = vpack.c.b16 %v2123, %v2123
        %v2140 = vpack.c.b16 %v2124, %v2124
        %v2141 = vpack.c.b16 %v2125, %v2125
        %v2142 = vpack.c.b16 %v2126, %v2126
        %v2143 = vpack.c.b16 %v2127, %v2127
        %v2144 = vpack.c.b16 %v2128, %v2128
        %v2145 = vpack.c.b16 %v2129, %v2129
        %v2146 = vpack.c.b16 %v2130, %v2130
        %v2147 = vpack.c.b16 %v2131, %v2131
        %v2148 = vpack.c.b16 %v2132, %v2132
        %v2149 = vpack.c.b16 %v2133, %v2133
        %2150 = vrot.lane.b32.xlu0 %v2134, 8
        %v2151 = vpop.permute.xlu0 %2150
        %2152 = vrot.lane.b32.xlu0 %v2135, 8
        %v2153 = vpop.permute.xlu0 %2152
        %2154 = vrot.lane.b32.xlu0 %v2136, 8
        %v2155 = vpop.permute.xlu0 %2154
        %2156 = vrot.lane.b32.xlu0 %v2137, 8
        %v2157 = vpop.permute.xlu0 %2156
        %2158 = vrot.lane.b32.xlu0 %v2138, 8
        %v2159 = vpop.permute.xlu0 %2158
        %2160 = vrot.lane.b32.xlu0 %v2139, 8
        %v2161 = vpop.permute.xlu0 %2160
        %2162 = vrot.lane.b32.xlu0 %v2140, 8
        %v2163 = vpop.permute.xlu0 %2162
        %2164 = vrot.lane.b32.xlu0 %v2141, 8
        %v2165 = vpop.permute.xlu0 %2164
        %2166 = vrot.lane.b32.xlu0 %v2142, 8
        %v2167 = vpop.permute.xlu0 %2166
        %2168 = vrot.lane.b32.xlu0 %v2143, 8
        %v2169 = vpop.permute.xlu0 %2168
        %2170 = vrot.lane.b32.xlu0 %v2144, 8
        %v2171 = vpop.permute.xlu0 %2170
        %2172 = vrot.lane.b32.xlu0 %v2145, 8
        %v2173 = vpop.permute.xlu0 %2172
        %2174 = vrot.lane.b32.xlu0 %v2146, 8
        %v2175 = vpop.permute.xlu0 %2174
        %2176 = vrot.lane.b32.xlu0 %v2147, 8
        %v2177 = vpop.permute.xlu0 %2176
        %2178 = vrot.lane.b32.xlu0 %v2148, 8
        %v2179 = vpop.permute.xlu0 %2178
        %2180 = vrot.lane.b32.xlu0 %v2149, 8
        %v2181 = vpop.permute.xlu0 %2180
        %vm2198 = vcmask 126016
        %2199 = vst.msk [vmem:[#allocation2] sm:$0xf] %vm2198, %v2151
        %2200 = vst.msk [vmem:[#allocation2 + $0x4] sm:$0xf] %vm2198, %v2153
        %2201 = vst.msk [vmem:[#allocation2 + $0x8] sm:$0xf] %vm2198, %v2155
        %2202 = vst.msk [vmem:[#allocation2 + $0xc] sm:$0xf] %vm2198, %v2157
        %2203 = vst.msk [vmem:[#allocation2 + $0x10] sm:$0xf] %vm2198, %v2159
        %2204 = vst.msk [vmem:[#allocation2 + $0x14] sm:$0xf] %vm2198, %v2161
        %2205 = vst.msk [vmem:[#allocation2 + $0x18] sm:$0xf] %vm2198, %v2163
        %2206 = vst.msk [vmem:[#allocation2 + $0x1c] sm:$0xf] %vm2198, %v2165
        %2207 = vst.msk [vmem:[#allocation2 + $0x20] sm:$0xf] %vm2198, %v2167
        %2208 = vst.msk [vmem:[#allocation2 + $0x24] sm:$0xf] %vm2198, %v2169
        %2209 = vst.msk [vmem:[#allocation2 + $0x28] sm:$0xf] %vm2198, %v2171
        %2210 = vst.msk [vmem:[#allocation2 + $0x2c] sm:$0xf] %vm2198, %v2173
        %2211 = vst.msk [vmem:[#allocation2 + $0x30] sm:$0xf] %vm2198, %v2175
        %2212 = vst.msk [vmem:[#allocation2 + $0x34] sm:$0xf] %vm2198, %v2177
        %2213 = vst.msk [vmem:[#allocation2 + $0x38] sm:$0xf] %vm2198, %v2179
        %2214 = vst.msk [vmem:[#allocation2 + $0x3c] sm:$0xf] %vm2198, %v2181
        %s2215 = scalar_lea.vmem [#allocation8], 128
        %v2216 = vld [vmem:[%s2215] sm:$0xf]
        %v2217 = vld [vmem:[%s2215 + $0x4] sm:$0xf]
        %v2218 = vld [vmem:[%s2215 + $0x8] sm:$0xf]
        %v2219 = vld [vmem:[%s2215 + $0xc] sm:$0xf]
        %v2220 = vld [vmem:[%s2215 + $0x10] sm:$0xf]
        %v2221 = vld [vmem:[%s2215 + $0x14] sm:$0xf]
        %v2222 = vld [vmem:[%s2215 + $0x18] sm:$0xf]
        %v2223 = vld [vmem:[%s2215 + $0x1c] sm:$0xf]
        %v2224 = vld [vmem:[%s2215 + $0x20] sm:$0xf]
        %v2225 = vld [vmem:[%s2215 + $0x24] sm:$0xf]
        %v2226 = vld [vmem:[%s2215 + $0x28] sm:$0xf]
        %v2227 = vld [vmem:[%s2215 + $0x2c] sm:$0xf]
        %v2228 = vld [vmem:[%s2215 + $0x30] sm:$0xf]
        %v2229 = vld [vmem:[%s2215 + $0x34] sm:$0xf]
        %v2230 = vld [vmem:[%s2215 + $0x38] sm:$0xf]
        %v2231 = vld [vmem:[%s2215 + $0x3c] sm:$0xf]
        %v2232 = vunpack.c.l.bf16 %v2216
        %v2233 = vunpack.c.l.bf16 %v2217
        %v2234 = vunpack.c.l.bf16 %v2218
        %v2235 = vunpack.c.l.bf16 %v2219
        %v2236 = vunpack.c.l.bf16 %v2220
        %v2237 = vunpack.c.l.bf16 %v2221
        %v2238 = vunpack.c.l.bf16 %v2222
        %v2239 = vunpack.c.l.bf16 %v2223
        %v2240 = vunpack.c.l.bf16 %v2224
        %v2241 = vunpack.c.l.bf16 %v2225
        %v2242 = vunpack.c.l.bf16 %v2226
        %v2243 = vunpack.c.l.bf16 %v2227
        %v2244 = vunpack.c.l.bf16 %v2228
        %v2245 = vunpack.c.l.bf16 %v2229
        %v2246 = vunpack.c.l.bf16 %v2230
        %v2247 = vunpack.c.l.bf16 %v2231
        %2248 = vrot.lane.b32.xlu0 %v547, 112
        %v2249 = vpop.permute.xlu0 %2248
        %2250 = vrot.lane.b32.xlu0 %v548, 112
        %v2251 = vpop.permute.xlu0 %2250
        %2252 = vrot.lane.b32.xlu0 %v547, 80
        %v2253 = vpop.permute.xlu0 %2252
        %2254 = vrot.lane.b32.xlu0 %v548, 80
        %v2255 = vpop.permute.xlu0 %2254
        %v2257 = vsel %vm593, %v2249, 0
        %v2260 = vsel %vm593, %v2251, 0
        %v2263 = vsel %vm593, %v2253, 0
        %v2266 = vsel %vm593, %v2255, 0
        %2268 = vmatprep.subr.bf16.mxu0 0
        %2269 = vmatpush1.bf16.xpose.msra.mxu0 0
        %2270 = vmatprep.subr.bf16.mxu0 0
        %2271 = vmatpush1.bf16.xpose.msra.mxu0 0
        %2272 = vmatprep.subr.bf16.mxu0 0
        %2273 = vmatpush1.bf16.xpose.msra.mxu0 0
        %2274 = vmatprep.subr.bf16.mxu0 0
        %2275 = vmatpush1.bf16.xpose.msra.mxu0 0
        %2276 = vmatprep.subr.bf16.mxu0 0
        %2277 = vmatpush1.bf16.xpose.msra.mxu0 0
        %2278 = vmatprep.subr.bf16.mxu0 0
        %2279 = vmatpush1.bf16.xpose.msra.mxu0 0
        %2280 = vmatprep.subr.bf16.mxu0 0
        %2281 = vmatpush1.bf16.xpose.msra.mxu0 %v2266
        %2282 = vmatprep.subr.bf16.mxu0 0
        %2283 = vmatpush1.bf16.xpose.msra.mxu0 %v2263
        %2284 = vmatprep.subr.bf16.mxu0 0
        %2285 = vmatpush2.bf16.xpose.msra.mxu0 0
        %2286 = vmatprep.subr.bf16.mxu0 0
        %2287 = vmatpush2.bf16.xpose.msra.mxu0 0
        %2288 = vmatprep.subr.bf16.mxu0 0
        %2289 = vmatpush2.bf16.xpose.msra.mxu0 0
        %2290 = vmatprep.subr.bf16.mxu0 0
        %2291 = vmatpush2.bf16.xpose.msra.mxu0 0
        %2292 = vmatprep.subr.bf16.mxu0 0
        %2293 = vmatpush2.bf16.xpose.msra.mxu0 0
        %2294 = vmatprep.subr.bf16.mxu0 0
        %2295 = vmatpush2.bf16.xpose.msra.mxu0 0
        %2296 = vmatprep.subr.bf16.mxu0 0
        %2297 = vmatpush2.bf16.xpose.msra.mxu0 0
        %2298 = vmatprep.subr.bf16.mxu0 0
        %2299 = vmatpush2.bf16.xpose.msra.mxu0 0
        %2300 = vmatprep.mubr.bf16.mxu0 0
        %2301 = vmatmul.mubr.bf16.gmra.mxu0 %v2257
        %v2302 = vpop.f32.mrf.mxu0
        %v2303 = vadd.f32 %v2232, %v2302
        %v2304 = vpop.f32.mrf.mxu0
        %v2305 = vpop.f32.mrf.mxu0
        %v2306 = vadd.f32 %v2233, %v2305
        %v2307 = vpop.f32.mrf.mxu0
        %2308 = vmatprep.mubr.bf16.mxu0 0
        %2309 = vmatmul.mubr.bf16.gmra.mxu0 %v2260
        %v2310 = vpop.f32.mrf.mxu0
        %v2311 = vadd.f32 %v2234, %v2310
        %v2312 = vpop.f32.mrf.mxu0
        %v2313 = vpop.f32.mrf.mxu0
        %v2314 = vadd.f32 %v2235, %v2313
        %v2315 = vpop.f32.mrf.mxu0
        %2316 = vdwg.mxu0
        %2317 = vrot.lane.b32.xlu0 %v549, 112
        %v2318 = vpop.permute.xlu0 %2317
        %2319 = vrot.lane.b32.xlu0 %v550, 112
        %v2320 = vpop.permute.xlu0 %2319
        %2321 = vrot.lane.b32.xlu0 %v549, 80
        %v2322 = vpop.permute.xlu0 %2321
        %2323 = vrot.lane.b32.xlu0 %v550, 80
        %v2324 = vpop.permute.xlu0 %2323
        %v2326 = vsel %vm593, %v2318, 0
        %v2329 = vsel %vm593, %v2320, 0
        %v2332 = vsel %vm593, %v2322, 0
        %v2335 = vsel %vm593, %v2324, 0
        %2337 = vmatprep.subr.bf16.mxu0 0
        %2338 = vmatpush1.bf16.xpose.msra.mxu0 0
        %2339 = vmatprep.subr.bf16.mxu0 0
        %2340 = vmatpush1.bf16.xpose.msra.mxu0 0
        %2341 = vmatprep.subr.bf16.mxu0 0
        %2342 = vmatpush1.bf16.xpose.msra.mxu0 0
        %2343 = vmatprep.subr.bf16.mxu0 0
        %2344 = vmatpush1.bf16.xpose.msra.mxu0 0
        %2345 = vmatprep.subr.bf16.mxu0 0
        %2346 = vmatpush1.bf16.xpose.msra.mxu0 0
        %2347 = vmatprep.subr.bf16.mxu0 0
        %2348 = vmatpush1.bf16.xpose.msra.mxu0 0
        %2349 = vmatprep.subr.bf16.mxu0 0
        %2350 = vmatpush1.bf16.xpose.msra.mxu0 %v2335
        %2351 = vmatprep.subr.bf16.mxu0 0
        %2352 = vmatpush1.bf16.xpose.msra.mxu0 %v2332
        %2353 = vmatprep.subr.bf16.mxu0 0
        %2354 = vmatpush2.bf16.xpose.msra.mxu0 0
        %2355 = vmatprep.subr.bf16.mxu0 0
        %2356 = vmatpush2.bf16.xpose.msra.mxu0 0
        %2357 = vmatprep.subr.bf16.mxu0 0
        %2358 = vmatpush2.bf16.xpose.msra.mxu0 0
        %2359 = vmatprep.subr.bf16.mxu0 0
        %2360 = vmatpush2.bf16.xpose.msra.mxu0 0
        %2361 = vmatprep.subr.bf16.mxu0 0
        %2362 = vmatpush2.bf16.xpose.msra.mxu0 0
        %2363 = vmatprep.subr.bf16.mxu0 0
        %2364 = vmatpush2.bf16.xpose.msra.mxu0 0
        %2365 = vmatprep.subr.bf16.mxu0 0
        %2366 = vmatpush2.bf16.xpose.msra.mxu0 0
        %2367 = vmatprep.subr.bf16.mxu0 0
        %2368 = vmatpush2.bf16.xpose.msra.mxu0 0
        %2369 = vmatprep.mubr.bf16.mxu0 0
        %2370 = vmatmul.mubr.bf16.gmra.mxu0 %v2326
        %v2371 = vpop.f32.mrf.mxu0
        %v2372 = vadd.f32 %v2236, %v2371
        %v2373 = vpop.f32.mrf.mxu0
        %v2374 = vpop.f32.mrf.mxu0
        %v2375 = vadd.f32 %v2237, %v2374
        %v2376 = vpop.f32.mrf.mxu0
        %2377 = vmatprep.mubr.bf16.mxu0 0
        %2378 = vmatmul.mubr.bf16.gmra.mxu0 %v2329
        %v2379 = vpop.f32.mrf.mxu0
        %v2380 = vadd.f32 %v2238, %v2379
        %v2381 = vpop.f32.mrf.mxu0
        %v2382 = vpop.f32.mrf.mxu0
        %v2383 = vadd.f32 %v2239, %v2382
        %v2384 = vpop.f32.mrf.mxu0
        %2385 = vdwg.mxu0
        %2386 = vrot.lane.b32.xlu0 %v551, 112
        %v2387 = vpop.permute.xlu0 %2386
        %2388 = vrot.lane.b32.xlu0 %v552, 112
        %v2389 = vpop.permute.xlu0 %2388
        %2390 = vrot.lane.b32.xlu0 %v551, 80
        %v2391 = vpop.permute.xlu0 %2390
        %2392 = vrot.lane.b32.xlu0 %v552, 80
        %v2393 = vpop.permute.xlu0 %2392
        %v2395 = vsel %vm593, %v2387, 0
        %v2398 = vsel %vm593, %v2389, 0
        %v2401 = vsel %vm593, %v2391, 0
        %v2404 = vsel %vm593, %v2393, 0
        %2406 = vmatprep.subr.bf16.mxu0 0
        %2407 = vmatpush1.bf16.xpose.msra.mxu0 0
        %2408 = vmatprep.subr.bf16.mxu0 0
        %2409 = vmatpush1.bf16.xpose.msra.mxu0 0
        %2410 = vmatprep.subr.bf16.mxu0 0
        %2411 = vmatpush1.bf16.xpose.msra.mxu0 0
        %2412 = vmatprep.subr.bf16.mxu0 0
        %2413 = vmatpush1.bf16.xpose.msra.mxu0 0
        %2414 = vmatprep.subr.bf16.mxu0 0
        %2415 = vmatpush1.bf16.xpose.msra.mxu0 0
        %2416 = vmatprep.subr.bf16.mxu0 0
        %2417 = vmatpush1.bf16.xpose.msra.mxu0 0
        %2418 = vmatprep.subr.bf16.mxu0 0
        %2419 = vmatpush1.bf16.xpose.msra.mxu0 %v2404
        %2420 = vmatprep.subr.bf16.mxu0 0
        %2421 = vmatpush1.bf16.xpose.msra.mxu0 %v2401
        %2422 = vmatprep.subr.bf16.mxu0 0
        %2423 = vmatpush2.bf16.xpose.msra.mxu0 0
        %2424 = vmatprep.subr.bf16.mxu0 0
        %2425 = vmatpush2.bf16.xpose.msra.mxu0 0
        %2426 = vmatprep.subr.bf16.mxu0 0
        %2427 = vmatpush2.bf16.xpose.msra.mxu0 0
        %2428 = vmatprep.subr.bf16.mxu0 0
        %2429 = vmatpush2.bf16.xpose.msra.mxu0 0
        %2430 = vmatprep.subr.bf16.mxu0 0
        %2431 = vmatpush2.bf16.xpose.msra.mxu0 0
        %2432 = vmatprep.subr.bf16.mxu0 0
        %2433 = vmatpush2.bf16.xpose.msra.mxu0 0
        %2434 = vmatprep.subr.bf16.mxu0 0
        %2435 = vmatpush2.bf16.xpose.msra.mxu0 0
        %2436 = vmatprep.subr.bf16.mxu0 0
        %2437 = vmatpush2.bf16.xpose.msra.mxu0 0
        %2438 = vmatprep.mubr.bf16.mxu0 0
        %2439 = vmatmul.mubr.bf16.gmra.mxu0 %v2395
        %v2440 = vpop.f32.mrf.mxu0
        %v2441 = vadd.f32 %v2240, %v2440
        %v2442 = vpop.f32.mrf.mxu0
        %v2443 = vpop.f32.mrf.mxu0
        %v2444 = vadd.f32 %v2241, %v2443
        %v2445 = vpop.f32.mrf.mxu0
        %2446 = vmatprep.mubr.bf16.mxu0 0
        %2447 = vmatmul.mubr.bf16.gmra.mxu0 %v2398
        %v2448 = vpop.f32.mrf.mxu0
        %v2449 = vadd.f32 %v2242, %v2448
        %v2450 = vpop.f32.mrf.mxu0
        %v2451 = vpop.f32.mrf.mxu0
        %v2452 = vadd.f32 %v2243, %v2451
        %v2453 = vpop.f32.mrf.mxu0
        %2454 = vdwg.mxu0
        %2455 = vrot.lane.b32.xlu0 %v553, 112
        %v2456 = vpop.permute.xlu0 %2455
        %2457 = vrot.lane.b32.xlu0 %v554, 112
        %v2458 = vpop.permute.xlu0 %2457
        %2459 = vrot.lane.b32.xlu0 %v553, 80
        %v2460 = vpop.permute.xlu0 %2459
        %2461 = vrot.lane.b32.xlu0 %v554, 80
        %v2462 = vpop.permute.xlu0 %2461
        %v2464 = vsel %vm593, %v2456, 0
        %v2467 = vsel %vm593, %v2458, 0
        %v2470 = vsel %vm593, %v2460, 0
        %v2473 = vsel %vm593, %v2462, 0
        %2475 = vmatprep.subr.bf16.mxu0 0
        %2476 = vmatpush1.bf16.xpose.msra.mxu0 0
        %2477 = vmatprep.subr.bf16.mxu0 0
        %2478 = vmatpush1.bf16.xpose.msra.mxu0 0
        %2479 = vmatprep.subr.bf16.mxu0 0
        %2480 = vmatpush1.bf16.xpose.msra.mxu0 0
        %2481 = vmatprep.subr.bf16.mxu0 0
        %2482 = vmatpush1.bf16.xpose.msra.mxu0 0
        %2483 = vmatprep.subr.bf16.mxu0 0
        %2484 = vmatpush1.bf16.xpose.msra.mxu0 0
        %2485 = vmatprep.subr.bf16.mxu0 0
        %2486 = vmatpush1.bf16.xpose.msra.mxu0 0
        %2487 = vmatprep.subr.bf16.mxu0 0
        %2488 = vmatpush1.bf16.xpose.msra.mxu0 %v2473
        %2489 = vmatprep.subr.bf16.mxu0 0
        %2490 = vmatpush1.bf16.xpose.msra.mxu0 %v2470
        %2491 = vmatprep.subr.bf16.mxu0 0
        %2492 = vmatpush2.bf16.xpose.msra.mxu0 0
        %2493 = vmatprep.subr.bf16.mxu0 0
        %2494 = vmatpush2.bf16.xpose.msra.mxu0 0
        %2495 = vmatprep.subr.bf16.mxu0 0
        %2496 = vmatpush2.bf16.xpose.msra.mxu0 0
        %2497 = vmatprep.subr.bf16.mxu0 0
        %2498 = vmatpush2.bf16.xpose.msra.mxu0 0
        %2499 = vmatprep.subr.bf16.mxu0 0
        %2500 = vmatpush2.bf16.xpose.msra.mxu0 0
        %2501 = vmatprep.subr.bf16.mxu0 0
        %2502 = vmatpush2.bf16.xpose.msra.mxu0 0
        %2503 = vmatprep.subr.bf16.mxu0 0
        %2504 = vmatpush2.bf16.xpose.msra.mxu0 0
        %2505 = vmatprep.subr.bf16.mxu0 0
        %2506 = vmatpush2.bf16.xpose.msra.mxu0 0
        %2507 = vmatprep.mubr.bf16.mxu0 0
        %2508 = vmatmul.mubr.bf16.gmra.mxu0 %v2464
        %v2509 = vpop.f32.mrf.mxu0
        %v2510 = vadd.f32 %v2244, %v2509
        %v2511 = vpop.f32.mrf.mxu0
        %v2512 = vpop.f32.mrf.mxu0
        %v2513 = vadd.f32 %v2245, %v2512
        %v2514 = vpop.f32.mrf.mxu0
        %2515 = vmatprep.mubr.bf16.mxu0 0
        %2516 = vmatmul.mubr.bf16.gmra.mxu0 %v2467
        %v2517 = vpop.f32.mrf.mxu0
        %v2518 = vadd.f32 %v2246, %v2517
        %v2519 = vpop.f32.mrf.mxu0
        %v2520 = vpop.f32.mrf.mxu0
        %v2521 = vadd.f32 %v2247, %v2520
        %v2522 = vpop.f32.mrf.mxu0
        %2523 = vdwg.mxu0
        %v2524 = vsel %vm425, %v2303, -inf
        %2525 = vmax.xlane.f32.xlu0 %v2524
        %v2526 = vpop.xlane.xlu0 %2525
        %v2527 = vsel %vm425, %v2306, -inf
        %2528 = vmax.xlane.f32.xlu0 %v2527
        %v2529 = vpop.xlane.xlu0 %2528
        %v2530 = vsel %vm425, %v2311, -inf
        %2531 = vmax.xlane.f32.xlu0 %v2530
        %v2532 = vpop.xlane.xlu0 %2531
        %v2533 = vsel %vm425, %v2314, -inf
        %2534 = vmax.xlane.f32.xlu0 %v2533
        %v2535 = vpop.xlane.xlu0 %2534
        %v2536 = vsel %vm425, %v2372, -inf
        %2537 = vmax.xlane.f32.xlu0 %v2536
        %v2538 = vpop.xlane.xlu0 %2537
        %v2539 = vsel %vm425, %v2375, -inf
        %2540 = vmax.xlane.f32.xlu0 %v2539
        %v2541 = vpop.xlane.xlu0 %2540
        %v2542 = vsel %vm425, %v2380, -inf
        %2543 = vmax.xlane.f32.xlu0 %v2542
        %v2544 = vpop.xlane.xlu0 %2543
        %v2545 = vsel %vm425, %v2383, -inf
        %2546 = vmax.xlane.f32.xlu0 %v2545
        %v2547 = vpop.xlane.xlu0 %2546
        %v2548 = vsel %vm425, %v2441, -inf
        %2549 = vmax.xlane.f32.xlu0 %v2548
        %v2550 = vpop.xlane.xlu0 %2549
        %v2551 = vsel %vm425, %v2444, -inf
        %2552 = vmax.xlane.f32.xlu0 %v2551
        %v2553 = vpop.xlane.xlu0 %2552
        %v2554 = vsel %vm425, %v2449, -inf
        %2555 = vmax.xlane.f32.xlu0 %v2554
        %v2556 = vpop.xlane.xlu0 %2555
        %v2557 = vsel %vm425, %v2452, -inf
        %2558 = vmax.xlane.f32.xlu0 %v2557
        %v2559 = vpop.xlane.xlu0 %2558
        %v2560 = vsel %vm425, %v2510, -inf
        %2561 = vmax.xlane.f32.xlu0 %v2560
        %v2562 = vpop.xlane.xlu0 %2561
        %v2563 = vsel %vm425, %v2513, -inf
        %2564 = vmax.xlane.f32.xlu0 %v2563
        %v2565 = vpop.xlane.xlu0 %2564
        %v2566 = vsel %vm425, %v2518, -inf
        %2567 = vmax.xlane.f32.xlu0 %v2566
        %v2568 = vpop.xlane.xlu0 %2567
        %v2569 = vsel %vm425, %v2521, -inf
        %2570 = vmax.xlane.f32.xlu0 %v2569
        %v2571 = vpop.xlane.xlu0 %2570
        %v2572 = vsub.f32 %v2303, %v2526
        %v2573 = vsub.f32 %v2306, %v2529
        %v2574 = vsub.f32 %v2311, %v2532
        %v2575 = vsub.f32 %v2314, %v2535
        %v2576 = vsub.f32 %v2372, %v2538
        %v2577 = vsub.f32 %v2375, %v2541
        %v2578 = vsub.f32 %v2380, %v2544
        %v2579 = vsub.f32 %v2383, %v2547
        %v2580 = vsub.f32 %v2441, %v2550
        %v2581 = vsub.f32 %v2444, %v2553
        %v2582 = vsub.f32 %v2449, %v2556
        %v2583 = vsub.f32 %v2452, %v2559
        %v2584 = vsub.f32 %v2510, %v2562
        %v2585 = vsub.f32 %v2513, %v2565
        %v2586 = vsub.f32 %v2518, %v2568
        %v2587 = vsub.f32 %v2521, %v2571
        %v2588 = vmul.f32 %v2572, 1.442695
        %v2589 = vpow.pop %v2588
        %v2590 = vmul.f32 %v2573, 1.442695
        %v2591 = vpow.pop %v2590
        %v2592 = vmul.f32 %v2574, 1.442695
        %v2593 = vpow.pop %v2592
        %v2594 = vmul.f32 %v2575, 1.442695
        %v2595 = vpow.pop %v2594
        %v2596 = vmul.f32 %v2576, 1.442695
        %v2597 = vpow.pop %v2596
        %v2598 = vmul.f32 %v2577, 1.442695
        %v2599 = vpow.pop %v2598
        %v2600 = vmul.f32 %v2578, 1.442695
        %v2601 = vpow.pop %v2600
        %v2602 = vmul.f32 %v2579, 1.442695
        %v2603 = vpow.pop %v2602
        %v2604 = vmul.f32 %v2580, 1.442695
        %v2605 = vpow.pop %v2604
        %v2606 = vmul.f32 %v2581, 1.442695
        %v2607 = vpow.pop %v2606
        %v2608 = vmul.f32 %v2582, 1.442695
        %v2609 = vpow.pop %v2608
        %v2610 = vmul.f32 %v2583, 1.442695
        %v2611 = vpow.pop %v2610
        %v2612 = vmul.f32 %v2584, 1.442695
        %v2613 = vpow.pop %v2612
        %v2614 = vmul.f32 %v2585, 1.442695
        %v2615 = vpow.pop %v2614
        %v2616 = vmul.f32 %v2586, 1.442695
        %v2617 = vpow.pop %v2616
        %v2618 = vmul.f32 %v2587, 1.442695
        %v2619 = vpow.pop %v2618
        %v2620 = vsel %vm425, %v2589, 0.0
        %2621 = vadd.xlane.f32.xlu0 %v2620
        %v2622 = vpop.xlane.xlu0 %2621
        %v2623 = vsel %vm425, %v2591, 0.0
        %2624 = vadd.xlane.f32.xlu0 %v2623
        %v2625 = vpop.xlane.xlu0 %2624
        %v2626 = vsel %vm425, %v2593, 0.0
        %2627 = vadd.xlane.f32.xlu0 %v2626
        %v2628 = vpop.xlane.xlu0 %2627
        %v2629 = vsel %vm425, %v2595, 0.0
        %2630 = vadd.xlane.f32.xlu0 %v2629
        %v2631 = vpop.xlane.xlu0 %2630
        %v2632 = vsel %vm425, %v2597, 0.0
        %2633 = vadd.xlane.f32.xlu0 %v2632
        %v2634 = vpop.xlane.xlu0 %2633
        %v2635 = vsel %vm425, %v2599, 0.0
        %2636 = vadd.xlane.f32.xlu0 %v2635
        %v2637 = vpop.xlane.xlu0 %2636
        %v2638 = vsel %vm425, %v2601, 0.0
        %2639 = vadd.xlane.f32.xlu0 %v2638
        %v2640 = vpop.xlane.xlu0 %2639
        %v2641 = vsel %vm425, %v2603, 0.0
        %2642 = vadd.xlane.f32.xlu0 %v2641
        %v2643 = vpop.xlane.xlu0 %2642
        %v2644 = vsel %vm425, %v2605, 0.0
        %2645 = vadd.xlane.f32.xlu0 %v2644
        %v2646 = vpop.xlane.xlu0 %2645
        %v2647 = vsel %vm425, %v2607, 0.0
        %2648 = vadd.xlane.f32.xlu0 %v2647
        %v2649 = vpop.xlane.xlu0 %2648
        %v2650 = vsel %vm425, %v2609, 0.0
        %2651 = vadd.xlane.f32.xlu0 %v2650
        %v2652 = vpop.xlane.xlu0 %2651
        %v2653 = vsel %vm425, %v2611, 0.0
        %2654 = vadd.xlane.f32.xlu0 %v2653
        %v2655 = vpop.xlane.xlu0 %2654
        %v2656 = vsel %vm425, %v2613, 0.0
        %2657 = vadd.xlane.f32.xlu0 %v2656
        %v2658 = vpop.xlane.xlu0 %2657
        %v2659 = vsel %vm425, %v2615, 0.0
        %2660 = vadd.xlane.f32.xlu0 %v2659
        %v2661 = vpop.xlane.xlu0 %2660
        %v2662 = vsel %vm425, %v2617, 0.0
        %2663 = vadd.xlane.f32.xlu0 %v2662
        %v2664 = vpop.xlane.xlu0 %2663
        %v2665 = vsel %vm425, %v2619, 0.0
        %2666 = vadd.xlane.f32.xlu0 %v2665
        %v2667 = vpop.xlane.xlu0 %2666
        %v2668 = vrcp.pop %v2622
        %v2669 = vrcp.pop %v2625
        %v2670 = vrcp.pop %v2628
        %v2671 = vrcp.pop %v2631
        %v2672 = vrcp.pop %v2634
        %v2673 = vrcp.pop %v2637
        %v2674 = vrcp.pop %v2640
        %v2675 = vrcp.pop %v2643
        %v2676 = vrcp.pop %v2646
        %v2677 = vrcp.pop %v2649
        %v2678 = vrcp.pop %v2652
        %v2679 = vrcp.pop %v2655
        %v2680 = vrcp.pop %v2658
        %v2681 = vrcp.pop %v2661
        %v2682 = vrcp.pop %v2664
        %v2683 = vrcp.pop %v2667
        %v2684 = vmul.f32 %v2589, %v2668
        %v2685 = vmul.f32 %v2591, %v2669
        %v2686 = vmul.f32 %v2593, %v2670
        %v2687 = vmul.f32 %v2595, %v2671
        %v2688 = vmul.f32 %v2597, %v2672
        %v2689 = vmul.f32 %v2599, %v2673
        %v2690 = vmul.f32 %v2601, %v2674
        %v2691 = vmul.f32 %v2603, %v2675
        %v2692 = vmul.f32 %v2605, %v2676
        %v2693 = vmul.f32 %v2607, %v2677
        %v2694 = vmul.f32 %v2609, %v2678
        %v2695 = vmul.f32 %v2611, %v2679
        %v2696 = vmul.f32 %v2613, %v2680
        %v2697 = vmul.f32 %v2615, %v2681
        %v2698 = vmul.f32 %v2617, %v2682
        %v2699 = vmul.f32 %v2619, %v2683
        %v2700 = vpack.c.bf16 %v2685, %v2684
        %v2701 = vpack.c.bf16 %v2687, %v2686
        %v2702 = vpack.c.bf16 %v2689, %v2688
        %v2703 = vpack.c.bf16 %v2691, %v2690
        %v2704 = vpack.c.bf16 %v2693, %v2692
        %v2705 = vpack.c.bf16 %v2695, %v2694
        %v2706 = vpack.c.bf16 %v2697, %v2696
        %v2707 = vpack.c.bf16 %v2699, %v2698
        %2708 = vrot.lane.b32.xlu0 %v547, 48
        %v2709 = vpop.permute.xlu0 %2708
        %2710 = vrot.lane.b32.xlu0 %v548, 48
        %v2711 = vpop.permute.xlu0 %2710
        %v2715 = vsel %vm425, %v2700, 0
        %v2718 = vsel %vm425, %v2701, 0
        %2720 = vmatprep.subr.bf16.mxu0 0
        %2721 = vmatpush1.bf16.msra.mxu0 0
        %2722 = vmatprep.subr.bf16.mxu0 0
        %2723 = vmatpush1.bf16.msra.mxu0 0
        %2724 = vmatprep.subr.bf16.mxu0 0
        %2725 = vmatpush1.bf16.msra.mxu0 0
        %2726 = vmatprep.subr.bf16.mxu0 0
        %2727 = vmatpush1.bf16.msra.mxu0 0
        %2728 = vmatprep.subr.bf16.mxu0 0
        %2729 = vmatpush1.bf16.msra.mxu0 0
        %2730 = vmatprep.subr.bf16.mxu0 0
        %2731 = vmatpush1.bf16.msra.mxu0 0
        %2732 = vmatprep.subr.bf16.mxu0 0
        %2733 = vmatpush1.bf16.msra.mxu0 %v2711
        %2734 = vmatprep.subr.bf16.mxu0 0
        %2735 = vmatpush1.bf16.msra.mxu0 %v2709
        %2736 = vmatprep.subr.bf16.mxu0 0
        %2737 = vmatpush2.bf16.msra.mxu0 0
        %2738 = vmatprep.subr.bf16.mxu0 0
        %2739 = vmatpush2.bf16.msra.mxu0 0
        %2740 = vmatprep.subr.bf16.mxu0 0
        %2741 = vmatpush2.bf16.msra.mxu0 0
        %2742 = vmatprep.subr.bf16.mxu0 0
        %2743 = vmatpush2.bf16.msra.mxu0 0
        %2744 = vmatprep.subr.bf16.mxu0 0
        %2745 = vmatpush2.bf16.msra.mxu0 0
        %2746 = vmatprep.subr.bf16.mxu0 0
        %2747 = vmatpush2.bf16.msra.mxu0 0
        %2748 = vmatprep.subr.bf16.mxu0 0
        %2749 = vmatpush2.bf16.msra.mxu0 0
        %2750 = vmatprep.subr.bf16.mxu0 0
        %2751 = vmatpush2.bf16.msra.mxu0 0
        %2752 = vmatprep.mubr.bf16.mxu0 0
        %2753 = vmatmul.mubr.bf16.gmra.mxu0 %v2715
        %v2754 = vpop.f32.mrf.mxu0
        %v2755 = vadd.f32 0.0, %v2754
        %v2756 = vpop.f32.mrf.mxu0
        %v2757 = vpop.f32.mrf.mxu0
        %v2758 = vadd.f32 0.0, %v2757
        %v2759 = vpop.f32.mrf.mxu0
        %2760 = vmatprep.mubr.bf16.mxu0 0
        %2761 = vmatmul.mubr.bf16.gmra.mxu0 %v2718
        %v2762 = vpop.f32.mrf.mxu0
        %v2763 = vadd.f32 0.0, %v2762
        %v2764 = vpop.f32.mrf.mxu0
        %v2765 = vpop.f32.mrf.mxu0
        %v2766 = vadd.f32 0.0, %v2765
        %v2767 = vpop.f32.mrf.mxu0
        %2768 = vdwg.mxu0
        %2769 = vrot.lane.b32.xlu0 %v549, 48
        %v2770 = vpop.permute.xlu0 %2769
        %2771 = vrot.lane.b32.xlu0 %v550, 48
        %v2772 = vpop.permute.xlu0 %2771
        %v2776 = vsel %vm425, %v2702, 0
        %v2779 = vsel %vm425, %v2703, 0
        %2781 = vmatprep.subr.bf16.mxu0 0
        %2782 = vmatpush1.bf16.msra.mxu0 0
        %2783 = vmatprep.subr.bf16.mxu0 0
        %2784 = vmatpush1.bf16.msra.mxu0 0
        %2785 = vmatprep.subr.bf16.mxu0 0
        %2786 = vmatpush1.bf16.msra.mxu0 0
        %2787 = vmatprep.subr.bf16.mxu0 0
        %2788 = vmatpush1.bf16.msra.mxu0 0
        %2789 = vmatprep.subr.bf16.mxu0 0
        %2790 = vmatpush1.bf16.msra.mxu0 0
        %2791 = vmatprep.subr.bf16.mxu0 0
        %2792 = vmatpush1.bf16.msra.mxu0 0
        %2793 = vmatprep.subr.bf16.mxu0 0
        %2794 = vmatpush1.bf16.msra.mxu0 %v2772
        %2795 = vmatprep.subr.bf16.mxu0 0
        %2796 = vmatpush1.bf16.msra.mxu0 %v2770
        %2797 = vmatprep.subr.bf16.mxu0 0
        %2798 = vmatpush2.bf16.msra.mxu0 0
        %2799 = vmatprep.subr.bf16.mxu0 0
        %2800 = vmatpush2.bf16.msra.mxu0 0
        %2801 = vmatprep.subr.bf16.mxu0 0
        %2802 = vmatpush2.bf16.msra.mxu0 0
        %2803 = vmatprep.subr.bf16.mxu0 0
        %2804 = vmatpush2.bf16.msra.mxu0 0
        %2805 = vmatprep.subr.bf16.mxu0 0
        %2806 = vmatpush2.bf16.msra.mxu0 0
        %2807 = vmatprep.subr.bf16.mxu0 0
        %2808 = vmatpush2.bf16.msra.mxu0 0
        %2809 = vmatprep.subr.bf16.mxu0 0
        %2810 = vmatpush2.bf16.msra.mxu0 0
        %2811 = vmatprep.subr.bf16.mxu0 0
        %2812 = vmatpush2.bf16.msra.mxu0 0
        %2813 = vmatprep.mubr.bf16.mxu0 0
        %2814 = vmatmul.mubr.bf16.gmra.mxu0 %v2776
        %v2815 = vpop.f32.mrf.mxu0
        %v2816 = vadd.f32 0.0, %v2815
        %v2817 = vpop.f32.mrf.mxu0
        %v2818 = vpop.f32.mrf.mxu0
        %v2819 = vadd.f32 0.0, %v2818
        %v2820 = vpop.f32.mrf.mxu0
        %2821 = vmatprep.mubr.bf16.mxu0 0
        %2822 = vmatmul.mubr.bf16.gmra.mxu0 %v2779
        %v2823 = vpop.f32.mrf.mxu0
        %v2824 = vadd.f32 0.0, %v2823
        %v2825 = vpop.f32.mrf.mxu0
        %v2826 = vpop.f32.mrf.mxu0
        %v2827 = vadd.f32 0.0, %v2826
        %v2828 = vpop.f32.mrf.mxu0
        %2829 = vdwg.mxu0
        %2830 = vrot.lane.b32.xlu0 %v551, 48
        %v2831 = vpop.permute.xlu0 %2830
        %2832 = vrot.lane.b32.xlu0 %v552, 48
        %v2833 = vpop.permute.xlu0 %2832
        %v2837 = vsel %vm425, %v2704, 0
        %v2840 = vsel %vm425, %v2705, 0
        %2842 = vmatprep.subr.bf16.mxu0 0
        %2843 = vmatpush1.bf16.msra.mxu0 0
        %2844 = vmatprep.subr.bf16.mxu0 0
        %2845 = vmatpush1.bf16.msra.mxu0 0
        %2846 = vmatprep.subr.bf16.mxu0 0
        %2847 = vmatpush1.bf16.msra.mxu0 0
        %2848 = vmatprep.subr.bf16.mxu0 0
        %2849 = vmatpush1.bf16.msra.mxu0 0
        %2850 = vmatprep.subr.bf16.mxu0 0
        %2851 = vmatpush1.bf16.msra.mxu0 0
        %2852 = vmatprep.subr.bf16.mxu0 0
        %2853 = vmatpush1.bf16.msra.mxu0 0
        %2854 = vmatprep.subr.bf16.mxu0 0
        %2855 = vmatpush1.bf16.msra.mxu0 %v2833
        %2856 = vmatprep.subr.bf16.mxu0 0
        %2857 = vmatpush1.bf16.msra.mxu0 %v2831
        %2858 = vmatprep.subr.bf16.mxu0 0
        %2859 = vmatpush2.bf16.msra.mxu0 0
        %2860 = vmatprep.subr.bf16.mxu0 0
        %2861 = vmatpush2.bf16.msra.mxu0 0
        %2862 = vmatprep.subr.bf16.mxu0 0
        %2863 = vmatpush2.bf16.msra.mxu0 0
        %2864 = vmatprep.subr.bf16.mxu0 0
        %2865 = vmatpush2.bf16.msra.mxu0 0
        %2866 = vmatprep.subr.bf16.mxu0 0
        %2867 = vmatpush2.bf16.msra.mxu0 0
        %2868 = vmatprep.subr.bf16.mxu0 0
        %2869 = vmatpush2.bf16.msra.mxu0 0
        %2870 = vmatprep.subr.bf16.mxu0 0
        %2871 = vmatpush2.bf16.msra.mxu0 0
        %2872 = vmatprep.subr.bf16.mxu0 0
        %2873 = vmatpush2.bf16.msra.mxu0 0
        %2874 = vmatprep.mubr.bf16.mxu0 0
        %2875 = vmatmul.mubr.bf16.gmra.mxu0 %v2837
        %v2876 = vpop.f32.mrf.mxu0
        %v2877 = vadd.f32 0.0, %v2876
        %v2878 = vpop.f32.mrf.mxu0
        %v2879 = vpop.f32.mrf.mxu0
        %v2880 = vadd.f32 0.0, %v2879
        %v2881 = vpop.f32.mrf.mxu0
        %2882 = vmatprep.mubr.bf16.mxu0 0
        %2883 = vmatmul.mubr.bf16.gmra.mxu0 %v2840
        %v2884 = vpop.f32.mrf.mxu0
        %v2885 = vadd.f32 0.0, %v2884
        %v2886 = vpop.f32.mrf.mxu0
        %v2887 = vpop.f32.mrf.mxu0
        %v2888 = vadd.f32 0.0, %v2887
        %v2889 = vpop.f32.mrf.mxu0
        %2890 = vdwg.mxu0
        %2891 = vrot.lane.b32.xlu0 %v553, 48
        %v2892 = vpop.permute.xlu0 %2891
        %2893 = vrot.lane.b32.xlu0 %v554, 48
        %v2894 = vpop.permute.xlu0 %2893
        %v2898 = vsel %vm425, %v2706, 0
        %v2901 = vsel %vm425, %v2707, 0
        %2903 = vmatprep.subr.bf16.mxu0 0
        %2904 = vmatpush1.bf16.msra.mxu0 0
        %2905 = vmatprep.subr.bf16.mxu0 0
        %2906 = vmatpush1.bf16.msra.mxu0 0
        %2907 = vmatprep.subr.bf16.mxu0 0
        %2908 = vmatpush1.bf16.msra.mxu0 0
        %2909 = vmatprep.subr.bf16.mxu0 0
        %2910 = vmatpush1.bf16.msra.mxu0 0
        %2911 = vmatprep.subr.bf16.mxu0 0
        %2912 = vmatpush1.bf16.msra.mxu0 0
        %2913 = vmatprep.subr.bf16.mxu0 0
        %2914 = vmatpush1.bf16.msra.mxu0 0
        %2915 = vmatprep.subr.bf16.mxu0 0
        %2916 = vmatpush1.bf16.msra.mxu0 %v2894
        %2917 = vmatprep.subr.bf16.mxu0 0
        %2918 = vmatpush1.bf16.msra.mxu0 %v2892
        %2919 = vmatprep.subr.bf16.mxu0 0
        %2920 = vmatpush2.bf16.msra.mxu0 0
        %2921 = vmatprep.subr.bf16.mxu0 0
        %2922 = vmatpush2.bf16.msra.mxu0 0
        %2923 = vmatprep.subr.bf16.mxu0 0
        %2924 = vmatpush2.bf16.msra.mxu0 0
        %2925 = vmatprep.subr.bf16.mxu0 0
        %2926 = vmatpush2.bf16.msra.mxu0 0
        %2927 = vmatprep.subr.bf16.mxu0 0
        %2928 = vmatpush2.bf16.msra.mxu0 0
        %2929 = vmatprep.subr.bf16.mxu0 0
        %2930 = vmatpush2.bf16.msra.mxu0 0
        %2931 = vmatprep.subr.bf16.mxu0 0
        %2932 = vmatpush2.bf16.msra.mxu0 0
        %2933 = vmatprep.subr.bf16.mxu0 0
        %2934 = vmatpush2.bf16.msra.mxu0 0
        %2935 = vmatprep.mubr.bf16.mxu0 0
        %2936 = vmatmul.mubr.bf16.gmra.mxu0 %v2898
        %v2937 = vpop.f32.mrf.mxu0
        %v2938 = vadd.f32 0.0, %v2937
        %v2939 = vpop.f32.mrf.mxu0
        %v2940 = vpop.f32.mrf.mxu0
        %v2941 = vadd.f32 0.0, %v2940
        %v2942 = vpop.f32.mrf.mxu0
        %2943 = vmatprep.mubr.bf16.mxu0 0
        %2944 = vmatmul.mubr.bf16.gmra.mxu0 %v2901
        %v2945 = vpop.f32.mrf.mxu0
        %v2946 = vadd.f32 0.0, %v2945
        %v2947 = vpop.f32.mrf.mxu0
        %v2948 = vpop.f32.mrf.mxu0
        %v2949 = vadd.f32 0.0, %v2948
        %v2950 = vpop.f32.mrf.mxu0
        %2951 = vdwg.mxu0
        %v2952 = vpack.c.bf16 %v2758, %v2755
        %v2953 = vpack.c.bf16 %v2766, %v2763
        %v2954 = vpack.c.bf16 %v2819, %v2816
        %v2955 = vpack.c.bf16 %v2827, %v2824
        %v2956 = vpack.c.bf16 %v2880, %v2877
        %v2957 = vpack.c.bf16 %v2888, %v2885
        %v2958 = vpack.c.bf16 %v2941, %v2938
        %v2959 = vpack.c.bf16 %v2949, %v2946
        %v2968 = vunpack.c.l.b16 %v2952
        %v2969 = vunpack.c.h.b16 %v2952
        %v2970 = vunpack.c.l.b16 %v2953
        %v2971 = vunpack.c.h.b16 %v2953
        %v2972 = vunpack.c.l.b16 %v2954
        %v2973 = vunpack.c.h.b16 %v2954
        %v2974 = vunpack.c.l.b16 %v2955
        %v2975 = vunpack.c.h.b16 %v2955
        %v2976 = vunpack.c.l.b16 %v2956
        %v2977 = vunpack.c.h.b16 %v2956
        %v2978 = vunpack.c.l.b16 %v2957
        %v2979 = vunpack.c.h.b16 %v2957
        %v2980 = vunpack.c.l.b16 %v2958
        %v2981 = vunpack.c.h.b16 %v2958
        %v2982 = vunpack.c.l.b16 %v2959
        %v2983 = vunpack.c.h.b16 %v2959
        %v2984 = vpack.c.b16 %v2968, %v2968
        %v2985 = vpack.c.b16 %v2969, %v2969
        %v2986 = vpack.c.b16 %v2970, %v2970
        %v2987 = vpack.c.b16 %v2971, %v2971
        %v2988 = vpack.c.b16 %v2972, %v2972
        %v2989 = vpack.c.b16 %v2973, %v2973
        %v2990 = vpack.c.b16 %v2974, %v2974
        %v2991 = vpack.c.b16 %v2975, %v2975
        %v2992 = vpack.c.b16 %v2976, %v2976
        %v2993 = vpack.c.b16 %v2977, %v2977
        %v2994 = vpack.c.b16 %v2978, %v2978
        %v2995 = vpack.c.b16 %v2979, %v2979
        %v2996 = vpack.c.b16 %v2980, %v2980
        %v2997 = vpack.c.b16 %v2981, %v2981
        %v2998 = vpack.c.b16 %v2982, %v2982
        %v2999 = vpack.c.b16 %v2983, %v2983
        %3000 = vrot.lane.b32.xlu0 %v2984, 16
        %v3001 = vpop.permute.xlu0 %3000
        %3002 = vrot.lane.b32.xlu0 %v2985, 16
        %v3003 = vpop.permute.xlu0 %3002
        %3004 = vrot.lane.b32.xlu0 %v2986, 16
        %v3005 = vpop.permute.xlu0 %3004
        %3006 = vrot.lane.b32.xlu0 %v2987, 16
        %v3007 = vpop.permute.xlu0 %3006
        %3008 = vrot.lane.b32.xlu0 %v2988, 16
        %v3009 = vpop.permute.xlu0 %3008
        %3010 = vrot.lane.b32.xlu0 %v2989, 16
        %v3011 = vpop.permute.xlu0 %3010
        %3012 = vrot.lane.b32.xlu0 %v2990, 16
        %v3013 = vpop.permute.xlu0 %3012
        %3014 = vrot.lane.b32.xlu0 %v2991, 16
        %v3015 = vpop.permute.xlu0 %3014
        %3016 = vrot.lane.b32.xlu0 %v2992, 16
        %v3017 = vpop.permute.xlu0 %3016
        %3018 = vrot.lane.b32.xlu0 %v2993, 16
        %v3019 = vpop.permute.xlu0 %3018
        %3020 = vrot.lane.b32.xlu0 %v2994, 16
        %v3021 = vpop.permute.xlu0 %3020
        %3022 = vrot.lane.b32.xlu0 %v2995, 16
        %v3023 = vpop.permute.xlu0 %3022
        %3024 = vrot.lane.b32.xlu0 %v2996, 16
        %v3025 = vpop.permute.xlu0 %3024
        %3026 = vrot.lane.b32.xlu0 %v2997, 16
        %v3027 = vpop.permute.xlu0 %3026
        %3028 = vrot.lane.b32.xlu0 %v2998, 16
        %v3029 = vpop.permute.xlu0 %3028
        %3030 = vrot.lane.b32.xlu0 %v2999, 16
        %v3031 = vpop.permute.xlu0 %3030
        %vm3048 = vcmask 191616
        %3049 = vst.msk [vmem:[#allocation2] sm:$0xf] %vm3048, %v3001
        %3050 = vst.msk [vmem:[#allocation2 + $0x4] sm:$0xf] %vm3048, %v3003
        %3051 = vst.msk [vmem:[#allocation2 + $0x8] sm:$0xf] %vm3048, %v3005
        %3052 = vst.msk [vmem:[#allocation2 + $0xc] sm:$0xf] %vm3048, %v3007
        %3053 = vst.msk [vmem:[#allocation2 + $0x10] sm:$0xf] %vm3048, %v3009
        %3054 = vst.msk [vmem:[#allocation2 + $0x14] sm:$0xf] %vm3048, %v3011
        %3055 = vst.msk [vmem:[#allocation2 + $0x18] sm:$0xf] %vm3048, %v3013
        %3056 = vst.msk [vmem:[#allocation2 + $0x1c] sm:$0xf] %vm3048, %v3015
        %3057 = vst.msk [vmem:[#allocation2 + $0x20] sm:$0xf] %vm3048, %v3017
        %3058 = vst.msk [vmem:[#allocation2 + $0x24] sm:$0xf] %vm3048, %v3019
        %3059 = vst.msk [vmem:[#allocation2 + $0x28] sm:$0xf] %vm3048, %v3021
        %3060 = vst.msk [vmem:[#allocation2 + $0x2c] sm:$0xf] %vm3048, %v3023
        %3061 = vst.msk [vmem:[#allocation2 + $0x30] sm:$0xf] %vm3048, %v3025
        %3062 = vst.msk [vmem:[#allocation2 + $0x34] sm:$0xf] %vm3048, %v3027
        %3063 = vst.msk [vmem:[#allocation2 + $0x38] sm:$0xf] %vm3048, %v3029
        %3064 = vst.msk [vmem:[#allocation2 + $0x3c] sm:$0xf] %vm3048, %v3031
        %s3065 = scalar_lea.vmem [#allocation8], 192
        %v3066 = vld [vmem:[%s3065] sm:$0xf]
        %v3067 = vld [vmem:[%s3065 + $0x4] sm:$0xf]
        %v3068 = vld [vmem:[%s3065 + $0x8] sm:$0xf]
        %v3069 = vld [vmem:[%s3065 + $0xc] sm:$0xf]
        %v3070 = vld [vmem:[%s3065 + $0x10] sm:$0xf]
        %v3071 = vld [vmem:[%s3065 + $0x14] sm:$0xf]
        %v3072 = vld [vmem:[%s3065 + $0x18] sm:$0xf]
        %v3073 = vld [vmem:[%s3065 + $0x1c] sm:$0xf]
        %v3074 = vld [vmem:[%s3065 + $0x20] sm:$0xf]
        %v3075 = vld [vmem:[%s3065 + $0x24] sm:$0xf]
        %v3076 = vld [vmem:[%s3065 + $0x28] sm:$0xf]
        %v3077 = vld [vmem:[%s3065 + $0x2c] sm:$0xf]
        %v3078 = vld [vmem:[%s3065 + $0x30] sm:$0xf]
        %v3079 = vld [vmem:[%s3065 + $0x34] sm:$0xf]
        %v3080 = vld [vmem:[%s3065 + $0x38] sm:$0xf]
        %v3081 = vld [vmem:[%s3065 + $0x3c] sm:$0xf]
        %v3082 = vunpack.c.l.bf16 %v3066
        %v3083 = vunpack.c.l.bf16 %v3067
        %v3084 = vunpack.c.l.bf16 %v3068
        %v3085 = vunpack.c.l.bf16 %v3069
        %v3086 = vunpack.c.l.bf16 %v3070
        %v3087 = vunpack.c.l.bf16 %v3071
        %v3088 = vunpack.c.l.bf16 %v3072
        %v3089 = vunpack.c.l.bf16 %v3073
        %v3090 = vunpack.c.l.bf16 %v3074
        %v3091 = vunpack.c.l.bf16 %v3075
        %v3092 = vunpack.c.l.bf16 %v3076
        %v3093 = vunpack.c.l.bf16 %v3077
        %v3094 = vunpack.c.l.bf16 %v3078
        %v3095 = vunpack.c.l.bf16 %v3079
        %v3096 = vunpack.c.l.bf16 %v3080
        %v3097 = vunpack.c.l.bf16 %v3081
        %3098 = vrot.lane.b32.xlu0 %v547, 104
        %v3099 = vpop.permute.xlu0 %3098
        %3100 = vrot.lane.b32.xlu0 %v548, 104
        %v3101 = vpop.permute.xlu0 %3100
        %3102 = vrot.lane.b32.xlu0 %v547, 72
        %v3103 = vpop.permute.xlu0 %3102
        %3104 = vrot.lane.b32.xlu0 %v548, 72
        %v3105 = vpop.permute.xlu0 %3104
        %v3107 = vsel %vm593, %v3099, 0
        %v3110 = vsel %vm593, %v3101, 0
        %v3113 = vsel %vm593, %v3103, 0
        %v3116 = vsel %vm593, %v3105, 0
        %3118 = vmatprep.subr.bf16.mxu0 0
        %3119 = vmatpush1.bf16.xpose.msra.mxu0 0
        %3120 = vmatprep.subr.bf16.mxu0 0
        %3121 = vmatpush1.bf16.xpose.msra.mxu0 0
        %3122 = vmatprep.subr.bf16.mxu0 0
        %3123 = vmatpush1.bf16.xpose.msra.mxu0 0
        %3124 = vmatprep.subr.bf16.mxu0 0
        %3125 = vmatpush1.bf16.xpose.msra.mxu0 0
        %3126 = vmatprep.subr.bf16.mxu0 0
        %3127 = vmatpush1.bf16.xpose.msra.mxu0 0
        %3128 = vmatprep.subr.bf16.mxu0 0
        %3129 = vmatpush1.bf16.xpose.msra.mxu0 0
        %3130 = vmatprep.subr.bf16.mxu0 0
        %3131 = vmatpush1.bf16.xpose.msra.mxu0 %v3116
        %3132 = vmatprep.subr.bf16.mxu0 0
        %3133 = vmatpush1.bf16.xpose.msra.mxu0 %v3113
        %3134 = vmatprep.subr.bf16.mxu0 0
        %3135 = vmatpush2.bf16.xpose.msra.mxu0 0
        %3136 = vmatprep.subr.bf16.mxu0 0
        %3137 = vmatpush2.bf16.xpose.msra.mxu0 0
        %3138 = vmatprep.subr.bf16.mxu0 0
        %3139 = vmatpush2.bf16.xpose.msra.mxu0 0
        %3140 = vmatprep.subr.bf16.mxu0 0
        %3141 = vmatpush2.bf16.xpose.msra.mxu0 0
        %3142 = vmatprep.subr.bf16.mxu0 0
        %3143 = vmatpush2.bf16.xpose.msra.mxu0 0
        %3144 = vmatprep.subr.bf16.mxu0 0
        %3145 = vmatpush2.bf16.xpose.msra.mxu0 0
        %3146 = vmatprep.subr.bf16.mxu0 0
        %3147 = vmatpush2.bf16.xpose.msra.mxu0 0
        %3148 = vmatprep.subr.bf16.mxu0 0
        %3149 = vmatpush2.bf16.xpose.msra.mxu0 0
        %3150 = vmatprep.mubr.bf16.mxu0 0
        %3151 = vmatmul.mubr.bf16.gmra.mxu0 %v3107
        %v3152 = vpop.f32.mrf.mxu0
        %v3153 = vadd.f32 %v3082, %v3152
        %v3154 = vpop.f32.mrf.mxu0
        %v3155 = vpop.f32.mrf.mxu0
        %v3156 = vadd.f32 %v3083, %v3155
        %v3157 = vpop.f32.mrf.mxu0
        %3158 = vmatprep.mubr.bf16.mxu0 0
        %3159 = vmatmul.mubr.bf16.gmra.mxu0 %v3110
        %v3160 = vpop.f32.mrf.mxu0
        %v3161 = vadd.f32 %v3084, %v3160
        %v3162 = vpop.f32.mrf.mxu0
        %v3163 = vpop.f32.mrf.mxu0
        %v3164 = vadd.f32 %v3085, %v3163
        %v3165 = vpop.f32.mrf.mxu0
        %3166 = vdwg.mxu0
        %3167 = vrot.lane.b32.xlu0 %v549, 104
        %v3168 = vpop.permute.xlu0 %3167
        %3169 = vrot.lane.b32.xlu0 %v550, 104
        %v3170 = vpop.permute.xlu0 %3169
        %3171 = vrot.lane.b32.xlu0 %v549, 72
        %v3172 = vpop.permute.xlu0 %3171
        %3173 = vrot.lane.b32.xlu0 %v550, 72
        %v3174 = vpop.permute.xlu0 %3173
        %v3176 = vsel %vm593, %v3168, 0
        %v3179 = vsel %vm593, %v3170, 0
        %v3182 = vsel %vm593, %v3172, 0
        %v3185 = vsel %vm593, %v3174, 0
        %3187 = vmatprep.subr.bf16.mxu0 0
        %3188 = vmatpush1.bf16.xpose.msra.mxu0 0
        %3189 = vmatprep.subr.bf16.mxu0 0
        %3190 = vmatpush1.bf16.xpose.msra.mxu0 0
        %3191 = vmatprep.subr.bf16.mxu0 0
        %3192 = vmatpush1.bf16.xpose.msra.mxu0 0
        %3193 = vmatprep.subr.bf16.mxu0 0
        %3194 = vmatpush1.bf16.xpose.msra.mxu0 0
        %3195 = vmatprep.subr.bf16.mxu0 0
        %3196 = vmatpush1.bf16.xpose.msra.mxu0 0
        %3197 = vmatprep.subr.bf16.mxu0 0
        %3198 = vmatpush1.bf16.xpose.msra.mxu0 0
        %3199 = vmatprep.subr.bf16.mxu0 0
        %3200 = vmatpush1.bf16.xpose.msra.mxu0 %v3185
        %3201 = vmatprep.subr.bf16.mxu0 0
        %3202 = vmatpush1.bf16.xpose.msra.mxu0 %v3182
        %3203 = vmatprep.subr.bf16.mxu0 0
        %3204 = vmatpush2.bf16.xpose.msra.mxu0 0
        %3205 = vmatprep.subr.bf16.mxu0 0
        %3206 = vmatpush2.bf16.xpose.msra.mxu0 0
        %3207 = vmatprep.subr.bf16.mxu0 0
        %3208 = vmatpush2.bf16.xpose.msra.mxu0 0
        %3209 = vmatprep.subr.bf16.mxu0 0
        %3210 = vmatpush2.bf16.xpose.msra.mxu0 0
        %3211 = vmatprep.subr.bf16.mxu0 0
        %3212 = vmatpush2.bf16.xpose.msra.mxu0 0
        %3213 = vmatprep.subr.bf16.mxu0 0
        %3214 = vmatpush2.bf16.xpose.msra.mxu0 0
        %3215 = vmatprep.subr.bf16.mxu0 0
        %3216 = vmatpush2.bf16.xpose.msra.mxu0 0
        %3217 = vmatprep.subr.bf16.mxu0 0
        %3218 = vmatpush2.bf16.xpose.msra.mxu0 0
        %3219 = vmatprep.mubr.bf16.mxu0 0
        %3220 = vmatmul.mubr.bf16.gmra.mxu0 %v3176
        %v3221 = vpop.f32.mrf.mxu0
        %v3222 = vadd.f32 %v3086, %v3221
        %v3223 = vpop.f32.mrf.mxu0
        %v3224 = vpop.f32.mrf.mxu0
        %v3225 = vadd.f32 %v3087, %v3224
        %v3226 = vpop.f32.mrf.mxu0
        %3227 = vmatprep.mubr.bf16.mxu0 0
        %3228 = vmatmul.mubr.bf16.gmra.mxu0 %v3179
        %v3229 = vpop.f32.mrf.mxu0
        %v3230 = vadd.f32 %v3088, %v3229
        %v3231 = vpop.f32.mrf.mxu0
        %v3232 = vpop.f32.mrf.mxu0
        %v3233 = vadd.f32 %v3089, %v3232
        %v3234 = vpop.f32.mrf.mxu0
        %3235 = vdwg.mxu0
        %3236 = vrot.lane.b32.xlu0 %v551, 104
        %v3237 = vpop.permute.xlu0 %3236
        %3238 = vrot.lane.b32.xlu0 %v552, 104
        %v3239 = vpop.permute.xlu0 %3238
        %3240 = vrot.lane.b32.xlu0 %v551, 72
        %v3241 = vpop.permute.xlu0 %3240
        %3242 = vrot.lane.b32.xlu0 %v552, 72
        %v3243 = vpop.permute.xlu0 %3242
        %v3245 = vsel %vm593, %v3237, 0
        %v3248 = vsel %vm593, %v3239, 0
        %v3251 = vsel %vm593, %v3241, 0
        %v3254 = vsel %vm593, %v3243, 0
        %3256 = vmatprep.subr.bf16.mxu0 0
        %3257 = vmatpush1.bf16.xpose.msra.mxu0 0
        %3258 = vmatprep.subr.bf16.mxu0 0
        %3259 = vmatpush1.bf16.xpose.msra.mxu0 0
        %3260 = vmatprep.subr.bf16.mxu0 0
        %3261 = vmatpush1.bf16.xpose.msra.mxu0 0
        %3262 = vmatprep.subr.bf16.mxu0 0
        %3263 = vmatpush1.bf16.xpose.msra.mxu0 0
        %3264 = vmatprep.subr.bf16.mxu0 0
        %3265 = vmatpush1.bf16.xpose.msra.mxu0 0
        %3266 = vmatprep.subr.bf16.mxu0 0
        %3267 = vmatpush1.bf16.xpose.msra.mxu0 0
        %3268 = vmatprep.subr.bf16.mxu0 0
        %3269 = vmatpush1.bf16.xpose.msra.mxu0 %v3254
        %3270 = vmatprep.subr.bf16.mxu0 0
        %3271 = vmatpush1.bf16.xpose.msra.mxu0 %v3251
        %3272 = vmatprep.subr.bf16.mxu0 0
        %3273 = vmatpush2.bf16.xpose.msra.mxu0 0
        %3274 = vmatprep.subr.bf16.mxu0 0
        %3275 = vmatpush2.bf16.xpose.msra.mxu0 0
        %3276 = vmatprep.subr.bf16.mxu0 0
        %3277 = vmatpush2.bf16.xpose.msra.mxu0 0
        %3278 = vmatprep.subr.bf16.mxu0 0
        %3279 = vmatpush2.bf16.xpose.msra.mxu0 0
        %3280 = vmatprep.subr.bf16.mxu0 0
        %3281 = vmatpush2.bf16.xpose.msra.mxu0 0
        %3282 = vmatprep.subr.bf16.mxu0 0
        %3283 = vmatpush2.bf16.xpose.msra.mxu0 0
        %3284 = vmatprep.subr.bf16.mxu0 0
        %3285 = vmatpush2.bf16.xpose.msra.mxu0 0
        %3286 = vmatprep.subr.bf16.mxu0 0
        %3287 = vmatpush2.bf16.xpose.msra.mxu0 0
        %3288 = vmatprep.mubr.bf16.mxu0 0
        %3289 = vmatmul.mubr.bf16.gmra.mxu0 %v3245
        %v3290 = vpop.f32.mrf.mxu0
        %v3291 = vadd.f32 %v3090, %v3290
        %v3292 = vpop.f32.mrf.mxu0
        %v3293 = vpop.f32.mrf.mxu0
        %v3294 = vadd.f32 %v3091, %v3293
        %v3295 = vpop.f32.mrf.mxu0
        %3296 = vmatprep.mubr.bf16.mxu0 0
        %3297 = vmatmul.mubr.bf16.gmra.mxu0 %v3248
        %v3298 = vpop.f32.mrf.mxu0
        %v3299 = vadd.f32 %v3092, %v3298
        %v3300 = vpop.f32.mrf.mxu0
        %v3301 = vpop.f32.mrf.mxu0
        %v3302 = vadd.f32 %v3093, %v3301
        %v3303 = vpop.f32.mrf.mxu0
        %3304 = vdwg.mxu0
        %3305 = vrot.lane.b32.xlu0 %v553, 104
        %v3306 = vpop.permute.xlu0 %3305
        %3307 = vrot.lane.b32.xlu0 %v554, 104
        %v3308 = vpop.permute.xlu0 %3307
        %3309 = vrot.lane.b32.xlu0 %v553, 72
        %v3310 = vpop.permute.xlu0 %3309
        %3311 = vrot.lane.b32.xlu0 %v554, 72
        %v3312 = vpop.permute.xlu0 %3311
        %v3314 = vsel %vm593, %v3306, 0
        %v3317 = vsel %vm593, %v3308, 0
        %v3320 = vsel %vm593, %v3310, 0
        %v3323 = vsel %vm593, %v3312, 0
        %3325 = vmatprep.subr.bf16.mxu0 0
        %3326 = vmatpush1.bf16.xpose.msra.mxu0 0
        %3327 = vmatprep.subr.bf16.mxu0 0
        %3328 = vmatpush1.bf16.xpose.msra.mxu0 0
        %3329 = vmatprep.subr.bf16.mxu0 0
        %3330 = vmatpush1.bf16.xpose.msra.mxu0 0
        %3331 = vmatprep.subr.bf16.mxu0 0
        %3332 = vmatpush1.bf16.xpose.msra.mxu0 0
        %3333 = vmatprep.subr.bf16.mxu0 0
        %3334 = vmatpush1.bf16.xpose.msra.mxu0 0
        %3335 = vmatprep.subr.bf16.mxu0 0
        %3336 = vmatpush1.bf16.xpose.msra.mxu0 0
        %3337 = vmatprep.subr.bf16.mxu0 0
        %3338 = vmatpush1.bf16.xpose.msra.mxu0 %v3323
        %3339 = vmatprep.subr.bf16.mxu0 0
        %3340 = vmatpush1.bf16.xpose.msra.mxu0 %v3320
        %3341 = vmatprep.subr.bf16.mxu0 0
        %3342 = vmatpush2.bf16.xpose.msra.mxu0 0
        %3343 = vmatprep.subr.bf16.mxu0 0
        %3344 = vmatpush2.bf16.xpose.msra.mxu0 0
        %3345 = vmatprep.subr.bf16.mxu0 0
        %3346 = vmatpush2.bf16.xpose.msra.mxu0 0
        %3347 = vmatprep.subr.bf16.mxu0 0
        %3348 = vmatpush2.bf16.xpose.msra.mxu0 0
        %3349 = vmatprep.subr.bf16.mxu0 0
        %3350 = vmatpush2.bf16.xpose.msra.mxu0 0
        %3351 = vmatprep.subr.bf16.mxu0 0
        %3352 = vmatpush2.bf16.xpose.msra.mxu0 0
        %3353 = vmatprep.subr.bf16.mxu0 0
        %3354 = vmatpush2.bf16.xpose.msra.mxu0 0
        %3355 = vmatprep.subr.bf16.mxu0 0
        %3356 = vmatpush2.bf16.xpose.msra.mxu0 0
        %3357 = vmatprep.mubr.bf16.mxu0 0
        %3358 = vmatmul.mubr.bf16.gmra.mxu0 %v3314
        %v3359 = vpop.f32.mrf.mxu0
        %v3360 = vadd.f32 %v3094, %v3359
        %v3361 = vpop.f32.mrf.mxu0
        %v3362 = vpop.f32.mrf.mxu0
        %v3363 = vadd.f32 %v3095, %v3362
        %v3364 = vpop.f32.mrf.mxu0
        %3365 = vmatprep.mubr.bf16.mxu0 0
        %3366 = vmatmul.mubr.bf16.gmra.mxu0 %v3317
        %v3367 = vpop.f32.mrf.mxu0
        %v3368 = vadd.f32 %v3096, %v3367
        %v3369 = vpop.f32.mrf.mxu0
        %v3370 = vpop.f32.mrf.mxu0
        %v3371 = vadd.f32 %v3097, %v3370
        %v3372 = vpop.f32.mrf.mxu0
        %3373 = vdwg.mxu0
        %v3374 = vsel %vm425, %v3153, -inf
        %3375 = vmax.xlane.f32.xlu0 %v3374
        %v3376 = vpop.xlane.xlu0 %3375
        %v3377 = vsel %vm425, %v3156, -inf
        %3378 = vmax.xlane.f32.xlu0 %v3377
        %v3379 = vpop.xlane.xlu0 %3378
        %v3380 = vsel %vm425, %v3161, -inf
        %3381 = vmax.xlane.f32.xlu0 %v3380
        %v3382 = vpop.xlane.xlu0 %3381
        %v3383 = vsel %vm425, %v3164, -inf
        %3384 = vmax.xlane.f32.xlu0 %v3383
        %v3385 = vpop.xlane.xlu0 %3384
        %v3386 = vsel %vm425, %v3222, -inf
        %3387 = vmax.xlane.f32.xlu0 %v3386
        %v3388 = vpop.xlane.xlu0 %3387
        %v3389 = vsel %vm425, %v3225, -inf
        %3390 = vmax.xlane.f32.xlu0 %v3389
        %v3391 = vpop.xlane.xlu0 %3390
        %v3392 = vsel %vm425, %v3230, -inf
        %3393 = vmax.xlane.f32.xlu0 %v3392
        %v3394 = vpop.xlane.xlu0 %3393
        %v3395 = vsel %vm425, %v3233, -inf
        %3396 = vmax.xlane.f32.xlu0 %v3395
        %v3397 = vpop.xlane.xlu0 %3396
        %v3398 = vsel %vm425, %v3291, -inf
        %3399 = vmax.xlane.f32.xlu0 %v3398
        %v3400 = vpop.xlane.xlu0 %3399
        %v3401 = vsel %vm425, %v3294, -inf
        %3402 = vmax.xlane.f32.xlu0 %v3401
        %v3403 = vpop.xlane.xlu0 %3402
        %v3404 = vsel %vm425, %v3299, -inf
        %3405 = vmax.xlane.f32.xlu0 %v3404
        %v3406 = vpop.xlane.xlu0 %3405
        %v3407 = vsel %vm425, %v3302, -inf
        %3408 = vmax.xlane.f32.xlu0 %v3407
        %v3409 = vpop.xlane.xlu0 %3408
        %v3410 = vsel %vm425, %v3360, -inf
        %3411 = vmax.xlane.f32.xlu0 %v3410
        %v3412 = vpop.xlane.xlu0 %3411
        %v3413 = vsel %vm425, %v3363, -inf
        %3414 = vmax.xlane.f32.xlu0 %v3413
        %v3415 = vpop.xlane.xlu0 %3414
        %v3416 = vsel %vm425, %v3368, -inf
        %3417 = vmax.xlane.f32.xlu0 %v3416
        %v3418 = vpop.xlane.xlu0 %3417
        %v3419 = vsel %vm425, %v3371, -inf
        %3420 = vmax.xlane.f32.xlu0 %v3419
        %v3421 = vpop.xlane.xlu0 %3420
        %v3422 = vsub.f32 %v3153, %v3376
        %v3423 = vsub.f32 %v3156, %v3379
        %v3424 = vsub.f32 %v3161, %v3382
        %v3425 = vsub.f32 %v3164, %v3385
        %v3426 = vsub.f32 %v3222, %v3388
        %v3427 = vsub.f32 %v3225, %v3391
        %v3428 = vsub.f32 %v3230, %v3394
        %v3429 = vsub.f32 %v3233, %v3397
        %v3430 = vsub.f32 %v3291, %v3400
        %v3431 = vsub.f32 %v3294, %v3403
        %v3432 = vsub.f32 %v3299, %v3406
        %v3433 = vsub.f32 %v3302, %v3409
        %v3434 = vsub.f32 %v3360, %v3412
        %v3435 = vsub.f32 %v3363, %v3415
        %v3436 = vsub.f32 %v3368, %v3418
        %v3437 = vsub.f32 %v3371, %v3421
        %v3438 = vmul.f32 %v3422, 1.442695
        %v3439 = vpow.pop %v3438
        %v3440 = vmul.f32 %v3423, 1.442695
        %v3441 = vpow.pop %v3440
        %v3442 = vmul.f32 %v3424, 1.442695
        %v3443 = vpow.pop %v3442
        %v3444 = vmul.f32 %v3425, 1.442695
        %v3445 = vpow.pop %v3444
        %v3446 = vmul.f32 %v3426, 1.442695
        %v3447 = vpow.pop %v3446
        %v3448 = vmul.f32 %v3427, 1.442695
        %v3449 = vpow.pop %v3448
        %v3450 = vmul.f32 %v3428, 1.442695
        %v3451 = vpow.pop %v3450
        %v3452 = vmul.f32 %v3429, 1.442695
        %v3453 = vpow.pop %v3452
        %v3454 = vmul.f32 %v3430, 1.442695
        %v3455 = vpow.pop %v3454
        %v3456 = vmul.f32 %v3431, 1.442695
        %v3457 = vpow.pop %v3456
        %v3458 = vmul.f32 %v3432, 1.442695
        %v3459 = vpow.pop %v3458
        %v3460 = vmul.f32 %v3433, 1.442695
        %v3461 = vpow.pop %v3460
        %v3462 = vmul.f32 %v3434, 1.442695
        %v3463 = vpow.pop %v3462
        %v3464 = vmul.f32 %v3435, 1.442695
        %v3465 = vpow.pop %v3464
        %v3466 = vmul.f32 %v3436, 1.442695
        %v3467 = vpow.pop %v3466
        %v3468 = vmul.f32 %v3437, 1.442695
        %v3469 = vpow.pop %v3468
        %v3470 = vsel %vm425, %v3439, 0.0
        %3471 = vadd.xlane.f32.xlu0 %v3470
        %v3472 = vpop.xlane.xlu0 %3471
        %v3473 = vsel %vm425, %v3441, 0.0
        %3474 = vadd.xlane.f32.xlu0 %v3473
        %v3475 = vpop.xlane.xlu0 %3474
        %v3476 = vsel %vm425, %v3443, 0.0
        %3477 = vadd.xlane.f32.xlu0 %v3476
        %v3478 = vpop.xlane.xlu0 %3477
        %v3479 = vsel %vm425, %v3445, 0.0
        %3480 = vadd.xlane.f32.xlu0 %v3479
        %v3481 = vpop.xlane.xlu0 %3480
        %v3482 = vsel %vm425, %v3447, 0.0
        %3483 = vadd.xlane.f32.xlu0 %v3482
        %v3484 = vpop.xlane.xlu0 %3483
        %v3485 = vsel %vm425, %v3449, 0.0
        %3486 = vadd.xlane.f32.xlu0 %v3485
        %v3487 = vpop.xlane.xlu0 %3486
        %v3488 = vsel %vm425, %v3451, 0.0
        %3489 = vadd.xlane.f32.xlu0 %v3488
        %v3490 = vpop.xlane.xlu0 %3489
        %v3491 = vsel %vm425, %v3453, 0.0
        %3492 = vadd.xlane.f32.xlu0 %v3491
        %v3493 = vpop.xlane.xlu0 %3492
        %v3494 = vsel %vm425, %v3455, 0.0
        %3495 = vadd.xlane.f32.xlu0 %v3494
        %v3496 = vpop.xlane.xlu0 %3495
        %v3497 = vsel %vm425, %v3457, 0.0
        %3498 = vadd.xlane.f32.xlu0 %v3497
        %v3499 = vpop.xlane.xlu0 %3498
        %v3500 = vsel %vm425, %v3459, 0.0
        %3501 = vadd.xlane.f32.xlu0 %v3500
        %v3502 = vpop.xlane.xlu0 %3501
        %v3503 = vsel %vm425, %v3461, 0.0
        %3504 = vadd.xlane.f32.xlu0 %v3503
        %v3505 = vpop.xlane.xlu0 %3504
        %v3506 = vsel %vm425, %v3463, 0.0
        %3507 = vadd.xlane.f32.xlu0 %v3506
        %v3508 = vpop.xlane.xlu0 %3507
        %v3509 = vsel %vm425, %v3465, 0.0
        %3510 = vadd.xlane.f32.xlu0 %v3509
        %v3511 = vpop.xlane.xlu0 %3510
        %v3512 = vsel %vm425, %v3467, 0.0
        %3513 = vadd.xlane.f32.xlu0 %v3512
        %v3514 = vpop.xlane.xlu0 %3513
        %v3515 = vsel %vm425, %v3469, 0.0
        %3516 = vadd.xlane.f32.xlu0 %v3515
        %v3517 = vpop.xlane.xlu0 %3516
        %v3518 = vrcp.pop %v3472
        %v3519 = vrcp.pop %v3475
        %v3520 = vrcp.pop %v3478
        %v3521 = vrcp.pop %v3481
        %v3522 = vrcp.pop %v3484
        %v3523 = vrcp.pop %v3487
        %v3524 = vrcp.pop %v3490
        %v3525 = vrcp.pop %v3493
        %v3526 = vrcp.pop %v3496
        %v3527 = vrcp.pop %v3499
        %v3528 = vrcp.pop %v3502
        %v3529 = vrcp.pop %v3505
        %v3530 = vrcp.pop %v3508
        %v3531 = vrcp.pop %v3511
        %v3532 = vrcp.pop %v3514
        %v3533 = vrcp.pop %v3517
        %v3534 = vmul.f32 %v3439, %v3518
        %v3535 = vmul.f32 %v3441, %v3519
        %v3536 = vmul.f32 %v3443, %v3520
        %v3537 = vmul.f32 %v3445, %v3521
        %v3538 = vmul.f32 %v3447, %v3522
        %v3539 = vmul.f32 %v3449, %v3523
        %v3540 = vmul.f32 %v3451, %v3524
        %v3541 = vmul.f32 %v3453, %v3525
        %v3542 = vmul.f32 %v3455, %v3526
        %v3543 = vmul.f32 %v3457, %v3527
        %v3544 = vmul.f32 %v3459, %v3528
        %v3545 = vmul.f32 %v3461, %v3529
        %v3546 = vmul.f32 %v3463, %v3530
        %v3547 = vmul.f32 %v3465, %v3531
        %v3548 = vmul.f32 %v3467, %v3532
        %v3549 = vmul.f32 %v3469, %v3533
        %v3550 = vpack.c.bf16 %v3535, %v3534
        %v3551 = vpack.c.bf16 %v3537, %v3536
        %v3552 = vpack.c.bf16 %v3539, %v3538
        %v3553 = vpack.c.bf16 %v3541, %v3540
        %v3554 = vpack.c.bf16 %v3543, %v3542
        %v3555 = vpack.c.bf16 %v3545, %v3544
        %v3556 = vpack.c.bf16 %v3547, %v3546
        %v3557 = vpack.c.bf16 %v3549, %v3548
        %3558 = vrot.lane.b32.xlu0 %v547, 40
        %v3559 = vpop.permute.xlu0 %3558
        %3560 = vrot.lane.b32.xlu0 %v548, 40
        %v3561 = vpop.permute.xlu0 %3560
        %v3565 = vsel %vm425, %v3550, 0
        %v3568 = vsel %vm425, %v3551, 0
        %3570 = vmatprep.subr.bf16.mxu0 0
        %3571 = vmatpush1.bf16.msra.mxu0 0
        %3572 = vmatprep.subr.bf16.mxu0 0
        %3573 = vmatpush1.bf16.msra.mxu0 0
        %3574 = vmatprep.subr.bf16.mxu0 0
        %3575 = vmatpush1.bf16.msra.mxu0 0
        %3576 = vmatprep.subr.bf16.mxu0 0
        %3577 = vmatpush1.bf16.msra.mxu0 0
        %3578 = vmatprep.subr.bf16.mxu0 0
        %3579 = vmatpush1.bf16.msra.mxu0 0
        %3580 = vmatprep.subr.bf16.mxu0 0
        %3581 = vmatpush1.bf16.msra.mxu0 0
        %3582 = vmatprep.subr.bf16.mxu0 0
        %3583 = vmatpush1.bf16.msra.mxu0 %v3561
        %3584 = vmatprep.subr.bf16.mxu0 0
        %3585 = vmatpush1.bf16.msra.mxu0 %v3559
        %3586 = vmatprep.subr.bf16.mxu0 0
        %3587 = vmatpush2.bf16.msra.mxu0 0
        %3588 = vmatprep.subr.bf16.mxu0 0
        %3589 = vmatpush2.bf16.msra.mxu0 0
        %3590 = vmatprep.subr.bf16.mxu0 0
        %3591 = vmatpush2.bf16.msra.mxu0 0
        %3592 = vmatprep.subr.bf16.mxu0 0
        %3593 = vmatpush2.bf16.msra.mxu0 0
        %3594 = vmatprep.subr.bf16.mxu0 0
        %3595 = vmatpush2.bf16.msra.mxu0 0
        %3596 = vmatprep.subr.bf16.mxu0 0
        %3597 = vmatpush2.bf16.msra.mxu0 0
        %3598 = vmatprep.subr.bf16.mxu0 0
        %3599 = vmatpush2.bf16.msra.mxu0 0
        %3600 = vmatprep.subr.bf16.mxu0 0
        %3601 = vmatpush2.bf16.msra.mxu0 0
        %3602 = vmatprep.mubr.bf16.mxu0 0
        %3603 = vmatmul.mubr.bf16.gmra.mxu0 %v3565
        %v3604 = vpop.f32.mrf.mxu0
        %v3605 = vadd.f32 0.0, %v3604
        %v3606 = vpop.f32.mrf.mxu0
        %v3607 = vpop.f32.mrf.mxu0
        %v3608 = vadd.f32 0.0, %v3607
        %v3609 = vpop.f32.mrf.mxu0
        %3610 = vmatprep.mubr.bf16.mxu0 0
        %3611 = vmatmul.mubr.bf16.gmra.mxu0 %v3568
        %v3612 = vpop.f32.mrf.mxu0
        %v3613 = vadd.f32 0.0, %v3612
        %v3614 = vpop.f32.mrf.mxu0
        %v3615 = vpop.f32.mrf.mxu0
        %v3616 = vadd.f32 0.0, %v3615
        %v3617 = vpop.f32.mrf.mxu0
        %3618 = vdwg.mxu0
        %3619 = vrot.lane.b32.xlu0 %v549, 40
        %v3620 = vpop.permute.xlu0 %3619
        %3621 = vrot.lane.b32.xlu0 %v550, 40
        %v3622 = vpop.permute.xlu0 %3621
        %v3626 = vsel %vm425, %v3552, 0
        %v3629 = vsel %vm425, %v3553, 0
        %3631 = vmatprep.subr.bf16.mxu0 0
        %3632 = vmatpush1.bf16.msra.mxu0 0
        %3633 = vmatprep.subr.bf16.mxu0 0
        %3634 = vmatpush1.bf16.msra.mxu0 0
        %3635 = vmatprep.subr.bf16.mxu0 0
        %3636 = vmatpush1.bf16.msra.mxu0 0
        %3637 = vmatprep.subr.bf16.mxu0 0
        %3638 = vmatpush1.bf16.msra.mxu0 0
        %3639 = vmatprep.subr.bf16.mxu0 0
        %3640 = vmatpush1.bf16.msra.mxu0 0
        %3641 = vmatprep.subr.bf16.mxu0 0
        %3642 = vmatpush1.bf16.msra.mxu0 0
        %3643 = vmatprep.subr.bf16.mxu0 0
        %3644 = vmatpush1.bf16.msra.mxu0 %v3622
        %3645 = vmatprep.subr.bf16.mxu0 0
        %3646 = vmatpush1.bf16.msra.mxu0 %v3620
        %3647 = vmatprep.subr.bf16.mxu0 0
        %3648 = vmatpush2.bf16.msra.mxu0 0
        %3649 = vmatprep.subr.bf16.mxu0 0
        %3650 = vmatpush2.bf16.msra.mxu0 0
        %3651 = vmatprep.subr.bf16.mxu0 0
        %3652 = vmatpush2.bf16.msra.mxu0 0
        %3653 = vmatprep.subr.bf16.mxu0 0
        %3654 = vmatpush2.bf16.msra.mxu0 0
        %3655 = vmatprep.subr.bf16.mxu0 0
        %3656 = vmatpush2.bf16.msra.mxu0 0
        %3657 = vmatprep.subr.bf16.mxu0 0
        %3658 = vmatpush2.bf16.msra.mxu0 0
        %3659 = vmatprep.subr.bf16.mxu0 0
        %3660 = vmatpush2.bf16.msra.mxu0 0
        %3661 = vmatprep.subr.bf16.mxu0 0
        %3662 = vmatpush2.bf16.msra.mxu0 0
        %3663 = vmatprep.mubr.bf16.mxu0 0
        %3664 = vmatmul.mubr.bf16.gmra.mxu0 %v3626
        %v3665 = vpop.f32.mrf.mxu0
        %v3666 = vadd.f32 0.0, %v3665
        %v3667 = vpop.f32.mrf.mxu0
        %v3668 = vpop.f32.mrf.mxu0
        %v3669 = vadd.f32 0.0, %v3668
        %v3670 = vpop.f32.mrf.mxu0
        %3671 = vmatprep.mubr.bf16.mxu0 0
        %3672 = vmatmul.mubr.bf16.gmra.mxu0 %v3629
        %v3673 = vpop.f32.mrf.mxu0
        %v3674 = vadd.f32 0.0, %v3673
        %v3675 = vpop.f32.mrf.mxu0
        %v3676 = vpop.f32.mrf.mxu0
        %v3677 = vadd.f32 0.0, %v3676
        %v3678 = vpop.f32.mrf.mxu0
        %3679 = vdwg.mxu0
        %3680 = vrot.lane.b32.xlu0 %v551, 40
        %v3681 = vpop.permute.xlu0 %3680
        %3682 = vrot.lane.b32.xlu0 %v552, 40
        %v3683 = vpop.permute.xlu0 %3682
        %v3687 = vsel %vm425, %v3554, 0
        %v3690 = vsel %vm425, %v3555, 0
        %3692 = vmatprep.subr.bf16.mxu0 0
        %3693 = vmatpush1.bf16.msra.mxu0 0
        %3694 = vmatprep.subr.bf16.mxu0 0
        %3695 = vmatpush1.bf16.msra.mxu0 0
        %3696 = vmatprep.subr.bf16.mxu0 0
        %3697 = vmatpush1.bf16.msra.mxu0 0
        %3698 = vmatprep.subr.bf16.mxu0 0
        %3699 = vmatpush1.bf16.msra.mxu0 0
        %3700 = vmatprep.subr.bf16.mxu0 0
        %3701 = vmatpush1.bf16.msra.mxu0 0
        %3702 = vmatprep.subr.bf16.mxu0 0
        %3703 = vmatpush1.bf16.msra.mxu0 0
        %3704 = vmatprep.subr.bf16.mxu0 0
        %3705 = vmatpush1.bf16.msra.mxu0 %v3683
        %3706 = vmatprep.subr.bf16.mxu0 0
        %3707 = vmatpush1.bf16.msra.mxu0 %v3681
        %3708 = vmatprep.subr.bf16.mxu0 0
        %3709 = vmatpush2.bf16.msra.mxu0 0
        %3710 = vmatprep.subr.bf16.mxu0 0
        %3711 = vmatpush2.bf16.msra.mxu0 0
        %3712 = vmatprep.subr.bf16.mxu0 0
        %3713 = vmatpush2.bf16.msra.mxu0 0
        %3714 = vmatprep.subr.bf16.mxu0 0
        %3715 = vmatpush2.bf16.msra.mxu0 0
        %3716 = vmatprep.subr.bf16.mxu0 0
        %3717 = vmatpush2.bf16.msra.mxu0 0
        %3718 = vmatprep.subr.bf16.mxu0 0
        %3719 = vmatpush2.bf16.msra.mxu0 0
        %3720 = vmatprep.subr.bf16.mxu0 0
        %3721 = vmatpush2.bf16.msra.mxu0 0
        %3722 = vmatprep.subr.bf16.mxu0 0
        %3723 = vmatpush2.bf16.msra.mxu0 0
        %3724 = vmatprep.mubr.bf16.mxu0 0
        %3725 = vmatmul.mubr.bf16.gmra.mxu0 %v3687
        %v3726 = vpop.f32.mrf.mxu0
        %v3727 = vadd.f32 0.0, %v3726
        %v3728 = vpop.f32.mrf.mxu0
        %v3729 = vpop.f32.mrf.mxu0
        %v3730 = vadd.f32 0.0, %v3729
        %v3731 = vpop.f32.mrf.mxu0
        %3732 = vmatprep.mubr.bf16.mxu0 0
        %3733 = vmatmul.mubr.bf16.gmra.mxu0 %v3690
        %v3734 = vpop.f32.mrf.mxu0
        %v3735 = vadd.f32 0.0, %v3734
        %v3736 = vpop.f32.mrf.mxu0
        %v3737 = vpop.f32.mrf.mxu0
        %v3738 = vadd.f32 0.0, %v3737
        %v3739 = vpop.f32.mrf.mxu0
        %3740 = vdwg.mxu0
        %3741 = vrot.lane.b32.xlu0 %v553, 40
        %v3742 = vpop.permute.xlu0 %3741
        %3743 = vrot.lane.b32.xlu0 %v554, 40
        %v3744 = vpop.permute.xlu0 %3743
        %v3748 = vsel %vm425, %v3556, 0
        %v3751 = vsel %vm425, %v3557, 0
        %3753 = vmatprep.subr.bf16.mxu0 0
        %3754 = vmatpush1.bf16.msra.mxu0 0
        %3755 = vmatprep.subr.bf16.mxu0 0
        %3756 = vmatpush1.bf16.msra.mxu0 0
        %3757 = vmatprep.subr.bf16.mxu0 0
        %3758 = vmatpush1.bf16.msra.mxu0 0
        %3759 = vmatprep.subr.bf16.mxu0 0
        %3760 = vmatpush1.bf16.msra.mxu0 0
        %3761 = vmatprep.subr.bf16.mxu0 0
        %3762 = vmatpush1.bf16.msra.mxu0 0
        %3763 = vmatprep.subr.bf16.mxu0 0
        %3764 = vmatpush1.bf16.msra.mxu0 0
        %3765 = vmatprep.subr.bf16.mxu0 0
        %3766 = vmatpush1.bf16.msra.mxu0 %v3744
        %3767 = vmatprep.subr.bf16.mxu0 0
        %3768 = vmatpush1.bf16.msra.mxu0 %v3742
        %3769 = vmatprep.subr.bf16.mxu0 0
        %3770 = vmatpush2.bf16.msra.mxu0 0
        %3771 = vmatprep.subr.bf16.mxu0 0
        %3772 = vmatpush2.bf16.msra.mxu0 0
        %3773 = vmatprep.subr.bf16.mxu0 0
        %3774 = vmatpush2.bf16.msra.mxu0 0
        %3775 = vmatprep.subr.bf16.mxu0 0
        %3776 = vmatpush2.bf16.msra.mxu0 0
        %3777 = vmatprep.subr.bf16.mxu0 0
        %3778 = vmatpush2.bf16.msra.mxu0 0
        %3779 = vmatprep.subr.bf16.mxu0 0
        %3780 = vmatpush2.bf16.msra.mxu0 0
        %3781 = vmatprep.subr.bf16.mxu0 0
        %3782 = vmatpush2.bf16.msra.mxu0 0
        %3783 = vmatprep.subr.bf16.mxu0 0
        %3784 = vmatpush2.bf16.msra.mxu0 0
        %3785 = vmatprep.mubr.bf16.mxu0 0
        %3786 = vmatmul.mubr.bf16.gmra.mxu0 %v3748
        %v3787 = vpop.f32.mrf.mxu0
        %v3788 = vadd.f32 0.0, %v3787
        %v3789 = vpop.f32.mrf.mxu0
        %v3790 = vpop.f32.mrf.mxu0
        %v3791 = vadd.f32 0.0, %v3790
        %v3792 = vpop.f32.mrf.mxu0
        %3793 = vmatprep.mubr.bf16.mxu0 0
        %3794 = vmatmul.mubr.bf16.gmra.mxu0 %v3751
        %v3795 = vpop.f32.mrf.mxu0
        %v3796 = vadd.f32 0.0, %v3795
        %v3797 = vpop.f32.mrf.mxu0
        %v3798 = vpop.f32.mrf.mxu0
        %v3799 = vadd.f32 0.0, %v3798
        %v3800 = vpop.f32.mrf.mxu0
        %3801 = vdwg.mxu0
        %v3802 = vpack.c.bf16 %v3608, %v3605
        %v3803 = vpack.c.bf16 %v3616, %v3613
        %v3804 = vpack.c.bf16 %v3669, %v3666
        %v3805 = vpack.c.bf16 %v3677, %v3674
        %v3806 = vpack.c.bf16 %v3730, %v3727
        %v3807 = vpack.c.bf16 %v3738, %v3735
        %v3808 = vpack.c.bf16 %v3791, %v3788
        %v3809 = vpack.c.bf16 %v3799, %v3796
        %v3818 = vunpack.c.l.b16 %v3802
        %v3819 = vunpack.c.h.b16 %v3802
        %v3820 = vunpack.c.l.b16 %v3803
        %v3821 = vunpack.c.h.b16 %v3803
        %v3822 = vunpack.c.l.b16 %v3804
        %v3823 = vunpack.c.h.b16 %v3804
        %v3824 = vunpack.c.l.b16 %v3805
        %v3825 = vunpack.c.h.b16 %v3805
        %v3826 = vunpack.c.l.b16 %v3806
        %v3827 = vunpack.c.h.b16 %v3806
        %v3828 = vunpack.c.l.b16 %v3807
        %v3829 = vunpack.c.h.b16 %v3807
        %v3830 = vunpack.c.l.b16 %v3808
        %v3831 = vunpack.c.h.b16 %v3808
        %v3832 = vunpack.c.l.b16 %v3809
        %v3833 = vunpack.c.h.b16 %v3809
        %v3834 = vpack.c.b16 %v3818, %v3818
        %v3835 = vpack.c.b16 %v3819, %v3819
        %v3836 = vpack.c.b16 %v3820, %v3820
        %v3837 = vpack.c.b16 %v3821, %v3821
        %v3838 = vpack.c.b16 %v3822, %v3822
        %v3839 = vpack.c.b16 %v3823, %v3823
        %v3840 = vpack.c.b16 %v3824, %v3824
        %v3841 = vpack.c.b16 %v3825, %v3825
        %v3842 = vpack.c.b16 %v3826, %v3826
        %v3843 = vpack.c.b16 %v3827, %v3827
        %v3844 = vpack.c.b16 %v3828, %v3828
        %v3845 = vpack.c.b16 %v3829, %v3829
        %v3846 = vpack.c.b16 %v3830, %v3830
        %v3847 = vpack.c.b16 %v3831, %v3831
        %v3848 = vpack.c.b16 %v3832, %v3832
        %v3849 = vpack.c.b16 %v3833, %v3833
        %3850 = vrot.lane.b32.xlu0 %v3834, 24
        %v3851 = vpop.permute.xlu0 %3850
        %3852 = vrot.lane.b32.xlu0 %v3835, 24
        %v3853 = vpop.permute.xlu0 %3852
        %3854 = vrot.lane.b32.xlu0 %v3836, 24
        %v3855 = vpop.permute.xlu0 %3854
        %3856 = vrot.lane.b32.xlu0 %v3837, 24
        %v3857 = vpop.permute.xlu0 %3856
        %3858 = vrot.lane.b32.xlu0 %v3838, 24
        %v3859 = vpop.permute.xlu0 %3858
        %3860 = vrot.lane.b32.xlu0 %v3839, 24
        %v3861 = vpop.permute.xlu0 %3860
        %3862 = vrot.lane.b32.xlu0 %v3840, 24
        %v3863 = vpop.permute.xlu0 %3862
        %3864 = vrot.lane.b32.xlu0 %v3841, 24
        %v3865 = vpop.permute.xlu0 %3864
        %3866 = vrot.lane.b32.xlu0 %v3842, 24
        %v3867 = vpop.permute.xlu0 %3866
        %3868 = vrot.lane.b32.xlu0 %v3843, 24
        %v3869 = vpop.permute.xlu0 %3868
        %3870 = vrot.lane.b32.xlu0 %v3844, 24
        %v3871 = vpop.permute.xlu0 %3870
        %3872 = vrot.lane.b32.xlu0 %v3845, 24
        %v3873 = vpop.permute.xlu0 %3872
        %3874 = vrot.lane.b32.xlu0 %v3846, 24
        %v3875 = vpop.permute.xlu0 %3874
        %3876 = vrot.lane.b32.xlu0 %v3847, 24
        %v3877 = vpop.permute.xlu0 %3876
        %3878 = vrot.lane.b32.xlu0 %v3848, 24
        %v3879 = vpop.permute.xlu0 %3878
        %3880 = vrot.lane.b32.xlu0 %v3849, 24
        %v3881 = vpop.permute.xlu0 %3880
        %vm3898 = vcmask 257216
        %3899 = vst.msk [vmem:[#allocation2] sm:$0xf] %vm3898, %v3851
        %3900 = vst.msk [vmem:[#allocation2 + $0x4] sm:$0xf] %vm3898, %v3853
        %3901 = vst.msk [vmem:[#allocation2 + $0x8] sm:$0xf] %vm3898, %v3855
        %3902 = vst.msk [vmem:[#allocation2 + $0xc] sm:$0xf] %vm3898, %v3857
        %3903 = vst.msk [vmem:[#allocation2 + $0x10] sm:$0xf] %vm3898, %v3859
        %3904 = vst.msk [vmem:[#allocation2 + $0x14] sm:$0xf] %vm3898, %v3861
        %3905 = vst.msk [vmem:[#allocation2 + $0x18] sm:$0xf] %vm3898, %v3863
        %3906 = vst.msk [vmem:[#allocation2 + $0x1c] sm:$0xf] %vm3898, %v3865
        %3907 = vst.msk [vmem:[#allocation2 + $0x20] sm:$0xf] %vm3898, %v3867
        %3908 = vst.msk [vmem:[#allocation2 + $0x24] sm:$0xf] %vm3898, %v3869
        %3909 = vst.msk [vmem:[#allocation2 + $0x28] sm:$0xf] %vm3898, %v3871
        %3910 = vst.msk [vmem:[#allocation2 + $0x2c] sm:$0xf] %vm3898, %v3873
        %3911 = vst.msk [vmem:[#allocation2 + $0x30] sm:$0xf] %vm3898, %v3875
        %3912 = vst.msk [vmem:[#allocation2 + $0x34] sm:$0xf] %vm3898, %v3877
        %3913 = vst.msk [vmem:[#allocation2 + $0x38] sm:$0xf] %vm3898, %v3879
        %3914 = vst.msk [vmem:[#allocation2 + $0x3c] sm:$0xf] %vm3898, %v3881
        %v3915 = vld [vmem:[#allocation2] sm:$0xf]
        %v3916 = vld [vmem:[#allocation2 + $0x4] sm:$0xf]
        %v3917 = vld [vmem:[#allocation2 + $0x8] sm:$0xf]
        %v3918 = vld [vmem:[#allocation2 + $0xc] sm:$0xf]
        %v3919 = vld [vmem:[#allocation2 + $0x10] sm:$0xf]
        %v3920 = vld [vmem:[#allocation2 + $0x14] sm:$0xf]
        %v3921 = vld [vmem:[#allocation2 + $0x18] sm:$0xf]
        %v3922 = vld [vmem:[#allocation2 + $0x1c] sm:$0xf]
        %v3923 = vld [vmem:[#allocation2 + $0x20] sm:$0xf]
        %v3924 = vld [vmem:[#allocation2 + $0x24] sm:$0xf]
        %v3925 = vld [vmem:[#allocation2 + $0x28] sm:$0xf]
        %v3926 = vld [vmem:[#allocation2 + $0x2c] sm:$0xf]
        %v3927 = vld [vmem:[#allocation2 + $0x30] sm:$0xf]
        %v3928 = vld [vmem:[#allocation2 + $0x34] sm:$0xf]
        %v3929 = vld [vmem:[#allocation2 + $0x38] sm:$0xf]
        %v3930 = vld [vmem:[#allocation2 + $0x3c] sm:$0xf]
        %v3931 = vld [vmem:[#allocation9] sm:$0xf]
        %v3932 = vld [vmem:[#allocation9 + $0x4] sm:$0xf]
        %v3933 = vld [vmem:[#allocation9 + $0x8] sm:$0xf]
        %v3934 = vld [vmem:[#allocation9 + $0xc] sm:$0xf]
        %v3935 = vld [vmem:[%s5] sm:$0x1]
        %v3937 = vlaneseq
        %v3938 = vshrl.u32 %v3937, 7
        %v3939 = vsub.s32 0, %v3938
        %v3940 = vrot.slane %v3935, %v3939
        %v3958 = vunpack.c.l.b16 %v3915
        %v3959 = vunpack.c.l.b16 %v3916
        %v3960 = vunpack.c.l.b16 %v3917
        %v3961 = vunpack.c.l.b16 %v3918
        %v3962 = vunpack.c.l.b16 %v3919
        %v3963 = vunpack.c.l.b16 %v3920
        %v3964 = vunpack.c.l.b16 %v3921
        %v3965 = vunpack.c.l.b16 %v3922
        %v3966 = vunpack.c.l.b16 %v3923
        %v3967 = vunpack.c.l.b16 %v3924
        %v3968 = vunpack.c.l.b16 %v3925
        %v3969 = vunpack.c.l.b16 %v3926
        %v3970 = vunpack.c.l.b16 %v3927
        %v3971 = vunpack.c.l.b16 %v3928
        %v3972 = vunpack.c.l.b16 %v3929
        %v3973 = vunpack.c.l.b16 %v3930
        %v3974 = vpack.c.b16 %v3959, %v3958
        %v3975 = vpack.c.b16 %v3961, %v3960
        %v3976 = vpack.c.b16 %v3963, %v3962
        %v3977 = vpack.c.b16 %v3965, %v3964
        %v3978 = vpack.c.b16 %v3967, %v3966
        %v3979 = vpack.c.b16 %v3969, %v3968
        %v3980 = vpack.c.b16 %v3971, %v3970
        %v3981 = vpack.c.b16 %v3973, %v3972
        %v3986 = vunpack.c.l.b16 %v3931
        %v3987 = vunpack.c.l.b16 %v3932
        %v3988 = vunpack.c.l.b16 %v3933
        %v3989 = vunpack.c.l.b16 %v3934
        %v3990 = vpack.c.b16 %v3987, %v3986
        %v3991 = vpack.c.b16 %v3989, %v3988
        %v3995 = vsel %vm425, %v3974, 0
        %v3998 = vsel %vm425, %v3975, 0
        %v4001 = vsel %vm425, %v3976, 0
        %v4004 = vsel %vm425, %v3977, 0
        %v4007 = vsel %vm425, %v3978, 0
        %v4010 = vsel %vm425, %v3979, 0
        %v4013 = vsel %vm425, %v3980, 0
        %v4016 = vsel %vm425, %v3981, 0
        %4018 = vmatprep.subr.bf16.mxu0 0
        %4019 = vmatpush1.bf16.msra.mxu0 0
        %4020 = vmatprep.subr.bf16.mxu0 0
        %4021 = vmatpush1.bf16.msra.mxu0 0
        %4022 = vmatprep.subr.bf16.mxu0 0
        %4023 = vmatpush1.bf16.msra.mxu0 0
        %4024 = vmatprep.subr.bf16.mxu0 0
        %4025 = vmatpush1.bf16.msra.mxu0 0
        %4026 = vmatprep.subr.bf16.mxu0 0
        %4027 = vmatpush1.bf16.msra.mxu0 0
        %4028 = vmatprep.subr.bf16.mxu0 0
        %4029 = vmatpush1.bf16.msra.mxu0 0
        %4030 = vmatprep.subr.bf16.mxu0 0
        %4031 = vmatpush1.bf16.msra.mxu0 %v3991
        %4032 = vmatprep.subr.bf16.mxu0 0
        %4033 = vmatpush1.bf16.msra.mxu0 %v3990
        %4034 = vmatprep.subr.bf16.mxu0 0
        %4035 = vmatpush2.bf16.msra.mxu0 0
        %4036 = vmatprep.subr.bf16.mxu0 0
        %4037 = vmatpush2.bf16.msra.mxu0 0
        %4038 = vmatprep.subr.bf16.mxu0 0
        %4039 = vmatpush2.bf16.msra.mxu0 0
        %4040 = vmatprep.subr.bf16.mxu0 0
        %4041 = vmatpush2.bf16.msra.mxu0 0
        %4042 = vmatprep.subr.bf16.mxu0 0
        %4043 = vmatpush2.bf16.msra.mxu0 0
        %4044 = vmatprep.subr.bf16.mxu0 0
        %4045 = vmatpush2.bf16.msra.mxu0 0
        %4046 = vmatprep.subr.bf16.mxu0 0
        %4047 = vmatpush2.bf16.msra.mxu0 0
        %4048 = vmatprep.subr.bf16.mxu0 0
        %4049 = vmatpush2.bf16.msra.mxu0 0
        %4050 = vmatprep.mubr.bf16.mxu0 0
        %4051 = vmatmul.mubr.bf16.gmra.mxu0 %v3995
        %v4052 = vpop.f32.mrf.mxu0
        %v4053 = vadd.f32 %v3940, %v4052
        %v4054 = vpop.f32.mrf.mxu0
        %v4055 = vpop.f32.mrf.mxu0
        %v4056 = vadd.f32 %v3940, %v4055
        %v4057 = vpop.f32.mrf.mxu0
        %4058 = vmatprep.mubr.bf16.mxu0 0
        %4059 = vmatmul.mubr.bf16.gmra.mxu0 %v3998
        %v4060 = vpop.f32.mrf.mxu0
        %v4061 = vadd.f32 %v3940, %v4060
        %v4062 = vpop.f32.mrf.mxu0
        %v4063 = vpop.f32.mrf.mxu0
        %v4064 = vadd.f32 %v3940, %v4063
        %v4065 = vpop.f32.mrf.mxu0
        %4066 = vmatprep.mubr.bf16.mxu0 0
        %4067 = vmatmul.mubr.bf16.gmra.mxu0 %v4001
        %v4068 = vpop.f32.mrf.mxu0
        %v4069 = vadd.f32 %v3940, %v4068
        %v4070 = vpop.f32.mrf.mxu0
        %v4071 = vpop.f32.mrf.mxu0
        %v4072 = vadd.f32 %v3940, %v4071
        %v4073 = vpop.f32.mrf.mxu0
        %4074 = vmatprep.mubr.bf16.mxu0 0
        %4075 = vmatmul.mubr.bf16.gmra.mxu0 %v4004
        %v4076 = vpop.f32.mrf.mxu0
        %v4077 = vadd.f32 %v3940, %v4076
        %v4078 = vpop.f32.mrf.mxu0
        %v4079 = vpop.f32.mrf.mxu0
        %v4080 = vadd.f32 %v3940, %v4079
        %v4081 = vpop.f32.mrf.mxu0
        %4082 = vmatprep.mubr.bf16.mxu0 0
        %4083 = vmatmul.mubr.bf16.gmra.mxu0 %v4007
        %v4084 = vpop.f32.mrf.mxu0
        %v4085 = vadd.f32 %v3940, %v4084
        %v4086 = vpop.f32.mrf.mxu0
        %v4087 = vpop.f32.mrf.mxu0
        %v4088 = vadd.f32 %v3940, %v4087
        %v4089 = vpop.f32.mrf.mxu0
        %4090 = vmatprep.mubr.bf16.mxu0 0
        %4091 = vmatmul.mubr.bf16.gmra.mxu0 %v4010
        %v4092 = vpop.f32.mrf.mxu0
        %v4093 = vadd.f32 %v3940, %v4092
        %v4094 = vpop.f32.mrf.mxu0
        %v4095 = vpop.f32.mrf.mxu0
        %v4096 = vadd.f32 %v3940, %v4095
        %v4097 = vpop.f32.mrf.mxu0
        %4098 = vmatprep.mubr.bf16.mxu0 0
        %4099 = vmatmul.mubr.bf16.gmra.mxu0 %v4013
        %v4100 = vpop.f32.mrf.mxu0
        %v4101 = vadd.f32 %v3940, %v4100
        %v4102 = vpop.f32.mrf.mxu0
        %v4103 = vpop.f32.mrf.mxu0
        %v4104 = vadd.f32 %v3940, %v4103
        %v4105 = vpop.f32.mrf.mxu0
        %4106 = vmatprep.mubr.bf16.mxu0 0
        %4107 = vmatmul.mubr.bf16.gmra.mxu0 %v4016
        %v4108 = vpop.f32.mrf.mxu0
        %v4109 = vadd.f32 %v3940, %v4108
        %v4110 = vpop.f32.mrf.mxu0
        %v4111 = vpop.f32.mrf.mxu0
        %v4112 = vadd.f32 %v3940, %v4111
        %v4113 = vpop.f32.mrf.mxu0
        %4114 = vdwg.mxu0
        %4115 = vst.msk [vmem:[%s341] sm:$0xff] %vm425, %v4053
        %4116 = vst.msk [vmem:[%s341 + $0x8] sm:$0xff] %vm425, %v4056
        %4117 = vst.msk [vmem:[%s341 + $0x10] sm:$0xff] %vm425, %v4061
        %4118 = vst.msk [vmem:[%s341 + $0x18] sm:$0xff] %vm425, %v4064
        %4119 = vst.msk [vmem:[%s341 + $0x20] sm:$0xff] %vm425, %v4069
        %4120 = vst.msk [vmem:[%s341 + $0x28] sm:$0xff] %vm425, %v4072
        %4121 = vst.msk [vmem:[%s341 + $0x30] sm:$0xff] %vm425, %v4077
        %4122 = vst.msk [vmem:[%s341 + $0x38] sm:$0xff] %vm425, %v4080
        %4123 = vst.msk [vmem:[%s341 + $0x40] sm:$0xff] %vm425, %v4085
        %4124 = vst.msk [vmem:[%s341 + $0x48] sm:$0xff] %vm425, %v4088
        %4125 = vst.msk [vmem:[%s341 + $0x50] sm:$0xff] %vm425, %v4093
        %4126 = vst.msk [vmem:[%s341 + $0x58] sm:$0xff] %vm425, %v4096
        %4127 = vst.msk [vmem:[%s341 + $0x60] sm:$0xff] %vm425, %v4101
        %4128 = vst.msk [vmem:[%s341 + $0x68] sm:$0xff] %vm425, %v4104
        %4129 = vst.msk [vmem:[%s341 + $0x70] sm:$0xff] %vm425, %v4109
        %4130 = vst.msk [vmem:[%s341 + $0x78] sm:$0xff] %vm425, %v4112
        %s4131 = sand.u32 %s185, 1
        %s4132 = scalar_lea.sflag [#allocation5], %s4131
        %s4133 = sand.u32 %s185, 1
        %s4134 = smul.addr %s4133, 128
        %s4135 = scalar_lea.vmem [#allocation11], %s4134
        // Predicated region
        $region61: #{tpu_custom_call.1} parent=43 // pred_check
          %p4136 = pneg %p195
        $region62: #{tpu_custom_call.1} parent=43 // pred_check_branch
          %4138 = sbr.rel (%p4136) target = $region64
        $region63: #{tpu_custom_call.1} parent=43 // pred_region
          %s4139 = smul.u32 4, %s29
          %s4141 = ssub.s32 2048, 2048
          %4142 = vsyncadd %s4132, %s4141
          %s4143 = smul.addr %s4139, 4
          %s4144 = smul.addr %s30, 16
          %s4145 = sadd.s32 %s4143, %s4144
          %s4146 = smul.addr %s4145, 128
          %s4147 = scalar_lea.hbm %s6, %s4146
          %s4148 = sshll.u32 %s4135, 4
          %s4149 = int_to_ptr.vmem [resolvable:$true] %s4148
          %4154 = dma.vmem_to_hbm [thread:$0]  %s4149, 2048, %s4147, %s4132, 128, 128, 8
        $region64: #{tpu_custom_call.1} parent=43 // pred_fallthru
          _
      $region44: #{tpu_custom_call.1} parent=5 // pred_fallthru
        _
      %p4155 = scmp.le.s32.totalorder 2, %s20
      // Predicated region
      $region65: #{tpu_custom_call.1} parent=5 // pred_check
        %p4156 = pneg %p4155
      $region66: #{tpu_custom_call.1} parent=5 // pred_check_branch
        %4158 = sbr.rel (%p4156) target = $region68
      $region67: #{tpu_custom_call.1} parent=5 // pred_region
        %s4159 = ssub.s32 %s20, 2
        // Predicated region
        $region69: #{tpu_custom_call.1} parent=67 // pred_check
          %p4160 = pneg %p201
        $region70: #{tpu_custom_call.1} parent=67 // pred_check_branch
          %4162 = sbr.rel (%p4160) target = $region72
        $region71: #{tpu_custom_call.1} parent=67 // pred_region
          %s4163 = sand.u32 %s186, 1
          %s4164 = scalar_lea.sflag [#allocation5], %s4163
          %s4165 = sand.u32 %s186, 1
          %s4166 = smul.addr %s4165, 128
          %s4167 = scalar_lea.vmem [#allocation11], %s4166
          %4168 = dma.done %s4164, 2048
        $region72: #{tpu_custom_call.1} parent=67 // pred_fallthru
          _
      $region68: #{tpu_custom_call.1} parent=5 // pred_fallthru
        _
    $region6: #{tpu_custom_call.1} parent=1 // loop_footer
      %s24 = sadd.s32 1, %s20
    $region7: #{tpu_custom_call.1} parent=1 // loop_footer_branch
      %19 = sbr.rel target = $region3
    $region8: #{tpu_custom_call.1} parent=1 // loop_exit
      _
    %4169 = vsyncpa [#allocation4], 1
    %s4170 = scalar_lea.sflag [#allocation4], 1
    %4171 = vsyncpa %s4170, 1
    %4172 = vsyncpa [#allocation7], 1
    %4173 = vsyncpa [#allocation10], 1
    %4174 = vsyncpa [#allocation5], 1
    %s4175 = scalar_lea.sflag [#allocation5], 1
    %4176 = vsyncpa %s4175, 1

</llo_original>
